<compile_context>
chip_gen: v7x
topology: tpu7x:2x2x1
jax: 0.10.0
libtpu: 0.0.40
codegen_flags: <defaults>
</compile_context>

<pallas_src>
import functools

import jax
import jax.numpy as jnp
from jax import lax
from jax.experimental import pallas as pl
from jax.experimental.pallas import tpu as pltpu


_PAD_D1 = 128    # gc1 head width (100) zero-padded to a lane-aligned 128
_OUT_PAD = 128   # fc2 output columns zero-padded to a lane-dense 128


# ----------------------------------------------------------------------------
# Masked edge-softmax over the source (lane) axis, applied to stacked heads.
# ----------------------------------------------------------------------------
def _masked_softmax(e, mask, neg_slope):
    """e: (..., N_dst, N_src) raw scores (f32); mask broadcastable to e."""
    e = jnp.where(e >= 0, e, neg_slope * e)                     # leaky ReLU (f32)
    e = jnp.where(mask, e, jnp.float32(-1e30))
    m = jnp.max(e, axis=-1, keepdims=True)
    p = jnp.where(mask, jnp.exp(e - m), jnp.float32(0.0))
    denom = jnp.sum(p, axis=-1, keepdims=True)
    # Guard: dst nodes with no incoming edge get all-zero alpha (reference
    # would give NaN); inputs here always carry self-loops.
    denom = jnp.maximum(denom, jnp.float32(1e-20))
    return p * pl.reciprocal(denom, approx=True)


# ----------------------------------------------------------------------------
# Fused Net kernel: gc1 (all heads) -> gc2 -> mean_nodes -> fc1/relu -> fc2.
# One grid step = Gt graphs (block-diagonal adjacency over Gt*N nodes).
# ----------------------------------------------------------------------------
def net_kernel(feat_ref, adj_ref, sf_ref,
               w1_ref, a1s_ref, a1d_ref, w2_ref, a2s_ref, a2d_ref,
               pool_ref, fc1a_ref, fc1b_ref, b1_ref, fc2_ref, b2_ref,
               out_ref, *, neg_slope):
    mxu_dt = w1_ref.dtype                       # bf16 (default) or f32
    num_heads = a1d_ref.shape[1]
    head_dim = w1_ref.shape[1] // num_heads

    h = feat_ref[...].astype(mxu_dt)            # (GN, Fin), GN = Gt*N
    mask = adj_ref[0] != 0                      # (GN_dst, GN_src) block-diag, int8 compare

    # ---- gc1: all heads & all Gt graphs share one stacked feature matmul ----
    z1 = jnp.dot(h, w1_ref[...], preferred_element_type=jnp.float32)   # (GN, H*128) f32
    z1c = z1.astype(mxu_dt)

    # Row-layout src scores and column-layout dst scores (no transpose of z).
    s_rows = lax.dot_general(a1s_ref[...], z1c, (((1,), (1,)), ((), ())),
                             preferred_element_type=jnp.float32)       # (H, GN)
    d_cols = jnp.dot(z1c, a1d_ref[...],
                     preferred_element_type=jnp.float32)               # (GN, H)

    # Stack the per-head score matrices and run ONE masked softmax for all heads.
    e1 = jnp.stack([d_cols[:, hh:hh + 1] + s_rows[hh:hh + 1, :]
                    for hh in range(num_heads)], axis=0)               # (H, GN, GN)
    alpha1 = _masked_softmax(e1, mask[None], neg_slope)                # (H, GN, GN)

    # ---- per-head aggregation folded straight into gc2's feature transform ----
    # (no h1 = concat(heads) materialization: z2 += relu(alpha_h @ z_h) @ w2_h)
    w2 = w2_ref[...]                                                   # (H*128, d2)
    z2 = jnp.zeros((z1.shape[0], w2.shape[1]), jnp.float32)
    for hh in range(num_heads):
        zh = z1c[:, hh * head_dim:(hh + 1) * head_dim]                 # (GN, 128)
        agg = jnp.dot(alpha1[hh].astype(mxu_dt), zh,
                      preferred_element_type=jnp.float32)              # (GN, 128)
        h1h = jnp.maximum(agg, 0.0).astype(mxu_dt)                     # ReLU(gc1 head)
        z2 = z2 + jnp.dot(h1h, w2[hh * head_dim:(hh + 1) * head_dim, :],
                          preferred_element_type=jnp.float32)          # (GN, d2)
    z2c = z2.astype(mxu_dt)

    # ---- gc2: single head ----
    s2_row = lax.dot_general(a2s_ref[...], z2c, (((1,), (1,)), ((), ())),
                             preferred_element_type=jnp.float32)       # (1, GN)
    d2_col = jnp.dot(z2c, a2d_ref[...],
                     preferred_element_type=jnp.float32)               # (GN, 1)
    alpha2 = _masked_softmax(d2_col + s2_row, mask, neg_slope)         # (GN, GN)
    h2 = jnp.maximum(jnp.dot(alpha2.astype(mxu_dt), z2c,
                             preferred_element_type=jnp.float32), 0.0)  # (GN, d2)

    # ---- readout: per-graph mean via one pooling matmul, then fc1/relu/fc2 ----
    # TODO(synk): divides by the dense node count N; padded / variable-size
    # graphs would need a node mask and true per-graph counts.
    hg = jnp.dot(pool_ref[...], h2, preferred_element_type=jnp.float32)   # (Gt, d2)
    x = (jnp.dot(hg, fc1a_ref[...], preferred_element_type=jnp.float32)
         + jnp.dot(sf_ref[...], fc1b_ref[...], preferred_element_type=jnp.float32)
         + b1_ref[...])
    x = jnp.maximum(x, 0.0)
    out = jnp.dot(x, fc2_ref[...], preferred_element_type=jnp.float32) + b2_ref[...]
    out_ref[...] = out.astype(out_ref.dtype)                              # (Gt, 128) lane-dense


# ----------------------------------------------------------------------------
# Parameter packing: stack gc1 heads (100 -> 128 lane-aligned pad), block-place
# attention vectors, pad gc2's rows to match, lane-pad fc2 columns to 128.
# ----------------------------------------------------------------------------
def pack_params(params, *, mxu_dtype, out_pad):
    gc1 = params["gc1"]
    num_heads = len(gc1)
    fin, d1 = gc1[0]["w"].shape
    hd = _PAD_D1
    assert d1 <= hd

    w1 = jnp.zeros((fin, num_heads * hd), jnp.float32)
    a1s = jnp.zeros((num_heads, num_heads * hd), jnp.float32)
    a1d = jnp.zeros((num_heads * hd, num_heads), jnp.float32)
    for h, p in enumerate(gc1):
        w1 = w1.at[:, h * hd:h * hd + d1].set(p["w"])
        a1s = a1s.at[h, h * hd:h * hd + d1].set(p["a_src"][0])
        a1d = a1d.at[h * hd:h * hd + d1, h].set(p["a_dst"][0])

    g2 = params["gc2"]
    d2 = g2["w"].shape[1]
    w2 = jnp.zeros((num_heads * hd, d2), jnp.float32)
    for h in range(num_heads):
        w2 = w2.at[h * hd:h * hd + d1, :].set(g2["w"][h * d1:(h + 1) * d1, :])
    a2s = g2["a_src"]                 # (1, d2)  row layout
    a2d = g2["a_dst"].T               # (d2, 1)  column layout

    dim_out = params["w2"].shape[1]
    fc2p = jnp.zeros((params["w2"].shape[0], out_pad), jnp.float32)
    fc2p = fc2p.at[:, :dim_out].set(params["w2"])
    b2p = jnp.zeros((1, out_pad), jnp.float32).at[:, :dim_out].set(params["b2"])

    c = lambda x: x.astype(mxu_dtype)       # MXU operands only; fc math stays f32
    return (c(w1), c(a1s), c(a1d), c(w2), c(a2s), c(a2d),
            params["w1a"], params["w1b"], params["b1"], fc2p, b2p)


def _pick_graphs_per_step(batch, n_nodes):
    """Smallest divisor of `batch` filling >=128 MXU rows, subject to the
    (8,128) sublane constraint (or the block covering the whole array)."""
    cands = [g for g in range(1, batch + 1) if batch % g == 0
             and (g == batch or (g % 8 == 0 and (g * n_nodes) % 8 == 0))]
    for g in cands:
        if g * n_nodes >= 128:
            return g
    return cands[-1]


# ----------------------------------------------------------------------------
# Wrapper: one pallas_call for the whole network, Gt graphs per grid step.
# ----------------------------------------------------------------------------
def net_forward(feat, adj, self_feat, params, *, neg_slope=0.01,
                graphs_per_step=None, mxu_dtype=jnp.bfloat16):
    B, N, Fin = feat.shape
    S = self_feat.shape[1]
    dim_out = params["w2"].shape[1]

    gt = graphs_per_step or _pick_graphs_per_step(B, N)
    assert B % gt == 0, (B, gt)
    steps = B // gt                      # keep this even when possible (v7x: 2 TCs)
    gn = gt * N

    packed = pack_params(params, mxu_dtype=mxu_dtype, out_pad=_OUT_PAD)
    # Block pooling matrix: hg[g] = mean over nodes of graph g in the step.
    pool = jnp.kron(jnp.eye(gt, dtype=jnp.float32),
                    jnp.full((1, N), 1.0 / N, jnp.float32))            # (gt, gn)
    weights = packed[:6] + (pool,) + packed[6:]

    feat2d = feat.reshape(B * N, Fin)
    # dst-major, block-diagonal, int8 adjacency:
    #   adj_bd[s, g*N + j, g*N + i] = 1  <=>  edge i -> j in graph s*gt + g.
    adj_dm = (adj > 0).swapaxes(1, 2)                                   # (B, N_dst, N_src)
    adj4 = adj_dm.reshape(steps, gt, N, N)
    eye_g = jnp.eye(gt, dtype=bool)
    adj_bd = (adj4[:, :, :, None, :] & eye_g[None, :, None, :, None]
              ).reshape(steps, gn, gn).astype(jnp.int8)

    vmem_whole = pl.BlockSpec(memory_space=pltpu.MemorySpace.VMEM)
    out = pl.pallas_call(
        functools.partial(net_kernel, neg_slope=neg_slope),
        out_shape=jax.ShapeDtypeStruct((B, _OUT_PAD), jnp.float32),
        grid=(steps,),
        in_specs=[
            pl.BlockSpec((gn, Fin), lambda s: (s, 0)),       # node features (gt graphs)
            pl.BlockSpec((1, gn, gn), lambda s: (s, 0, 0)),  # block-diag adjacency (int8)
            pl.BlockSpec((gt, S), lambda s: (s, 0)),         # self features
        ] + [vmem_whole] * len(weights),                     # weights: VMEM-resident
        out_specs=pl.BlockSpec((gt, _OUT_PAD), lambda s: (s, 0)),
        compiler_params=pltpu.CompilerParams(
            dimension_semantics=("parallel",)),
    )(feat2d, adj_bd, self_feat, *weights)
    return out[:, :dim_out]


# ----------------------------------------------------------------------------
# Pure-JAX reference for verification.
# ----------------------------------------------------------------------------
def gat_head_ref(h, adj, w, a_src, a_dst, apply_relu):
    z = jnp.einsum("bni,io->bno", h, w)
    s = jnp.einsum("bnf,f->bn", z, a_src[0])
    d = jnp.einsum("bnf,f->bn", z, a_dst[0])
    e = s[:, :, None] + d[:, None, :]               # (B, src, dst)
    e = jnp.where(e >= 0, e, 0.01 * e)
    mask = adj > 0
    e = jnp.where(mask, e, -1e30)
    e = e - jnp.max(e, axis=1, keepdims=True)
    p = jnp.where(mask, jnp.exp(e), 0.0)
    alpha = p / jnp.sum(p, axis=1, keepdims=True)
    out = jnp.einsum("bij,bif->bjf", alpha, z)
    return jnp.maximum(out, 0.0) if apply_relu else out


def net_forward_ref(feat, adj, self_feat, params):
    heads = [gat_head_ref(feat, adj, p["w"], p["a_src"], p["a_dst"], True)
             for p in params["gc1"]]
    h1 = jnp.concatenate(heads, axis=-1)
    p2 = params["gc2"]
    h2 = gat_head_ref(h1, adj, p2["w"], p2["a_src"], p2["a_dst"], True)
    hg = jnp.mean(h2, axis=1)
    x = jnp.maximum(hg @ params["w1a"] + self_feat @ params["w1b"]
                    + params["b1"], 0.0)
    return x @ params["w2"] + params["b2"]


# ----------------------------------------------------------------------------
def make_params(key, dim_in, dim_out, num_heads, dim_self_feat):
    d_h1, d_h2 = 100, 20
    keys = iter(jax.random.split(key, 4 * num_heads + 8))

    def lin(k, fan_in, fan_out):
        return (jax.random.normal(k, (fan_in, fan_out), jnp.float32)
                / jnp.sqrt(jnp.float32(fan_in)))

    gc1 = []
    for _ in range(num_heads):
        w = lin(next(keys), dim_in, d_h1)
        a = lin(next(keys), 2 * d_h1, 1).T           # attn_fc ~ nn.Linear(2*100, 1) scale
        gc1.append({"w": w, "a_src": a[:, :d_h1], "a_dst": a[:, d_h1:]})

    w2 = lin(next(keys), d_h1 * num_heads, d_h2)
    a2 = lin(next(keys), 2 * d_h2, 1).T
    gc2 = {"w": w2, "a_src": a2[:, :d_h2], "a_dst": a2[:, d_h2:]}

    w_fc1 = lin(next(keys), d_h2 + dim_self_feat, 10)
    b_fc1 = jax.random.normal(next(keys), (1, 10), jnp.float32) * 0.1
    w_fc2 = lin(next(keys), 10, dim_out)
    b_fc2 = jax.random.normal(next(keys), (1, dim_out), jnp.float32) * 0.1

    return {"gc1": gc1, "gc2": gc2,
            "w1a": w_fc1[:d_h2, :], "w1b": w_fc1[d_h2:, :], "b1": b_fc1,
            "w2": w_fc2, "b2": b_fc2}


if __name__ == "__main__":
    B, N = 32, 8                     # 32 graphs, 8 nodes each -> 16 graphs/step, grid=(2,)
    dim_in, dim_out = 4, 5
    num_heads, dim_self_feat = 2, 3

    key = jax.random.PRNGKey(0)
    k_feat, k_adj, k_sf, k_par = jax.random.split(key, 4)

    feat = jax.random.normal(k_feat, (B, N, dim_in), jnp.float32)
    # random directed edges + self loops (so every node has >=1 incoming edge)
    adj = (jax.random.uniform(k_adj, (B, N, N)) < 0.4).astype(jnp.float32)
    adj = jnp.maximum(adj, jnp.eye(N, dtype=jnp.float32)[None])
    self_feat = jax.random.normal(k_sf, (B, dim_self_feat), jnp.float32)

    params = make_params(k_par, dim_in, dim_out, num_heads, dim_self_feat)

    ref = net_forward_ref(feat, adj, self_feat, params)

    # Default (performance) path: bf16 MXU operands, f32 accumulation, approx
    # reciprocal -> relaxed tolerance.
    out = jax.block_until_ready(net_forward(feat, adj, self_feat, params))
    assert out.shape == (B, dim_out)
    assert jnp.allclose(out, ref, atol=3e-2, rtol=3e-2), (out, ref)

    # f32-operand path for a tight structural check (only the approx
    # reciprocal differs from the pure-JAX reference).
    out_f32 = jax.block_until_ready(
        net_forward(feat, adj, self_feat, params, mxu_dtype=jnp.float32))
    assert jnp.allclose(out_f32, ref, atol=5e-3, rtol=5e-3), (out_f32, ref)

    print("KERNEL_OK")
</pallas_src>

<mosaic_0001>
module attributes {stable_mosaic.version = 11 : i64} {
  func.func @net_kernel(%arg0: i32, %arg1: memref<128x4xf32, #tpu.memory_space<vmem>>, %arg2: memref<1x128x128xi8, #tpu.memory_space<vmem>>, %arg3: memref<16x3xf32, #tpu.memory_space<vmem>>, %arg4: memref<4x256xbf16, #tpu.memory_space<vmem>>, %arg5: memref<2x256xbf16, #tpu.memory_space<vmem>>, %arg6: memref<256x2xbf16, #tpu.memory_space<vmem>>, %arg7: memref<256x20xbf16, #tpu.memory_space<vmem>>, %arg8: memref<1x20xbf16, #tpu.memory_space<vmem>>, %arg9: memref<20x1xbf16, #tpu.memory_space<vmem>>, %arg10: memref<16x128xf32, #tpu.memory_space<vmem>>, %arg11: memref<20x10xf32, #tpu.memory_space<vmem>>, %arg12: memref<3x10xf32, #tpu.memory_space<vmem>>, %arg13: memref<1x10xf32, #tpu.memory_space<vmem>>, %arg14: memref<10x128xf32, #tpu.memory_space<vmem>>, %arg15: memref<1x128xf32, #tpu.memory_space<vmem>>, %arg16: memref<16x128xf32, #tpu.memory_space<vmem>>) attributes {dimension_semantics = [#tpu.dimension_semantics<parallel>], iteration_bounds = array<i64: 2>, scalar_prefetch = 0 : i64, scratch_operands = 0 : i64, tpu.core_type = #tpu.core_type<tc>, window_params = [{transform_indices = @transform_0, window_bounds = array<i64: 128, 4>}, {transform_indices = @transform_1, window_bounds = array<i64: 1, 128, 128>}, {transform_indices = @transform_2, window_bounds = array<i64: 16, 3>}, {pipeline_mode = #tpu.pipeline_mode<synchronous>, transform_indices = @transform_3, window_bounds = array<i64: 4, 256>}, {pipeline_mode = #tpu.pipeline_mode<synchronous>, transform_indices = @transform_4, window_bounds = array<i64: 2, 256>}, {pipeline_mode = #tpu.pipeline_mode<synchronous>, transform_indices = @transform_5, window_bounds = array<i64: 256, 2>}, {pipeline_mode = #tpu.pipeline_mode<synchronous>, transform_indices = @transform_6, window_bounds = array<i64: 256, 20>}, {pipeline_mode = #tpu.pipeline_mode<synchronous>, transform_indices = @transform_7, window_bounds = array<i64: 1, 20>}, {pipeline_mode = #tpu.pipeline_mode<synchronous>, transform_indices = @transform_8, window_bounds = array<i64: 20, 1>}, {pipeline_mode = #tpu.pipeline_mode<synchronous>, transform_indices = @transform_9, window_bounds = array<i64: 16, 128>}, {pipeline_mode = #tpu.pipeline_mode<synchronous>, transform_indices = @transform_10, window_bounds = array<i64: 20, 10>}, {pipeline_mode = #tpu.pipeline_mode<synchronous>, transform_indices = @transform_11, window_bounds = array<i64: 3, 10>}, {pipeline_mode = #tpu.pipeline_mode<synchronous>, transform_indices = @transform_12, window_bounds = array<i64: 1, 10>}, {pipeline_mode = #tpu.pipeline_mode<synchronous>, transform_indices = @transform_13, window_bounds = array<i64: 10, 128>}, {pipeline_mode = #tpu.pipeline_mode<synchronous>, transform_indices = @transform_14, window_bounds = array<i64: 1, 128>}, {transform_indices = @transform_15, window_bounds = array<i64: 16, 128>}]} {
    %c0 = arith.constant 0 : index
    %c0_0 = arith.constant 0 : index
    %0 = vector.load %arg1[%c0, %c0_0] : memref<128x4xf32, #tpu.memory_space<vmem>>, vector<128x4xf32>
    %1 = arith.truncf %0 : vector<128x4xf32> to vector<128x4xbf16>
    %c0_1 = arith.constant 0 : index
    %c0_2 = arith.constant 0 : index
    %c0_3 = arith.constant 0 : index
    %2 = vector.load %arg2[%c0_1, %c0_2, %c0_3] : memref<1x128x128xi8, #tpu.memory_space<vmem>>, vector<1x128x128xi8>
    %3 = vector.shape_cast %2 : vector<1x128x128xi8> to vector<128x128xi8>
    %c0_i8 = arith.constant 0 : i8
    %4 = vector.broadcast %c0_i8 : i8 to vector<128x128xi8>
    %5 = arith.cmpi ne, %3, %4 : vector<128x128xi8>
    %c0_4 = arith.constant 0 : index
    %c0_5 = arith.constant 0 : index
    %6 = vector.load %arg4[%c0_4, %c0_5] : memref<4x256xbf16, #tpu.memory_space<vmem>>, vector<4x256xbf16>
    %cst = arith.constant dense<0.000000e+00> : vector<128x256xf32>
    %7 = tpu.matmul %1, %6, %cst {dimension_numbers = #tpu.dot_dimension_numbers<[1], [0], [0], [1], [0, 0, 1, 1], [], []>} : vector<128x4xbf16>, vector<4x256xbf16>, vector<128x256xf32> -> vector<128x256xf32>
    %8 = arith.truncf %7 : vector<128x256xf32> to vector<128x256xbf16>
    %c0_6 = arith.constant 0 : index
    %c0_7 = arith.constant 0 : index
    %9 = vector.load %arg5[%c0_6, %c0_7] : memref<2x256xbf16, #tpu.memory_space<vmem>>, vector<2x256xbf16>
    %cst_8 = arith.constant dense<0.000000e+00> : vector<2x128xf32>
    %10 = tpu.matmul %9, %8, %cst_8 {dimension_numbers = #tpu.dot_dimension_numbers<[1], [1], [0], [0], [0, 0, 1, 0], [], []>} : vector<2x256xbf16>, vector<128x256xbf16>, vector<2x128xf32> -> vector<2x128xf32>
    %c0_9 = arith.constant 0 : index
    %c0_10 = arith.constant 0 : index
    %11 = vector.load %arg6[%c0_9, %c0_10] : memref<256x2xbf16, #tpu.memory_space<vmem>>, vector<256x2xbf16>
    %cst_11 = arith.constant dense<0.000000e+00> : vector<128x2xf32>
    %12 = tpu.matmul %8, %11, %cst_11 {dimension_numbers = #tpu.dot_dimension_numbers<[1], [0], [0], [1], [0, 0, 1, 1], [], []>} : vector<128x256xbf16>, vector<256x2xbf16>, vector<128x2xf32> -> vector<128x2xf32>
    %13 = vector.extract_strided_slice %12 {offsets = [0, 0], sizes = [128, 1], strides = [1, 1]} : vector<128x2xf32> to vector<128x1xf32>
    %14 = vector.extract_strided_slice %10 {offsets = [0, 0], sizes = [1, 128], strides = [1, 1]} : vector<2x128xf32> to vector<1x128xf32>
    %15 = vector.broadcast %13 : vector<128x1xf32> to vector<128x128xf32>
    %16 = vector.broadcast %14 : vector<1x128xf32> to vector<128x128xf32>
    %17 = arith.addf %15, %16 : vector<128x128xf32>
    %18 = vector.extract_strided_slice %12 {offsets = [0, 1], sizes = [128, 1], strides = [1, 1]} : vector<128x2xf32> to vector<128x1xf32>
    %19 = vector.extract_strided_slice %10 {offsets = [1, 0], sizes = [1, 128], strides = [1, 1]} : vector<2x128xf32> to vector<1x128xf32>
    %20 = vector.broadcast %18 : vector<128x1xf32> to vector<128x128xf32>
    %21 = vector.broadcast %19 : vector<1x128xf32> to vector<128x128xf32>
    %22 = arith.addf %20, %21 : vector<128x128xf32>
    %23 = vector.shape_cast %17 : vector<128x128xf32> to vector<1x128x128xf32>
    %24 = vector.shape_cast %22 : vector<128x128xf32> to vector<1x128x128xf32>
    %25 = tpu.concatenate %23, %24 in 0 : vector<1x128x128xf32>, vector<1x128x128xf32> -> vector<2x128x128xf32>
    %26 = vector.shape_cast %5 : vector<128x128xi1> to vector<1x128x128xi1>
    %cst_12 = arith.constant 0.000000e+00 : f32
    %27 = vector.broadcast %cst_12 : f32 to vector<2x128x128xf32>
    %28 = arith.cmpf oge, %25, %27 : vector<2x128x128xf32>
    %cst_13 = arith.constant 0.00999999977 : f32
    %29 = vector.broadcast %cst_13 : f32 to vector<2x128x128xf32>
    %30 = arith.mulf %29, %25 : vector<2x128x128xf32>
    %31 = arith.select %28, %25, %30 : vector<2x128x128xi1>, vector<2x128x128xf32>
    %cst_14 = arith.constant -1.000000e+30 : f32
    %32 = vector.shape_cast %26 : vector<1x128x128xi1> to vector<1x128x128xi1>
    %33 = vector.broadcast %32 : vector<1x128x128xi1> to vector<2x128x128xi1>
    %34 = vector.broadcast %cst_14 : f32 to vector<2x128x128xf32>
    %35 = arith.select %33, %31, %34 : vector<2x128x128xi1>, vector<2x128x128xf32>
    %cst_15 = arith.constant dense<0xFF800000> : vector<2x128xf32>
    %36 = vector.multi_reduction <maximumf>, %35, %cst_15 [2] : vector<2x128x128xf32> to vector<2x128xf32>
    %37 = vector.shape_cast %36 : vector<2x128xf32> to vector<2x128x1xf32>
    %38 = vector.broadcast %37 : vector<2x128x1xf32> to vector<2x128x128xf32>
    %39 = arith.subf %35, %38 : vector<2x128x128xf32>
    %40 = math.exp %39 : vector<2x128x128xf32>
    %cst_16 = arith.constant 0.000000e+00 : f32
    %41 = vector.shape_cast %26 : vector<1x128x128xi1> to vector<1x128x128xi1>
    %42 = vector.broadcast %41 : vector<1x128x128xi1> to vector<2x128x128xi1>
    %43 = vector.broadcast %cst_16 : f32 to vector<2x128x128xf32>
    %44 = arith.select %42, %40, %43 : vector<2x128x128xi1>, vector<2x128x128xf32>
    %cst_17 = arith.constant dense<0.000000e+00> : vector<2x128xf32>
    %45 = vector.multi_reduction <add>, %44, %cst_17 [2] : vector<2x128x128xf32> to vector<2x128xf32>
    %46 = vector.shape_cast %45 : vector<2x128xf32> to vector<2x128x1xf32>
    %cst_18 = arith.constant 9.99999968E-21 : f32
    %47 = vector.broadcast %cst_18 : f32 to vector<2x128x1xf32>
    %48 = arith.maximumf %46, %47 : vector<2x128x1xf32>
    %49 = tpu.reciprocal %48 {approx = true} : vector<2x128x1xf32> -> vector<2x128x1xf32>
    %50 = vector.broadcast %49 : vector<2x128x1xf32> to vector<2x128x128xf32>
    %51 = arith.mulf %44, %50 : vector<2x128x128xf32>
    %c0_19 = arith.constant 0 : index
    %c0_20 = arith.constant 0 : index
    %52 = vector.load %arg7[%c0_19, %c0_20] : memref<256x20xbf16, #tpu.memory_space<vmem>>, vector<256x20xbf16>
    %cst_21 = arith.constant 0.000000e+00 : f32
    %53 = vector.broadcast %cst_21 : f32 to vector<128x20xf32>
    %54 = vector.extract_strided_slice %8 {offsets = [0, 0], sizes = [128, 128], strides = [1, 1]} : vector<128x256xbf16> to vector<128x128xbf16>
    %55 = vector.extract_strided_slice %51 {offsets = [0, 0, 0], sizes = [1, 128, 128], strides = [1, 1, 1]} : vector<2x128x128xf32> to vector<1x128x128xf32>
    %56 = vector.shape_cast %55 : vector<1x128x128xf32> to vector<128x128xf32>
    %57 = arith.truncf %56 : vector<128x128xf32> to vector<128x128xbf16>
    %cst_22 = arith.constant dense<0.000000e+00> : vector<128x128xf32>
    %58 = tpu.matmul %57, %54, %cst_22 {dimension_numbers = #tpu.dot_dimension_numbers<[1], [0], [0], [1], [0, 0, 1, 1], [], []>} : vector<128x128xbf16>, vector<128x128xbf16>, vector<128x128xf32> -> vector<128x128xf32>
    %cst_23 = arith.constant 0.000000e+00 : f32
    %59 = vector.broadcast %cst_23 : f32 to vector<128x128xf32>
    %60 = arith.maximumf %58, %59 : vector<128x128xf32>
    %61 = arith.truncf %60 : vector<128x128xf32> to vector<128x128xbf16>
    %62 = vector.extract_strided_slice %52 {offsets = [0, 0], sizes = [128, 20], strides = [1, 1]} : vector<256x20xbf16> to vector<128x20xbf16>
    %cst_24 = arith.constant dense<0.000000e+00> : vector<128x20xf32>
    %63 = tpu.matmul %61, %62, %cst_24 {dimension_numbers = #tpu.dot_dimension_numbers<[1], [0], [0], [1], [0, 0, 1, 1], [], []>} : vector<128x128xbf16>, vector<128x20xbf16>, vector<128x20xf32> -> vector<128x20xf32>
    %64 = arith.addf %53, %63 : vector<128x20xf32>
    %65 = vector.extract_strided_slice %8 {offsets = [0, 128], sizes = [128, 128], strides = [1, 1]} : vector<128x256xbf16> to vector<128x128xbf16>
    %66 = vector.extract_strided_slice %51 {offsets = [1, 0, 0], sizes = [1, 128, 128], strides = [1, 1, 1]} : vector<2x128x128xf32> to vector<1x128x128xf32>
    %67 = vector.shape_cast %66 : vector<1x128x128xf32> to vector<128x128xf32>
    %68 = arith.truncf %67 : vector<128x128xf32> to vector<128x128xbf16>
    %cst_25 = arith.constant dense<0.000000e+00> : vector<128x128xf32>
    %69 = tpu.matmul %68, %65, %cst_25 {dimension_numbers = #tpu.dot_dimension_numbers<[1], [0], [0], [1], [0, 0, 1, 1], [], []>} : vector<128x128xbf16>, vector<128x128xbf16>, vector<128x128xf32> -> vector<128x128xf32>
    %cst_26 = arith.constant 0.000000e+00 : f32
    %70 = vector.broadcast %cst_26 : f32 to vector<128x128xf32>
    %71 = arith.maximumf %69, %70 : vector<128x128xf32>
    %72 = arith.truncf %71 : vector<128x128xf32> to vector<128x128xbf16>
    %73 = vector.extract_strided_slice %52 {offsets = [128, 0], sizes = [128, 20], strides = [1, 1]} : vector<256x20xbf16> to vector<128x20xbf16>
    %cst_27 = arith.constant dense<0.000000e+00> : vector<128x20xf32>
    %74 = tpu.matmul %72, %73, %cst_27 {dimension_numbers = #tpu.dot_dimension_numbers<[1], [0], [0], [1], [0, 0, 1, 1], [], []>} : vector<128x128xbf16>, vector<128x20xbf16>, vector<128x20xf32> -> vector<128x20xf32>
    %75 = arith.addf %64, %74 : vector<128x20xf32>
    %76 = arith.truncf %75 : vector<128x20xf32> to vector<128x20xbf16>
    %c0_28 = arith.constant 0 : index
    %c0_29 = arith.constant 0 : index
    %77 = vector.load %arg8[%c0_28, %c0_29] : memref<1x20xbf16, #tpu.memory_space<vmem>>, vector<1x20xbf16>
    %cst_30 = arith.constant dense<0.000000e+00> : vector<1x128xf32>
    %78 = tpu.matmul %77, %76, %cst_30 {dimension_numbers = #tpu.dot_dimension_numbers<[1], [1], [0], [0], [0, 0, 1, 0], [], []>} : vector<1x20xbf16>, vector<128x20xbf16>, vector<1x128xf32> -> vector<1x128xf32>
    %c0_31 = arith.constant 0 : index
    %c0_32 = arith.constant 0 : index
    %79 = vector.load %arg9[%c0_31, %c0_32] : memref<20x1xbf16, #tpu.memory_space<vmem>>, vector<20x1xbf16>
    %cst_33 = arith.constant dense<0.000000e+00> : vector<128x1xf32>
    %80 = tpu.matmul %76, %79, %cst_33 {dimension_numbers = #tpu.dot_dimension_numbers<[1], [0], [0], [1], [0, 0, 1, 1], [], []>} : vector<128x20xbf16>, vector<20x1xbf16>, vector<128x1xf32> -> vector<128x1xf32>
    %81 = vector.broadcast %80 : vector<128x1xf32> to vector<128x128xf32>
    %82 = vector.broadcast %78 : vector<1x128xf32> to vector<128x128xf32>
    %83 = arith.addf %81, %82 : vector<128x128xf32>
    %cst_34 = arith.constant 0.000000e+00 : f32
    %84 = vector.broadcast %cst_34 : f32 to vector<128x128xf32>
    %85 = arith.cmpf oge, %83, %84 : vector<128x128xf32>
    %cst_35 = arith.constant 0.00999999977 : f32
    %86 = vector.broadcast %cst_35 : f32 to vector<128x128xf32>
    %87 = arith.mulf %86, %83 : vector<128x128xf32>
    %88 = arith.select %85, %83, %87 : vector<128x128xi1>, vector<128x128xf32>
    %cst_36 = arith.constant -1.000000e+30 : f32
    %89 = vector.broadcast %cst_36 : f32 to vector<128x128xf32>
    %90 = arith.select %5, %88, %89 : vector<128x128xi1>, vector<128x128xf32>
    %cst_37 = arith.constant dense<0xFF800000> : vector<128xf32>
    %91 = vector.multi_reduction <maximumf>, %90, %cst_37 [1] : vector<128x128xf32> to vector<128xf32>
    %92 = vector.shape_cast %91 : vector<128xf32> to vector<128x1xf32>
    %93 = vector.broadcast %92 : vector<128x1xf32> to vector<128x128xf32>
    %94 = arith.subf %90, %93 : vector<128x128xf32>
    %95 = math.exp %94 : vector<128x128xf32>
    %cst_38 = arith.constant 0.000000e+00 : f32
    %96 = vector.broadcast %cst_38 : f32 to vector<128x128xf32>
    %97 = arith.select %5, %95, %96 : vector<128x128xi1>, vector<128x128xf32>
    %cst_39 = arith.constant dense<0.000000e+00> : vector<128xf32>
    %98 = vector.multi_reduction <add>, %97, %cst_39 [1] : vector<128x128xf32> to vector<128xf32>
    %99 = vector.shape_cast %98 : vector<128xf32> to vector<128x1xf32>
    %cst_40 = arith.constant 9.99999968E-21 : f32
    %100 = vector.broadcast %cst_40 : f32 to vector<128x1xf32>
    %101 = arith.maximumf %99, %100 : vector<128x1xf32>
    %102 = tpu.reciprocal %101 {approx = true} : vector<128x1xf32> -> vector<128x1xf32>
    %103 = vector.broadcast %102 : vector<128x1xf32> to vector<128x128xf32>
    %104 = arith.mulf %97, %103 : vector<128x128xf32>
    %105 = arith.truncf %104 : vector<128x128xf32> to vector<128x128xbf16>
    %cst_41 = arith.constant dense<0.000000e+00> : vector<128x20xf32>
    %106 = tpu.matmul %105, %76, %cst_41 {dimension_numbers = #tpu.dot_dimension_numbers<[1], [0], [0], [1], [0, 0, 1, 1], [], []>} : vector<128x128xbf16>, vector<128x20xbf16>, vector<128x20xf32> -> vector<128x20xf32>
    %cst_42 = arith.constant 0.000000e+00 : f32
    %107 = vector.broadcast %cst_42 : f32 to vector<128x20xf32>
    %108 = arith.maximumf %106, %107 : vector<128x20xf32>
    %c0_43 = arith.constant 0 : index
    %c0_44 = arith.constant 0 : index
    %109 = vector.load %arg10[%c0_43, %c0_44] : memref<16x128xf32, #tpu.memory_space<vmem>>, vector<16x128xf32>
    %cst_45 = arith.constant dense<0.000000e+00> : vector<16x20xf32>
    %110 = tpu.matmul %109, %108, %cst_45 {dimension_numbers = #tpu.dot_dimension_numbers<[1], [0], [0], [1], [0, 0, 1, 1], [], []>} : vector<16x128xf32>, vector<128x20xf32>, vector<16x20xf32> -> vector<16x20xf32>
    %c0_46 = arith.constant 0 : index
    %c0_47 = arith.constant 0 : index
    %111 = vector.load %arg11[%c0_46, %c0_47] : memref<20x10xf32, #tpu.memory_space<vmem>>, vector<20x10xf32>
    %cst_48 = arith.constant dense<0.000000e+00> : vector<16x10xf32>
    %112 = tpu.matmul %110, %111, %cst_48 {dimension_numbers = #tpu.dot_dimension_numbers<[1], [0], [0], [1], [0, 0, 1, 1], [], []>} : vector<16x20xf32>, vector<20x10xf32>, vector<16x10xf32> -> vector<16x10xf32>
    %c0_49 = arith.constant 0 : index
    %c0_50 = arith.constant 0 : index
    %113 = vector.load %arg3[%c0_49, %c0_50] : memref<16x3xf32, #tpu.memory_space<vmem>>, vector<16x3xf32>
    %c0_51 = arith.constant 0 : index
    %c0_52 = arith.constant 0 : index
    %114 = vector.load %arg12[%c0_51, %c0_52] : memref<3x10xf32, #tpu.memory_space<vmem>>, vector<3x10xf32>
    %cst_53 = arith.constant dense<0.000000e+00> : vector<16x10xf32>
    %115 = tpu.matmul %113, %114, %cst_53 {dimension_numbers = #tpu.dot_dimension_numbers<[1], [0], [0], [1], [0, 0, 1, 1], [], []>} : vector<16x3xf32>, vector<3x10xf32>, vector<16x10xf32> -> vector<16x10xf32>
    %116 = arith.addf %112, %115 : vector<16x10xf32>
    %c0_54 = arith.constant 0 : index
    %c0_55 = arith.constant 0 : index
    %117 = vector.load %arg13[%c0_54, %c0_55] : memref<1x10xf32, #tpu.memory_space<vmem>>, vector<1x10xf32>
    %118 = vector.broadcast %117 : vector<1x10xf32> to vector<16x10xf32>
    %119 = arith.addf %116, %118 : vector<16x10xf32>
    %cst_56 = arith.constant 0.000000e+00 : f32
    %120 = vector.broadcast %cst_56 : f32 to vector<16x10xf32>
    %121 = arith.maximumf %119, %120 : vector<16x10xf32>
    %c0_57 = arith.constant 0 : index
    %c0_58 = arith.constant 0 : index
    %122 = vector.load %arg14[%c0_57, %c0_58] : memref<10x128xf32, #tpu.memory_space<vmem>>, vector<10x128xf32>
    %cst_59 = arith.constant dense<0.000000e+00> : vector<16x128xf32>
    %123 = tpu.matmul %121, %122, %cst_59 {dimension_numbers = #tpu.dot_dimension_numbers<[1], [0], [0], [1], [0, 0, 1, 1], [], []>} : vector<16x10xf32>, vector<10x128xf32>, vector<16x128xf32> -> vector<16x128xf32>
    %c0_60 = arith.constant 0 : index
    %c0_61 = arith.constant 0 : index
    %124 = vector.load %arg15[%c0_60, %c0_61] : memref<1x128xf32, #tpu.memory_space<vmem>>, vector<1x128xf32>
    %125 = vector.broadcast %124 : vector<1x128xf32> to vector<16x128xf32>
    %126 = arith.addf %123, %125 : vector<16x128xf32>
    %c0_62 = arith.constant 0 : index
    %c0_63 = arith.constant 0 : index
    %127 = vector.load %arg16[%c0_62, %c0_63] : memref<16x128xf32, #tpu.memory_space<vmem>>, vector<16x128xf32>
    tpu.vector_store %arg16[%c0_62, %c0_63], %126 {strides = array<i32>} : memref<16x128xf32, #tpu.memory_space<vmem>>, vector<16x128xf32>,
    return
  }
  func.func @transform_0(%arg0: i32) -> (i32, i32) {
    %c0_i32 = arith.constant 0 : i32
    %c0_i32_0 = arith.constant 0 : i32
    return %arg0, %c0_i32 : i32, i32
  }
  func.func @transform_1(%arg0: i32) -> (i32, i32, i32) {
    %c0_i32 = arith.constant 0 : i32
    %c0_i32_0 = arith.constant 0 : i32
    %c0_i32_1 = arith.constant 0 : i32
    return %arg0, %c0_i32, %c0_i32_0 : i32, i32, i32
  }
  func.func @transform_2(%arg0: i32) -> (i32, i32) {
    %c0_i32 = arith.constant 0 : i32
    %c0_i32_0 = arith.constant 0 : i32
    return %arg0, %c0_i32 : i32, i32
  }
  func.func @transform_3(%arg0: i32) -> (i32, i32) {
    %c0_i32 = arith.constant 0 : i32
    %c0_i32_0 = arith.constant 0 : i32
    %c0_i32_1 = arith.constant 0 : i32
    return %c0_i32, %c0_i32_0 : i32, i32
  }
  func.func @transform_4(%arg0: i32) -> (i32, i32) {
    %c0_i32 = arith.constant 0 : i32
    %c0_i32_0 = arith.constant 0 : i32
    %c0_i32_1 = arith.constant 0 : i32
    return %c0_i32, %c0_i32_0 : i32, i32
  }
  func.func @transform_5(%arg0: i32) -> (i32, i32) {
    %c0_i32 = arith.constant 0 : i32
    %c0_i32_0 = arith.constant 0 : i32
    %c0_i32_1 = arith.constant 0 : i32
    return %c0_i32, %c0_i32_0 : i32, i32
  }
  func.func @transform_6(%arg0: i32) -> (i32, i32) {
    %c0_i32 = arith.constant 0 : i32
    %c0_i32_0 = arith.constant 0 : i32
    %c0_i32_1 = arith.constant 0 : i32
    return %c0_i32, %c0_i32_0 : i32, i32
  }
  func.func @transform_7(%arg0: i32) -> (i32, i32) {
    %c0_i32 = arith.constant 0 : i32
    %c0_i32_0 = arith.constant 0 : i32
    %c0_i32_1 = arith.constant 0 : i32
    return %c0_i32, %c0_i32_0 : i32, i32
  }
  func.func @transform_8(%arg0: i32) -> (i32, i32) {
    %c0_i32 = arith.constant 0 : i32
    %c0_i32_0 = arith.constant 0 : i32
    %c0_i32_1 = arith.constant 0 : i32
    return %c0_i32, %c0_i32_0 : i32, i32
  }
  func.func @transform_9(%arg0: i32) -> (i32, i32) {
    %c0_i32 = arith.constant 0 : i32
    %c0_i32_0 = arith.constant 0 : i32
    %c0_i32_1 = arith.constant 0 : i32
    return %c0_i32, %c0_i32_0 : i32, i32
  }
  func.func @transform_10(%arg0: i32) -> (i32, i32) {
    %c0_i32 = arith.constant 0 : i32
    %c0_i32_0 = arith.constant 0 : i32
    %c0_i32_1 = arith.constant 0 : i32
    return %c0_i32, %c0_i32_0 : i32, i32
  }
  func.func @transform_11(%arg0: i32) -> (i32, i32) {
    %c0_i32 = arith.constant 0 : i32
    %c0_i32_0 = arith.constant 0 : i32
    %c0_i32_1 = arith.constant 0 : i32
    return %c0_i32, %c0_i32_0 : i32, i32
  }
  func.func @transform_12(%arg0: i32) -> (i32, i32) {
    %c0_i32 = arith.constant 0 : i32
    %c0_i32_0 = arith.constant 0 : i32
    %c0_i32_1 = arith.constant 0 : i32
    return %c0_i32, %c0_i32_0 : i32, i32
  }
  func.func @transform_13(%arg0: i32) -> (i32, i32) {
    %c0_i32 = arith.constant 0 : i32
    %c0_i32_0 = arith.constant 0 : i32
    %c0_i32_1 = arith.constant 0 : i32
    return %c0_i32, %c0_i32_0 : i32, i32
  }
  func.func @transform_14(%arg0: i32) -> (i32, i32) {
    %c0_i32 = arith.constant 0 : i32
    %c0_i32_0 = arith.constant 0 : i32
    %c0_i32_1 = arith.constant 0 : i32
    return %c0_i32, %c0_i32_0 : i32, i32
  }
  func.func @transform_15(%arg0: i32) -> (i32, i32) {
    %c0_i32 = arith.constant 0 : i32
    %c0_i32_0 = arith.constant 0 : i32
    return %arg0, %c0_i32 : i32, i32
  }
}

</mosaic_0001>

<llo_original>
// kernel: tpu_custom_call.1
$region0: #{tpu_custom_call.1}
  #allocation0 [shape = 'u32[]', space=smem, size = 0x4, offset = 0x4, fixed_abs, tag = 'smem constant byte address 0x4 - core index']
  #allocation1 [shape = 'u32[144,128]{1,0:T(1,128)}', space=vmem, size = 0x12000, scoped, tag = 'internal scratch']
  %s0 = inlined_call_operand.vmem [shape: f32[256,4], index: 0, kind: input, shape index: {}]
  %s1 = inlined_call_operand.vmem [shape: s8[2,128,128], index: 1, kind: input, shape index: {}]
  %s2 = inlined_call_operand.vmem [shape: f32[32,3], index: 2, kind: input, shape index: {}]
  %s3 = inlined_call_operand.vmem [shape: bf16[4,256], index: 3, kind: input, shape index: {}]
  %s4 = inlined_call_operand.vmem [shape: bf16[2,256], index: 4, kind: input, shape index: {}]
  %s5 = inlined_call_operand.vmem [shape: bf16[256,2], index: 5, kind: input, shape index: {}]
  %s6 = inlined_call_operand.vmem [shape: bf16[256,20], index: 6, kind: input, shape index: {}]
  %s7 = inlined_call_operand.vmem [shape: bf16[1,20], index: 7, kind: input, shape index: {}]
  %s8 = inlined_call_operand.vmem [shape: bf16[20,1], index: 8, kind: input, shape index: {}]
  %s9 = inlined_call_operand.vmem [shape: f32[16,128], index: 9, kind: input, shape index: {}]
  %s10 = inlined_call_operand.vmem [shape: f32[20,10], index: 10, kind: input, shape index: {}]
  %s11 = inlined_call_operand.vmem [shape: f32[3,10], index: 11, kind: input, shape index: {}]
  %s12 = inlined_call_operand.vmem [shape: f32[1,10], index: 12, kind: input, shape index: {}]
  %s13 = inlined_call_operand.vmem [shape: f32[10,128], index: 13, kind: input, shape index: {}]
  %s14 = inlined_call_operand.vmem [shape: f32[1,128], index: 14, kind: input, shape index: {}]
  %s15 = inlined_call_operand.hbm [shape: f32[32,128], index: 15, kind: output, shape index: {}]
  %s16 = sld [smem:[#allocation0]]
  $region93: #{tpu_custom_call.1} parent=0
    _
  %s18 = ssub.s32 1, %s16
  %s19 = scalar_select 0, %s18, %s16
  $region1: #{tpu_custom_call.1} parent=0
    #allocation2 [shape = 'u8[16384]{0}', space=vmem, size = 0x4000, scoped, tag = 'output window, operand 0']
    #allocation3 [shape = 's32[2]{0}', space=sflag, size = 0x8, scoped, tag = 'scoped memory for tpu_custom_call.1']
    %20 = vsyncpa [#allocation3], 0
    %s21 = scalar_lea.sflag [#allocation3], 1
    %22 = vsyncpa %s21, 0
    loop: start=0, step=1, limit=4
    $region2: #{tpu_custom_call.1} parent=1 // loop_pre_header
      _
    $region3: #{tpu_custom_call.1} parent=1 // loop_header
      %s24 = sphi 0, %s28
      %p25 = scmp.ge.s32.totalorder %s24, 4
      %s34 = sphi 0, %s36
      %s37 = sphi 0, %s34
      %s38 = sphi 0, %s37
      %s54 = sphi 0, %s38
      %s60 = sphi 0, %s62
      %s63 = sphi 0, %s60
      %s64 = sphi 0, %s63
      %s80 = sphi 0, %s64
      %s86 = sphi 0, %s88
      %s89 = sphi 0, %s86
      %s90 = sphi 0, %s89
      %s106 = sphi 0, %s90
      %s110 = sphi 0, %s110
      %s112 = sphi 0, %s110
      %s113 = sphi 0, %s112
      %s127 = sphi 0, %s113
      %s131 = sphi 0, %s131
      %s133 = sphi 0, %s131
      %s134 = sphi 0, %s133
      %s148 = sphi 0, %s134
      %s152 = sphi 0, %s152
      %s154 = sphi 0, %s152
      %s155 = sphi 0, %s154
      %s169 = sphi 0, %s155
      %s173 = sphi 0, %s173
      %s175 = sphi 0, %s173
      %s176 = sphi 0, %s175
      %s190 = sphi 0, %s176
      %s194 = sphi 0, %s194
      %s196 = sphi 0, %s194
      %s197 = sphi 0, %s196
      %s211 = sphi 0, %s197
      %s215 = sphi 0, %s215
      %s217 = sphi 0, %s215
      %s218 = sphi 0, %s217
      %s232 = sphi 0, %s218
      %s236 = sphi 0, %s236
      %s238 = sphi 0, %s236
      %s239 = sphi 0, %s238
      %s253 = sphi 0, %s239
      %s257 = sphi 0, %s257
      %s259 = sphi 0, %s257
      %s260 = sphi 0, %s259
      %s274 = sphi 0, %s260
      %s278 = sphi 0, %s278
      %s280 = sphi 0, %s278
      %s281 = sphi 0, %s280
      %s295 = sphi 0, %s281
      %s299 = sphi 0, %s299
      %s301 = sphi 0, %s299
      %s302 = sphi 0, %s301
      %s316 = sphi 0, %s302
      %s320 = sphi 0, %s320
      %s322 = sphi 0, %s320
      %s323 = sphi 0, %s322
      %s337 = sphi 0, %s323
      %s341 = sphi 0, %s341
      %s343 = sphi 0, %s341
      %s344 = sphi 0, %s343
      %s358 = sphi 0, %s344
      %s364 = sphi 0, %s366
      %s367 = sphi 0, %s364
      %s368 = sphi 0, %s367
      %s384 = sphi 0, %s368
    $region4: #{tpu_custom_call.1} parent=1 // loop_header_branch
      %27 = sbr.rel (%p25) target = $region8
    $region5: #{tpu_custom_call.1} parent=1 // loop_body
      %s29 = ssub.s32 %s24, 1
      %s30 = ssub.s32 %s24, 2
      %s31 = sadd.s32 %s24, 1
      %s32 = ssub.s32 %s24, %s31
      %p33 = scmp.eq.s32.totalorder %s32, 0
      %s35 = sadd.s32 %s34, 1
      %s36 = scalar_select %p33, %s34, %s35
      %p39 = pneg %p33
      %p40 = scmp.eq.s32.totalorder %s24, 1
      %p41 = por %p39, %p40
      %p42 = scmp.ne.s32.totalorder %s34, %s37
      %p43 = scmp.eq.s32.totalorder %s24, 0
      %p44 = por %p42, %p43
      %p45 = scmp.ne.s32.totalorder %s34, %s37
      %p46 = scmp.eq.s32.totalorder %s29, 1
      %p47 = por %p45, %p46
      %p48 = scmp.ne.s32.totalorder %s37, %s38
      %p49 = scmp.eq.s32.totalorder %s29, 0
      %p50 = por %p48, %p49
      %p51 = scmp.ne.s32.totalorder %s37, %s38
      %p52 = scmp.eq.s32.totalorder %s30, 1
      %p53 = por %p51, %p52
      %p55 = scmp.ne.s32.totalorder %s38, %s54
      %p56 = scmp.eq.s32.totalorder %s30, 0
      %p57 = por %p55, %p56
      %s58 = ssub.s32 %s24, %s31
      %p59 = scmp.eq.s32.totalorder %s58, 0
      %s61 = sadd.s32 %s60, 1
      %s62 = scalar_select %p59, %s60, %s61
      %p65 = pneg %p59
      %p66 = scmp.eq.s32.totalorder %s24, 1
      %p67 = por %p65, %p66
      %p68 = scmp.ne.s32.totalorder %s60, %s63
      %p69 = scmp.eq.s32.totalorder %s24, 0
      %p70 = por %p68, %p69
      %p71 = scmp.ne.s32.totalorder %s60, %s63
      %p72 = scmp.eq.s32.totalorder %s29, 1
      %p73 = por %p71, %p72
      %p74 = scmp.ne.s32.totalorder %s63, %s64
      %p75 = scmp.eq.s32.totalorder %s29, 0
      %p76 = por %p74, %p75
      %p77 = scmp.ne.s32.totalorder %s63, %s64
      %p78 = scmp.eq.s32.totalorder %s30, 1
      %p79 = por %p77, %p78
      %p81 = scmp.ne.s32.totalorder %s64, %s80
      %p82 = scmp.eq.s32.totalorder %s30, 0
      %p83 = por %p81, %p82
      %s84 = ssub.s32 %s24, %s31
      %p85 = scmp.eq.s32.totalorder %s84, 0
      %s87 = sadd.s32 %s86, 1
      %s88 = scalar_select %p85, %s86, %s87
      %p91 = pneg %p85
      %p92 = scmp.eq.s32.totalorder %s24, 1
      %p93 = por %p91, %p92
      %p94 = scmp.ne.s32.totalorder %s86, %s89
      %p95 = scmp.eq.s32.totalorder %s24, 0
      %p96 = por %p94, %p95
      %p97 = scmp.ne.s32.totalorder %s86, %s89
      %p98 = scmp.eq.s32.totalorder %s29, 1
      %p99 = por %p97, %p98
      %p100 = scmp.ne.s32.totalorder %s89, %s90
      %p101 = scmp.eq.s32.totalorder %s29, 0
      %p102 = por %p100, %p101
      %p103 = scmp.ne.s32.totalorder %s89, %s90
      %p104 = scmp.eq.s32.totalorder %s30, 1
      %p105 = por %p103, %p104
      %p107 = scmp.ne.s32.totalorder %s90, %s106
      %p108 = scmp.eq.s32.totalorder %s30, 0
      %p109 = por %p107, %p108
      %s111 = sadd.s32 %s110, 1
      %p114 = scmp.eq.s32.totalorder %s24, 1
      %p115 = scmp.ne.s32.totalorder %s110, %s112
      %p116 = scmp.eq.s32.totalorder %s24, 0
      %p117 = por %p115, %p116
      %p118 = scmp.ne.s32.totalorder %s110, %s112
      %p119 = scmp.eq.s32.totalorder %s29, 1
      %p120 = por %p118, %p119
      %p121 = scmp.ne.s32.totalorder %s112, %s113
      %p122 = scmp.eq.s32.totalorder %s29, 0
      %p123 = por %p121, %p122
      %p124 = scmp.ne.s32.totalorder %s112, %s113
      %p125 = scmp.eq.s32.totalorder %s30, 1
      %p126 = por %p124, %p125
      %p128 = scmp.ne.s32.totalorder %s113, %s127
      %p129 = scmp.eq.s32.totalorder %s30, 0
      %p130 = por %p128, %p129
      %s132 = sadd.s32 %s131, 1
      %p135 = scmp.eq.s32.totalorder %s24, 1
      %p136 = scmp.ne.s32.totalorder %s131, %s133
      %p137 = scmp.eq.s32.totalorder %s24, 0
      %p138 = por %p136, %p137
      %p139 = scmp.ne.s32.totalorder %s131, %s133
      %p140 = scmp.eq.s32.totalorder %s29, 1
      %p141 = por %p139, %p140
      %p142 = scmp.ne.s32.totalorder %s133, %s134
      %p143 = scmp.eq.s32.totalorder %s29, 0
      %p144 = por %p142, %p143
      %p145 = scmp.ne.s32.totalorder %s133, %s134
      %p146 = scmp.eq.s32.totalorder %s30, 1
      %p147 = por %p145, %p146
      %p149 = scmp.ne.s32.totalorder %s134, %s148
      %p150 = scmp.eq.s32.totalorder %s30, 0
      %p151 = por %p149, %p150
      %s153 = sadd.s32 %s152, 1
      %p156 = scmp.eq.s32.totalorder %s24, 1
      %p157 = scmp.ne.s32.totalorder %s152, %s154
      %p158 = scmp.eq.s32.totalorder %s24, 0
      %p159 = por %p157, %p158
      %p160 = scmp.ne.s32.totalorder %s152, %s154
      %p161 = scmp.eq.s32.totalorder %s29, 1
      %p162 = por %p160, %p161
      %p163 = scmp.ne.s32.totalorder %s154, %s155
      %p164 = scmp.eq.s32.totalorder %s29, 0
      %p165 = por %p163, %p164
      %p166 = scmp.ne.s32.totalorder %s154, %s155
      %p167 = scmp.eq.s32.totalorder %s30, 1
      %p168 = por %p166, %p167
      %p170 = scmp.ne.s32.totalorder %s155, %s169
      %p171 = scmp.eq.s32.totalorder %s30, 0
      %p172 = por %p170, %p171
      %s174 = sadd.s32 %s173, 1
      %p177 = scmp.eq.s32.totalorder %s24, 1
      %p178 = scmp.ne.s32.totalorder %s173, %s175
      %p179 = scmp.eq.s32.totalorder %s24, 0
      %p180 = por %p178, %p179
      %p181 = scmp.ne.s32.totalorder %s173, %s175
      %p182 = scmp.eq.s32.totalorder %s29, 1
      %p183 = por %p181, %p182
      %p184 = scmp.ne.s32.totalorder %s175, %s176
      %p185 = scmp.eq.s32.totalorder %s29, 0
      %p186 = por %p184, %p185
      %p187 = scmp.ne.s32.totalorder %s175, %s176
      %p188 = scmp.eq.s32.totalorder %s30, 1
      %p189 = por %p187, %p188
      %p191 = scmp.ne.s32.totalorder %s176, %s190
      %p192 = scmp.eq.s32.totalorder %s30, 0
      %p193 = por %p191, %p192
      %s195 = sadd.s32 %s194, 1
      %p198 = scmp.eq.s32.totalorder %s24, 1
      %p199 = scmp.ne.s32.totalorder %s194, %s196
      %p200 = scmp.eq.s32.totalorder %s24, 0
      %p201 = por %p199, %p200
      %p202 = scmp.ne.s32.totalorder %s194, %s196
      %p203 = scmp.eq.s32.totalorder %s29, 1
      %p204 = por %p202, %p203
      %p205 = scmp.ne.s32.totalorder %s196, %s197
      %p206 = scmp.eq.s32.totalorder %s29, 0
      %p207 = por %p205, %p206
      %p208 = scmp.ne.s32.totalorder %s196, %s197
      %p209 = scmp.eq.s32.totalorder %s30, 1
      %p210 = por %p208, %p209
      %p212 = scmp.ne.s32.totalorder %s197, %s211
      %p213 = scmp.eq.s32.totalorder %s30, 0
      %p214 = por %p212, %p213
      %s216 = sadd.s32 %s215, 1
      %p219 = scmp.eq.s32.totalorder %s24, 1
      %p220 = scmp.ne.s32.totalorder %s215, %s217
      %p221 = scmp.eq.s32.totalorder %s24, 0
      %p222 = por %p220, %p221
      %p223 = scmp.ne.s32.totalorder %s215, %s217
      %p224 = scmp.eq.s32.totalorder %s29, 1
      %p225 = por %p223, %p224
      %p226 = scmp.ne.s32.totalorder %s217, %s218
      %p227 = scmp.eq.s32.totalorder %s29, 0
      %p228 = por %p226, %p227
      %p229 = scmp.ne.s32.totalorder %s217, %s218
      %p230 = scmp.eq.s32.totalorder %s30, 1
      %p231 = por %p229, %p230
      %p233 = scmp.ne.s32.totalorder %s218, %s232
      %p234 = scmp.eq.s32.totalorder %s30, 0
      %p235 = por %p233, %p234
      %s237 = sadd.s32 %s236, 1
      %p240 = scmp.eq.s32.totalorder %s24, 1
      %p241 = scmp.ne.s32.totalorder %s236, %s238
      %p242 = scmp.eq.s32.totalorder %s24, 0
      %p243 = por %p241, %p242
      %p244 = scmp.ne.s32.totalorder %s236, %s238
      %p245 = scmp.eq.s32.totalorder %s29, 1
      %p246 = por %p244, %p245
      %p247 = scmp.ne.s32.totalorder %s238, %s239
      %p248 = scmp.eq.s32.totalorder %s29, 0
      %p249 = por %p247, %p248
      %p250 = scmp.ne.s32.totalorder %s238, %s239
      %p251 = scmp.eq.s32.totalorder %s30, 1
      %p252 = por %p250, %p251
      %p254 = scmp.ne.s32.totalorder %s239, %s253
      %p255 = scmp.eq.s32.totalorder %s30, 0
      %p256 = por %p254, %p255
      %s258 = sadd.s32 %s257, 1
      %p261 = scmp.eq.s32.totalorder %s24, 1
      %p262 = scmp.ne.s32.totalorder %s257, %s259
      %p263 = scmp.eq.s32.totalorder %s24, 0
      %p264 = por %p262, %p263
      %p265 = scmp.ne.s32.totalorder %s257, %s259
      %p266 = scmp.eq.s32.totalorder %s29, 1
      %p267 = por %p265, %p266
      %p268 = scmp.ne.s32.totalorder %s259, %s260
      %p269 = scmp.eq.s32.totalorder %s29, 0
      %p270 = por %p268, %p269
      %p271 = scmp.ne.s32.totalorder %s259, %s260
      %p272 = scmp.eq.s32.totalorder %s30, 1
      %p273 = por %p271, %p272
      %p275 = scmp.ne.s32.totalorder %s260, %s274
      %p276 = scmp.eq.s32.totalorder %s30, 0
      %p277 = por %p275, %p276
      %s279 = sadd.s32 %s278, 1
      %p282 = scmp.eq.s32.totalorder %s24, 1
      %p283 = scmp.ne.s32.totalorder %s278, %s280
      %p284 = scmp.eq.s32.totalorder %s24, 0
      %p285 = por %p283, %p284
      %p286 = scmp.ne.s32.totalorder %s278, %s280
      %p287 = scmp.eq.s32.totalorder %s29, 1
      %p288 = por %p286, %p287
      %p289 = scmp.ne.s32.totalorder %s280, %s281
      %p290 = scmp.eq.s32.totalorder %s29, 0
      %p291 = por %p289, %p290
      %p292 = scmp.ne.s32.totalorder %s280, %s281
      %p293 = scmp.eq.s32.totalorder %s30, 1
      %p294 = por %p292, %p293
      %p296 = scmp.ne.s32.totalorder %s281, %s295
      %p297 = scmp.eq.s32.totalorder %s30, 0
      %p298 = por %p296, %p297
      %s300 = sadd.s32 %s299, 1
      %p303 = scmp.eq.s32.totalorder %s24, 1
      %p304 = scmp.ne.s32.totalorder %s299, %s301
      %p305 = scmp.eq.s32.totalorder %s24, 0
      %p306 = por %p304, %p305
      %p307 = scmp.ne.s32.totalorder %s299, %s301
      %p308 = scmp.eq.s32.totalorder %s29, 1
      %p309 = por %p307, %p308
      %p310 = scmp.ne.s32.totalorder %s301, %s302
      %p311 = scmp.eq.s32.totalorder %s29, 0
      %p312 = por %p310, %p311
      %p313 = scmp.ne.s32.totalorder %s301, %s302
      %p314 = scmp.eq.s32.totalorder %s30, 1
      %p315 = por %p313, %p314
      %p317 = scmp.ne.s32.totalorder %s302, %s316
      %p318 = scmp.eq.s32.totalorder %s30, 0
      %p319 = por %p317, %p318
      %s321 = sadd.s32 %s320, 1
      %p324 = scmp.eq.s32.totalorder %s24, 1
      %p325 = scmp.ne.s32.totalorder %s320, %s322
      %p326 = scmp.eq.s32.totalorder %s24, 0
      %p327 = por %p325, %p326
      %p328 = scmp.ne.s32.totalorder %s320, %s322
      %p329 = scmp.eq.s32.totalorder %s29, 1
      %p330 = por %p328, %p329
      %p331 = scmp.ne.s32.totalorder %s322, %s323
      %p332 = scmp.eq.s32.totalorder %s29, 0
      %p333 = por %p331, %p332
      %p334 = scmp.ne.s32.totalorder %s322, %s323
      %p335 = scmp.eq.s32.totalorder %s30, 1
      %p336 = por %p334, %p335
      %p338 = scmp.ne.s32.totalorder %s323, %s337
      %p339 = scmp.eq.s32.totalorder %s30, 0
      %p340 = por %p338, %p339
      %s342 = sadd.s32 %s341, 1
      %p345 = scmp.eq.s32.totalorder %s24, 1
      %p346 = scmp.ne.s32.totalorder %s341, %s343
      %p347 = scmp.eq.s32.totalorder %s24, 0
      %p348 = por %p346, %p347
      %p349 = scmp.ne.s32.totalorder %s341, %s343
      %p350 = scmp.eq.s32.totalorder %s29, 1
      %p351 = por %p349, %p350
      %p352 = scmp.ne.s32.totalorder %s343, %s344
      %p353 = scmp.eq.s32.totalorder %s29, 0
      %p354 = por %p352, %p353
      %p355 = scmp.ne.s32.totalorder %s343, %s344
      %p356 = scmp.eq.s32.totalorder %s30, 1
      %p357 = por %p355, %p356
      %p359 = scmp.ne.s32.totalorder %s344, %s358
      %p360 = scmp.eq.s32.totalorder %s30, 0
      %p361 = por %p359, %p360
      %s362 = ssub.s32 %s24, %s31
      %p363 = scmp.eq.s32.totalorder %s362, 0
      %s365 = sadd.s32 %s364, 1
      %s366 = scalar_select %p363, %s364, %s365
      %p369 = pneg %p363
      %p370 = scmp.eq.s32.totalorder %s24, 1
      %p371 = por %p369, %p370
      %p372 = scmp.ne.s32.totalorder %s364, %s367
      %p373 = scmp.eq.s32.totalorder %s24, 0
      %p374 = por %p372, %p373
      %p375 = scmp.ne.s32.totalorder %s364, %s367
      %p376 = scmp.eq.s32.totalorder %s29, 1
      %p377 = por %p375, %p376
      %p378 = scmp.ne.s32.totalorder %s367, %s368
      %p379 = scmp.eq.s32.totalorder %s29, 0
      %p380 = por %p378, %p379
      %p381 = scmp.ne.s32.totalorder %s367, %s368
      %p382 = scmp.eq.s32.totalorder %s30, 1
      %p383 = por %p381, %p382
      %p385 = scmp.ne.s32.totalorder %s368, %s384
      %p386 = scmp.eq.s32.totalorder %s30, 0
      %p387 = por %p385, %p386
      %p388 = scmp.le.s32.totalorder 1, %s24
      %p389 = scmp.lt.s32.totalorder %s24, 3
      %p390 = pnand %p388, %p389
      %p391 = pneg %p390
      // Predicated region
      $region9: #{tpu_custom_call.1} parent=5 // pred_check
        _
      $region10: #{tpu_custom_call.1} parent=5 // pred_check_branch
        %393 = sbr.rel (%p390) target = $region12
      $region11: #{tpu_custom_call.1} parent=5 // pred_region
        %s394 = ssub.s32 %s24, 1
        // Predicated region
        $region13: #{tpu_custom_call.1} parent=11 // pred_check
          %p395 = pneg %p123
        $region14: #{tpu_custom_call.1} parent=11 // pred_check_branch
          %397 = sbr.rel (%p395) target = $region16
        $region15: #{tpu_custom_call.1} parent=11 // pred_region
          _
        $region16: #{tpu_custom_call.1} parent=11 // pred_fallthru
          _
        // Predicated region
        $region17: #{tpu_custom_call.1} parent=11 // pred_check
          %p398 = pneg %p144
        $region18: #{tpu_custom_call.1} parent=11 // pred_check_branch
          %400 = sbr.rel (%p398) target = $region20
        $region19: #{tpu_custom_call.1} parent=11 // pred_region
          _
        $region20: #{tpu_custom_call.1} parent=11 // pred_fallthru
          _
        // Predicated region
        $region21: #{tpu_custom_call.1} parent=11 // pred_check
          %p401 = pneg %p165
        $region22: #{tpu_custom_call.1} parent=11 // pred_check_branch
          %403 = sbr.rel (%p401) target = $region24
        $region23: #{tpu_custom_call.1} parent=11 // pred_region
          _
        $region24: #{tpu_custom_call.1} parent=11 // pred_fallthru
          _
        // Predicated region
        $region25: #{tpu_custom_call.1} parent=11 // pred_check
          %p404 = pneg %p186
        $region26: #{tpu_custom_call.1} parent=11 // pred_check_branch
          %406 = sbr.rel (%p404) target = $region28
        $region27: #{tpu_custom_call.1} parent=11 // pred_region
          _
        $region28: #{tpu_custom_call.1} parent=11 // pred_fallthru
          _
        // Predicated region
        $region29: #{tpu_custom_call.1} parent=11 // pred_check
          %p407 = pneg %p207
        $region30: #{tpu_custom_call.1} parent=11 // pred_check_branch
          %409 = sbr.rel (%p407) target = $region32
        $region31: #{tpu_custom_call.1} parent=11 // pred_region
          _
        $region32: #{tpu_custom_call.1} parent=11 // pred_fallthru
          _
        // Predicated region
        $region33: #{tpu_custom_call.1} parent=11 // pred_check
          %p410 = pneg %p228
        $region34: #{tpu_custom_call.1} parent=11 // pred_check_branch
          %412 = sbr.rel (%p410) target = $region36
        $region35: #{tpu_custom_call.1} parent=11 // pred_region
          _
        $region36: #{tpu_custom_call.1} parent=11 // pred_fallthru
          _
        // Predicated region
        $region37: #{tpu_custom_call.1} parent=11 // pred_check
          %p413 = pneg %p249
        $region38: #{tpu_custom_call.1} parent=11 // pred_check_branch
          %415 = sbr.rel (%p413) target = $region40
        $region39: #{tpu_custom_call.1} parent=11 // pred_region
          _
        $region40: #{tpu_custom_call.1} parent=11 // pred_fallthru
          _
        // Predicated region
        $region41: #{tpu_custom_call.1} parent=11 // pred_check
          %p416 = pneg %p270
        $region42: #{tpu_custom_call.1} parent=11 // pred_check_branch
          %418 = sbr.rel (%p416) target = $region44
        $region43: #{tpu_custom_call.1} parent=11 // pred_region
          _
        $region44: #{tpu_custom_call.1} parent=11 // pred_fallthru
          _
        // Predicated region
        $region45: #{tpu_custom_call.1} parent=11 // pred_check
          %p419 = pneg %p291
        $region46: #{tpu_custom_call.1} parent=11 // pred_check_branch
          %421 = sbr.rel (%p419) target = $region48
        $region47: #{tpu_custom_call.1} parent=11 // pred_region
          _
        $region48: #{tpu_custom_call.1} parent=11 // pred_fallthru
          _
        // Predicated region
        $region49: #{tpu_custom_call.1} parent=11 // pred_check
          %p422 = pneg %p312
        $region50: #{tpu_custom_call.1} parent=11 // pred_check_branch
          %424 = sbr.rel (%p422) target = $region52
        $region51: #{tpu_custom_call.1} parent=11 // pred_region
          _
        $region52: #{tpu_custom_call.1} parent=11 // pred_fallthru
          _
        // Predicated region
        $region53: #{tpu_custom_call.1} parent=11 // pred_check
          %p425 = pneg %p333
        $region54: #{tpu_custom_call.1} parent=11 // pred_check_branch
          %427 = sbr.rel (%p425) target = $region56
        $region55: #{tpu_custom_call.1} parent=11 // pred_region
          _
        $region56: #{tpu_custom_call.1} parent=11 // pred_fallthru
          _
        // Predicated region
        $region57: #{tpu_custom_call.1} parent=11 // pred_check
          %p428 = pneg %p354
        $region58: #{tpu_custom_call.1} parent=11 // pred_check_branch
          %430 = sbr.rel (%p428) target = $region60
        $region59: #{tpu_custom_call.1} parent=11 // pred_region
          _
        $region60: #{tpu_custom_call.1} parent=11 // pred_fallthru
          _
      $region12: #{tpu_custom_call.1} parent=5 // pred_fallthru
        _
      %p431 = scmp.lt.s32.totalorder %s24, 2
      // Predicated region
      $region61: #{tpu_custom_call.1} parent=5 // pred_check
        %p432 = pneg %p431
      $region62: #{tpu_custom_call.1} parent=5 // pred_check_branch
        %434 = sbr.rel (%p432) target = $region64
      $region63: #{tpu_custom_call.1} parent=5 // pred_region
        // Predicated region
        $region65: #{tpu_custom_call.1} parent=63 // pred_check
          %p435 = pneg %p44
        $region66: #{tpu_custom_call.1} parent=63 // pred_check_branch
          %437 = sbr.rel (%p435) target = $region68
        $region67: #{tpu_custom_call.1} parent=63 // pred_region
          %s438 = smul.u32 16, %s24
          %p439 = scmp.lt.s32.totalorder %s438, 31
          %s440 = scalar_select %p439, %s438, 31
          %s441 = smul.addr %s440, 8
          %s442 = scalar_lea.vmem %s0, %s441
          %s443 = smul.u32 16, %s24
        $region68: #{tpu_custom_call.1} parent=63 // pred_fallthru
          _
        // Predicated region
        $region69: #{tpu_custom_call.1} parent=63 // pred_check
          %p444 = pneg %p70
        $region70: #{tpu_custom_call.1} parent=63 // pred_check_branch
          %446 = sbr.rel (%p444) target = $region72
        $region71: #{tpu_custom_call.1} parent=63 // pred_region
          %p447 = scmp.lt.s32.totalorder %s24, 1
          %s448 = scalar_select %p447, %s24, 1
          %s449 = smul.addr %s448, 4
          %s450 = smul.addr %s449, 8
          %s451 = scalar_lea.vmem %s1, %s450
        $region72: #{tpu_custom_call.1} parent=63 // pred_fallthru
          _
        // Predicated region
        $region73: #{tpu_custom_call.1} parent=63 // pred_check
          %p452 = pneg %p96
        $region74: #{tpu_custom_call.1} parent=63 // pred_check_branch
          %454 = sbr.rel (%p452) target = $region76
        $region75: #{tpu_custom_call.1} parent=63 // pred_region
          %s455 = smul.u32 2, %s24
          %p456 = scmp.lt.s32.totalorder %s455, 3
          %s457 = scalar_select %p456, %s455, 3
          %s458 = smul.addr %s457, 8
          %s459 = scalar_lea.vmem %s2, %s458
          %s460 = smul.u32 2, %s24
        $region76: #{tpu_custom_call.1} parent=63 // pred_fallthru
          _
      $region64: #{tpu_custom_call.1} parent=5 // pred_fallthru
        _
      %p461 = scmp.le.s32.totalorder 1, %s24
      %p462 = scmp.lt.s32.totalorder %s24, 3
      %p463 = pnand %p461, %p462
      %p464 = pneg %p463
      // Predicated region
      $region77: #{tpu_custom_call.1} parent=5 // pred_check
        _
      $region78: #{tpu_custom_call.1} parent=5 // pred_check_branch
        %466 = sbr.rel (%p463) target = $region80
      $region79: #{tpu_custom_call.1} parent=5 // pred_region
        %s467 = ssub.s32 %s24, 1
        %s468 = smul.u32 16, %s29
        %p469 = scmp.lt.s32.totalorder %s468, 31
        %s470 = scalar_select %p469, %s468, 31
        %s471 = smul.addr %s470, 8
        %s472 = scalar_lea.vmem %s0, %s471
        %p473 = pneg %p50
        %p474 = pneg %p47
        %p475 = scmp.lt.s32.totalorder %s29, 1
        %s476 = scalar_select %p475, %s29, 1
        %s477 = smul.addr %s476, 4
        %s478 = smul.addr %s477, 8
        %s479 = scalar_lea.vmem %s1, %s478
        %p480 = pneg %p76
        %p481 = pneg %p73
        %s482 = smul.u32 2, %s29
        %p483 = scmp.lt.s32.totalorder %s482, 3
        %s484 = scalar_select %p483, %s482, 3
        %s485 = smul.addr %s484, 8
        %s486 = scalar_lea.vmem %s2, %s485
        %p487 = pneg %p102
        %p488 = pneg %p99
        %p489 = pneg %p123
        %p490 = pneg %p120
        %p491 = pneg %p144
        %p492 = pneg %p141
        %p493 = pneg %p165
        %p494 = pneg %p162
        %p495 = pneg %p186
        %p496 = pneg %p183
        %p497 = pneg %p207
        %p498 = pneg %p204
        %p499 = pneg %p228
        %p500 = pneg %p225
        %p501 = pneg %p249
        %p502 = pneg %p246
        %p503 = pneg %p270
        %p504 = pneg %p267
        %p505 = pneg %p291
        %p506 = pneg %p288
        %p507 = pneg %p312
        %p508 = pneg %p309
        %p509 = pneg %p333
        %p510 = pneg %p330
        %p511 = pneg %p354
        %p512 = pneg %p351
        %p513 = pneg %p380
        %p514 = pneg %p377
        %s515 = sand.u32 %s367, 1
        %s516 = scalar_lea.sflag [#allocation3], %s515
        %s517 = sand.u32 %s367, 1
        %s518 = smul.addr %s517, 16
        %s519 = scalar_lea.vmem [#allocation2], %s518
        %s520 = smul.u32 16, %s29
        %p521 = scmp.lt.s32.totalorder %s520, 31
        %s522 = scalar_select %p521, %s520, 31
        %s523 = smul.addr %s522, 8
        %s524 = scalar_lea.vmem %s0, %s523
        %s525 = smul.u32 16, %s29
        %p526 = scmp.lt.s32.totalorder %s29, 1
        %s527 = scalar_select %p526, %s29, 1
        %s528 = smul.addr %s527, 4
        %s529 = smul.addr %s528, 8
        %s530 = scalar_lea.vmem %s1, %s529
        %s531 = smul.u32 2, %s29
        %p532 = scmp.lt.s32.totalorder %s531, 3
        %s533 = scalar_select %p532, %s531, 3
        %s534 = smul.addr %s533, 8
        %s535 = scalar_lea.vmem %s2, %s534
        %s536 = smul.u32 2, %s29
        %s537 = smul.u32 2, %s29
        %v541 = vld [vmem:[%s524] sm:$0xff]
        %v542 = vld [vmem:[%s524 + $0x8] sm:$0xff]
        %v543 = vld [vmem:[%s524 + $0x10] sm:$0xff]
        %v544 = vld [vmem:[%s524 + $0x18] sm:$0xff]
        %v545 = vld [vmem:[%s524 + $0x20] sm:$0xff]
        %v546 = vld [vmem:[%s524 + $0x28] sm:$0xff]
        %v547 = vld [vmem:[%s524 + $0x30] sm:$0xff]
        %v548 = vld [vmem:[%s524 + $0x38] sm:$0xff]
        %v549 = vld [vmem:[%s524 + $0x40] sm:$0xff]
        %v550 = vld [vmem:[%s524 + $0x48] sm:$0xff]
        %v551 = vld [vmem:[%s524 + $0x50] sm:$0xff]
        %v552 = vld [vmem:[%s524 + $0x58] sm:$0xff]
        %v553 = vld [vmem:[%s524 + $0x60] sm:$0xff]
        %v554 = vld [vmem:[%s524 + $0x68] sm:$0xff]
        %v555 = vld [vmem:[%s524 + $0x70] sm:$0xff]
        %v556 = vld [vmem:[%s524 + $0x78] sm:$0xff]
        %v557 = vpack.c.bf16 %v542, %v541
        %v558 = vpack.c.bf16 %v544, %v543
        %v559 = vpack.c.bf16 %v546, %v545
        %v560 = vpack.c.bf16 %v548, %v547
        %v561 = vpack.c.bf16 %v550, %v549
        %v562 = vpack.c.bf16 %v552, %v551
        %v563 = vpack.c.bf16 %v554, %v553
        %v564 = vpack.c.bf16 %v556, %v555
        %v565 = vld [vmem:[%s530] sm:$0xff]
        %v566 = vld [vmem:[%s530 + $0x8] sm:$0xff]
        %v567 = vld [vmem:[%s530 + $0x10] sm:$0xff]
        %v568 = vld [vmem:[%s530 + $0x18] sm:$0xff]
        %vm569 = vnez %v565
        %vm570 = vnez %v566
        %vm571 = vnez %v567
        %vm572 = vnez %v568
        %v573 = vld [vmem:[%s3] sm:$0xf]
        %v576 = vunpack.c.l.s4 1983009808
        %v577 = vunpack.c.0.s8 %v576
        %v578 = vlaneseq
        %v579 = vshrl.u32 %v578, 7
        %v580 = vsub.s32 %v577, %v579
        %v581 = vrot.slane %v573, %v580
        %v582 = vcombine.high %v581, %v581
        %vm583 = vcmask 31744
        %v585 = vsel %vm583, %v557, 0
        %v588 = vsel %vm583, %v558, 0
        %v591 = vsel %vm583, %v559, 0
        %v594 = vsel %vm583, %v560, 0
        %v597 = vsel %vm583, %v561, 0
        %v600 = vsel %vm583, %v562, 0
        %v603 = vsel %vm583, %v563, 0
        %v606 = vsel %vm583, %v564, 0
        %vm608 = vcmask 1041408
        %v610 = vsel %vm608, %v581, 0
        %v613 = vsel %vm608, %v582, 0
        %615 = vmatprep.subr.bf16.mxu0 %v613
        %616 = vmatpush1.bf16.msra.mxu0 %v610
        %617 = vmatprep.subr.bf16.mxu0 0
        %618 = vmatpush1.bf16.msra.mxu0 0
        %619 = vmatprep.subr.bf16.mxu0 0
        %620 = vmatpush1.bf16.msra.mxu0 0
        %621 = vmatprep.subr.bf16.mxu0 0
        %622 = vmatpush1.bf16.msra.mxu0 0
        %623 = vmatprep.subr.bf16.mxu0 0
        %624 = vmatpush1.bf16.msra.mxu0 0
        %625 = vmatprep.subr.bf16.mxu0 0
        %626 = vmatpush1.bf16.msra.mxu0 0
        %627 = vmatprep.subr.bf16.mxu0 0
        %628 = vmatpush1.bf16.msra.mxu0 0
        %629 = vmatprep.subr.bf16.mxu0 0
        %630 = vmatpush1.bf16.msra.mxu0 0
        %631 = vmatprep.subr.bf16.mxu0 0
        %632 = vmatpush1.bf16.msra.mxu0 0
        %633 = vmatprep.subr.bf16.mxu0 0
        %634 = vmatpush1.bf16.msra.mxu0 0
        %635 = vmatprep.subr.bf16.mxu0 0
        %636 = vmatpush1.bf16.msra.mxu0 0
        %637 = vmatprep.subr.bf16.mxu0 0
        %638 = vmatpush1.bf16.msra.mxu0 0
        %639 = vmatprep.subr.bf16.mxu0 0
        %640 = vmatpush1.bf16.msra.mxu0 0
        %641 = vmatprep.subr.bf16.mxu0 0
        %642 = vmatpush1.bf16.msra.mxu0 0
        %643 = vmatprep.subr.bf16.mxu0 0
        %644 = vmatpush1.bf16.msra.mxu0 0
        %645 = vmatprep.subr.bf16.mxu0 0
        %646 = vmatpush1.bf16.msra.mxu0 0
        %647 = vmatprep.mubr.bf16.mxu0 0
        %648 = vmatmul.mubr.bf16.gmra.mrb[0].mxu0 %v585
        %v649 = vpop.f32.mrb[0].mxu0
        %v650 = vadd.f32 0.0, %v649
        %v651 = vpop.f32.mrb[0].mxu0
        %v652 = vadd.f32 0.0, %v651
        %v653 = vpop.f32.mrb[0].mxu0
        %v654 = vadd.f32 0.0, %v653
        %v655 = vpop.f32.mrb[0].mxu0
        %v656 = vadd.f32 0.0, %v655
        %657 = vmatprep.mubr.bf16.mxu0 0
        %658 = vmatmul.mubr.bf16.gmra.mrb[0].mxu0 %v588
        %v659 = vpop.f32.mrb[0].mxu0
        %v660 = vadd.f32 0.0, %v659
        %v661 = vpop.f32.mrb[0].mxu0
        %v662 = vadd.f32 0.0, %v661
        %v663 = vpop.f32.mrb[0].mxu0
        %v664 = vadd.f32 0.0, %v663
        %v665 = vpop.f32.mrb[0].mxu0
        %v666 = vadd.f32 0.0, %v665
        %667 = vmatprep.mubr.bf16.mxu0 0
        %668 = vmatmul.mubr.bf16.gmra.mrb[0].mxu0 %v591
        %v669 = vpop.f32.mrb[0].mxu0
        %v670 = vadd.f32 0.0, %v669
        %v671 = vpop.f32.mrb[0].mxu0
        %v672 = vadd.f32 0.0, %v671
        %v673 = vpop.f32.mrb[0].mxu0
        %v674 = vadd.f32 0.0, %v673
        %v675 = vpop.f32.mrb[0].mxu0
        %v676 = vadd.f32 0.0, %v675
        %677 = vmatprep.mubr.bf16.mxu0 0
        %678 = vmatmul.mubr.bf16.gmra.mrb[0].mxu0 %v594
        %v679 = vpop.f32.mrb[0].mxu0
        %v680 = vadd.f32 0.0, %v679
        %v681 = vpop.f32.mrb[0].mxu0
        %v682 = vadd.f32 0.0, %v681
        %v683 = vpop.f32.mrb[0].mxu0
        %v684 = vadd.f32 0.0, %v683
        %v685 = vpop.f32.mrb[0].mxu0
        %v686 = vadd.f32 0.0, %v685
        %687 = vmatprep.mubr.bf16.mxu0 0
        %688 = vmatmul.mubr.bf16.gmra.mrb[0].mxu0 %v597
        %v689 = vpop.f32.mrb[0].mxu0
        %v690 = vadd.f32 0.0, %v689
        %v691 = vpop.f32.mrb[0].mxu0
        %v692 = vadd.f32 0.0, %v691
        %v693 = vpop.f32.mrb[0].mxu0
        %v694 = vadd.f32 0.0, %v693
        %v695 = vpop.f32.mrb[0].mxu0
        %v696 = vadd.f32 0.0, %v695
        %697 = vmatprep.mubr.bf16.mxu0 0
        %698 = vmatmul.mubr.bf16.gmra.mrb[0].mxu0 %v600
        %v699 = vpop.f32.mrb[0].mxu0
        %v700 = vadd.f32 0.0, %v699
        %v701 = vpop.f32.mrb[0].mxu0
        %v702 = vadd.f32 0.0, %v701
        %v703 = vpop.f32.mrb[0].mxu0
        %v704 = vadd.f32 0.0, %v703
        %v705 = vpop.f32.mrb[0].mxu0
        %v706 = vadd.f32 0.0, %v705
        %707 = vmatprep.mubr.bf16.mxu0 0
        %708 = vmatmul.mubr.bf16.gmra.mrb[0].mxu0 %v603
        %v709 = vpop.f32.mrb[0].mxu0
        %v710 = vadd.f32 0.0, %v709
        %v711 = vpop.f32.mrb[0].mxu0
        %v712 = vadd.f32 0.0, %v711
        %v713 = vpop.f32.mrb[0].mxu0
        %v714 = vadd.f32 0.0, %v713
        %v715 = vpop.f32.mrb[0].mxu0
        %v716 = vadd.f32 0.0, %v715
        %717 = vmatprep.mubr.bf16.mxu0 0
        %718 = vmatmul.mubr.bf16.gmra.mrb[0].mxu0 %v606
        %v719 = vpop.f32.mrb[0].mxu0
        %v720 = vadd.f32 0.0, %v719
        %v721 = vpop.f32.mrb[0].mxu0
        %v722 = vadd.f32 0.0, %v721
        %v723 = vpop.f32.mrb[0].mxu0
        %v724 = vadd.f32 0.0, %v723
        %v725 = vpop.f32.mrb[0].mxu0
        %v726 = vadd.f32 0.0, %v725
        %727 = vdwg.mxu0
        %v728 = vpack.c.bf16 %v654, %v650
        %v729 = vpack.c.bf16 %v656, %v652
        %v730 = vpack.c.bf16 %v664, %v660
        %v731 = vpack.c.bf16 %v666, %v662
        %v732 = vpack.c.bf16 %v674, %v670
        %v733 = vpack.c.bf16 %v676, %v672
        %v734 = vpack.c.bf16 %v684, %v680
        %v735 = vpack.c.bf16 %v686, %v682
        %v736 = vpack.c.bf16 %v694, %v690
        %v737 = vpack.c.bf16 %v696, %v692
        %v738 = vpack.c.bf16 %v704, %v700
        %v739 = vpack.c.bf16 %v706, %v702
        %v740 = vpack.c.bf16 %v714, %v710
        %v741 = vpack.c.bf16 %v716, %v712
        %v742 = vpack.c.bf16 %v724, %v720
        %v743 = vpack.c.bf16 %v726, %v722
        %v744 = vld [vmem:[%s4] sm:$0x3]
        %v747 = vunpack.c.l.s4 1966171168
        %v748 = vunpack.c.0.s8 %v747
        %v749 = vlaneseq
        %v750 = vshrl.u32 %v749, 7
        %v751 = vsub.s32 %v748, %v750
        %v752 = vrot.slane %v744, %v751
        %v753 = vcombine.high %v752, %v752
        %v755 = vunpack.c.l.s4 1966171168
        %v756 = vunpack.c.0.s8 %v755
        %v757 = vlaneseq
        %v758 = vshrl.u32 %v757, 7
        %v759 = vsub.s32 %v756, %v758
        %v760 = vrot.slane %v752, %v759
        %v762 = vunpack.c.l.s4 1966171168
        %v763 = vunpack.c.0.s8 %v762
        %v764 = vlaneseq
        %v765 = vshrl.u32 %v764, 7
        %v766 = vsub.s32 %v763, %v765
        %v767 = vrot.slane %v753, %v766
        %770 = vmatprep.subr.bf16.mxu0 %v729
        %771 = vmatpush1.bf16.xpose.msra.mxu0 %v728
        %772 = vmatprep.subr.bf16.mxu0 %v731
        %773 = vmatpush1.bf16.xpose.msra.mxu0 %v730
        %774 = vmatprep.subr.bf16.mxu0 %v733
        %775 = vmatpush1.bf16.xpose.msra.mxu0 %v732
        %776 = vmatprep.subr.bf16.mxu0 %v735
        %777 = vmatpush1.bf16.xpose.msra.mxu0 %v734
        %778 = vmatprep.subr.bf16.mxu0 %v737
        %779 = vmatpush1.bf16.xpose.msra.mxu0 %v736
        %780 = vmatprep.subr.bf16.mxu0 %v739
        %781 = vmatpush1.bf16.xpose.msra.mxu0 %v738
        %782 = vmatprep.subr.bf16.mxu0 %v741
        %783 = vmatpush1.bf16.xpose.msra.mxu0 %v740
        %784 = vmatprep.subr.bf16.mxu0 %v743
        %785 = vmatpush1.bf16.xpose.msra.mxu0 %v742
        %786 = vmatprep.subr.bf16.mxu0 0
        %787 = vmatpush1.bf16.xpose.msra.mxu0 0
        %788 = vmatprep.subr.bf16.mxu0 0
        %789 = vmatpush1.bf16.xpose.msra.mxu0 0
        %790 = vmatprep.subr.bf16.mxu0 0
        %791 = vmatpush1.bf16.xpose.msra.mxu0 0
        %792 = vmatprep.subr.bf16.mxu0 0
        %793 = vmatpush1.bf16.xpose.msra.mxu0 0
        %794 = vmatprep.subr.bf16.mxu0 0
        %795 = vmatpush1.bf16.xpose.msra.mxu0 0
        %796 = vmatprep.subr.bf16.mxu0 0
        %797 = vmatpush1.bf16.xpose.msra.mxu0 0
        %798 = vmatprep.subr.bf16.mxu0 0
        %799 = vmatpush1.bf16.xpose.msra.mxu0 0
        %800 = vmatprep.subr.bf16.mxu0 0
        %801 = vmatpush1.bf16.xpose.msra.mxu0 0
        %802 = vmatprep.mubr.bf16.mxu0 %v767
        %803 = vmatmul.mubr.bf16.gmra.mrb[0].mxu0 %v760
        %v804 = vpop.f32.mrb[0].mxu0
        %v805 = vadd.f32 0.0, %v804
        %v806 = vpop.f32.mrb[0].mxu0
        %v807 = vpop.f32.mrb[0].mxu0
        %v808 = vpop.f32.mrb[0].mxu0
        %809 = vdwg.mxu0
        %v810 = vld [vmem:[%s5] sm:$0xf]
        %v811 = vld [vmem:[%s5 + $0x4] sm:$0xf]
        %v812 = vld [vmem:[%s5 + $0x8] sm:$0xf]
        %v813 = vld [vmem:[%s5 + $0xc] sm:$0xf]
        %v814 = vld [vmem:[%s5 + $0x10] sm:$0xf]
        %v815 = vld [vmem:[%s5 + $0x14] sm:$0xf]
        %v816 = vld [vmem:[%s5 + $0x18] sm:$0xf]
        %v817 = vld [vmem:[%s5 + $0x1c] sm:$0xf]
        %v818 = vld [vmem:[%s5 + $0x20] sm:$0xf]
        %v819 = vld [vmem:[%s5 + $0x24] sm:$0xf]
        %v820 = vld [vmem:[%s5 + $0x28] sm:$0xf]
        %v821 = vld [vmem:[%s5 + $0x2c] sm:$0xf]
        %v822 = vld [vmem:[%s5 + $0x30] sm:$0xf]
        %v823 = vld [vmem:[%s5 + $0x34] sm:$0xf]
        %v824 = vld [vmem:[%s5 + $0x38] sm:$0xf]
        %v825 = vld [vmem:[%s5 + $0x3c] sm:$0xf]
        %v826 = vld [vmem:[%s5 + $0x40] sm:$0xf]
        %v827 = vld [vmem:[%s5 + $0x44] sm:$0xf]
        %v828 = vld [vmem:[%s5 + $0x48] sm:$0xf]
        %v829 = vld [vmem:[%s5 + $0x4c] sm:$0xf]
        %v830 = vld [vmem:[%s5 + $0x50] sm:$0xf]
        %v831 = vld [vmem:[%s5 + $0x54] sm:$0xf]
        %v832 = vld [vmem:[%s5 + $0x58] sm:$0xf]
        %v833 = vld [vmem:[%s5 + $0x5c] sm:$0xf]
        %v834 = vld [vmem:[%s5 + $0x60] sm:$0xf]
        %v835 = vld [vmem:[%s5 + $0x64] sm:$0xf]
        %v836 = vld [vmem:[%s5 + $0x68] sm:$0xf]
        %v837 = vld [vmem:[%s5 + $0x6c] sm:$0xf]
        %v838 = vld [vmem:[%s5 + $0x70] sm:$0xf]
        %v839 = vld [vmem:[%s5 + $0x74] sm:$0xf]
        %v840 = vld [vmem:[%s5 + $0x78] sm:$0xf]
        %v841 = vld [vmem:[%s5 + $0x7c] sm:$0xf]
        %v874 = vunpack.c.l.b16 %v810
        %v875 = vunpack.c.l.b16 %v811
        %v876 = vunpack.c.l.b16 %v812
        %v877 = vunpack.c.l.b16 %v813
        %v878 = vunpack.c.l.b16 %v814
        %v879 = vunpack.c.l.b16 %v815
        %v880 = vunpack.c.l.b16 %v816
        %v881 = vunpack.c.l.b16 %v817
        %v882 = vunpack.c.l.b16 %v818
        %v883 = vunpack.c.l.b16 %v819
        %v884 = vunpack.c.l.b16 %v820
        %v885 = vunpack.c.l.b16 %v821
        %v886 = vunpack.c.l.b16 %v822
        %v887 = vunpack.c.l.b16 %v823
        %v888 = vunpack.c.l.b16 %v824
        %v889 = vunpack.c.l.b16 %v825
        %v890 = vunpack.c.l.b16 %v826
        %v891 = vunpack.c.l.b16 %v827
        %v892 = vunpack.c.l.b16 %v828
        %v893 = vunpack.c.l.b16 %v829
        %v894 = vunpack.c.l.b16 %v830
        %v895 = vunpack.c.l.b16 %v831
        %v896 = vunpack.c.l.b16 %v832
        %v897 = vunpack.c.l.b16 %v833
        %v898 = vunpack.c.l.b16 %v834
        %v899 = vunpack.c.l.b16 %v835
        %v900 = vunpack.c.l.b16 %v836
        %v901 = vunpack.c.l.b16 %v837
        %v902 = vunpack.c.l.b16 %v838
        %v903 = vunpack.c.l.b16 %v839
        %v904 = vunpack.c.l.b16 %v840
        %v905 = vunpack.c.l.b16 %v841
        %v906 = vpack.c.b16 %v875, %v874
        %v907 = vpack.c.b16 %v877, %v876
        %v908 = vpack.c.b16 %v879, %v878
        %v909 = vpack.c.b16 %v881, %v880
        %v910 = vpack.c.b16 %v883, %v882
        %v911 = vpack.c.b16 %v885, %v884
        %v912 = vpack.c.b16 %v887, %v886
        %v913 = vpack.c.b16 %v889, %v888
        %v914 = vpack.c.b16 %v891, %v890
        %v915 = vpack.c.b16 %v893, %v892
        %v916 = vpack.c.b16 %v895, %v894
        %v917 = vpack.c.b16 %v897, %v896
        %v918 = vpack.c.b16 %v899, %v898
        %v919 = vpack.c.b16 %v901, %v900
        %v920 = vpack.c.b16 %v903, %v902
        %v921 = vpack.c.b16 %v905, %v904
        %938 = vmatprep.subr.bf16.mxu0 0
        %939 = vmatpush1.bf16.msra.mxu0 %v906
        %940 = vmatprep.subr.bf16.mxu0 0
        %941 = vmatpush1.bf16.msra.mxu0 %v907
        %942 = vmatprep.subr.bf16.mxu0 0
        %943 = vmatpush1.bf16.msra.mxu0 %v908
        %944 = vmatprep.subr.bf16.mxu0 0
        %945 = vmatpush1.bf16.msra.mxu0 %v909
        %946 = vmatprep.subr.bf16.mxu0 0
        %947 = vmatpush1.bf16.msra.mxu0 %v910
        %948 = vmatprep.subr.bf16.mxu0 0
        %949 = vmatpush1.bf16.msra.mxu0 %v911
        %950 = vmatprep.subr.bf16.mxu0 0
        %951 = vmatpush1.bf16.msra.mxu0 %v912
        %952 = vmatprep.subr.bf16.mxu0 0
        %953 = vmatpush1.bf16.msra.mxu0 %v913
        %954 = vmatprep.subr.bf16.mxu0 0
        %955 = vmatpush1.bf16.msra.mxu0 %v914
        %956 = vmatprep.subr.bf16.mxu0 0
        %957 = vmatpush1.bf16.msra.mxu0 %v915
        %958 = vmatprep.subr.bf16.mxu0 0
        %959 = vmatpush1.bf16.msra.mxu0 %v916
        %960 = vmatprep.subr.bf16.mxu0 0
        %961 = vmatpush1.bf16.msra.mxu0 %v917
        %962 = vmatprep.subr.bf16.mxu0 0
        %963 = vmatpush1.bf16.msra.mxu0 %v918
        %964 = vmatprep.subr.bf16.mxu0 0
        %965 = vmatpush1.bf16.msra.mxu0 %v919
        %966 = vmatprep.subr.bf16.mxu0 0
        %967 = vmatpush1.bf16.msra.mxu0 %v920
        %968 = vmatprep.subr.bf16.mxu0 0
        %969 = vmatpush1.bf16.msra.mxu0 %v921
        %970 = vmatprep.mubr.bf16.mxu0 %v729
        %971 = vmatmul.mubr.bf16.gmra.mrb[0].mxu0 %v728
        %v972 = vpop.f32.mrb[0].mxu0
        %v973 = vadd.f32 0.0, %v972
        %v974 = vpop.f32.mrb[0].mxu0
        %v975 = vpop.f32.mrb[0].mxu0
        %v976 = vadd.f32 0.0, %v975
        %v977 = vpop.f32.mrb[0].mxu0
        %978 = vmatprep.mubr.bf16.mxu0 %v731
        %979 = vmatmul.mubr.bf16.gmra.mrb[0].mxu0 %v730
        %v980 = vpop.f32.mrb[0].mxu0
        %v981 = vadd.f32 0.0, %v980
        %v982 = vpop.f32.mrb[0].mxu0
        %v983 = vpop.f32.mrb[0].mxu0
        %v984 = vadd.f32 0.0, %v983
        %v985 = vpop.f32.mrb[0].mxu0
        %986 = vmatprep.mubr.bf16.mxu0 %v733
        %987 = vmatmul.mubr.bf16.gmra.mrb[0].mxu0 %v732
        %v988 = vpop.f32.mrb[0].mxu0
        %v989 = vadd.f32 0.0, %v988
        %v990 = vpop.f32.mrb[0].mxu0
        %v991 = vpop.f32.mrb[0].mxu0
        %v992 = vadd.f32 0.0, %v991
        %v993 = vpop.f32.mrb[0].mxu0
        %994 = vmatprep.mubr.bf16.mxu0 %v735
        %995 = vmatmul.mubr.bf16.gmra.mrb[0].mxu0 %v734
        %v996 = vpop.f32.mrb[0].mxu0
        %v997 = vadd.f32 0.0, %v996
        %v998 = vpop.f32.mrb[0].mxu0
        %v999 = vpop.f32.mrb[0].mxu0
        %v1000 = vadd.f32 0.0, %v999
        %v1001 = vpop.f32.mrb[0].mxu0
        %1002 = vmatprep.mubr.bf16.mxu0 %v737
        %1003 = vmatmul.mubr.bf16.gmra.mrb[0].mxu0 %v736
        %v1004 = vpop.f32.mrb[0].mxu0
        %v1005 = vadd.f32 0.0, %v1004
        %v1006 = vpop.f32.mrb[0].mxu0
        %v1007 = vpop.f32.mrb[0].mxu0
        %v1008 = vadd.f32 0.0, %v1007
        %v1009 = vpop.f32.mrb[0].mxu0
        %1010 = vmatprep.mubr.bf16.mxu0 %v739
        %1011 = vmatmul.mubr.bf16.gmra.mrb[0].mxu0 %v738
        %v1012 = vpop.f32.mrb[0].mxu0
        %v1013 = vadd.f32 0.0, %v1012
        %v1014 = vpop.f32.mrb[0].mxu0
        %v1015 = vpop.f32.mrb[0].mxu0
        %v1016 = vadd.f32 0.0, %v1015
        %v1017 = vpop.f32.mrb[0].mxu0
        %1018 = vmatprep.mubr.bf16.mxu0 %v741
        %1019 = vmatmul.mubr.bf16.gmra.mrb[0].mxu0 %v740
        %v1020 = vpop.f32.mrb[0].mxu0
        %v1021 = vadd.f32 0.0, %v1020
        %v1022 = vpop.f32.mrb[0].mxu0
        %v1023 = vpop.f32.mrb[0].mxu0
        %v1024 = vadd.f32 0.0, %v1023
        %v1025 = vpop.f32.mrb[0].mxu0
        %1026 = vmatprep.mubr.bf16.mxu0 %v743
        %1027 = vmatmul.mubr.bf16.gmra.mrb[0].mxu0 %v742
        %v1028 = vpop.f32.mrb[0].mxu0
        %v1029 = vadd.f32 0.0, %v1028
        %v1030 = vpop.f32.mrb[0].mxu0
        %v1031 = vpop.f32.mrb[0].mxu0
        %v1032 = vadd.f32 0.0, %v1031
        %v1033 = vpop.f32.mrb[0].mxu0
        %1034 = vdwg.mxu0
        %1036 = vset.pattern.permute.xlu0 0
        %1037 = vperm.xlu0 %1036, %v973
        %v1038 = vpop.permute.xlu0 %1037
        %1041 = vset.pattern.permute.xlu0 0
        %1042 = vperm.xlu0 %1041, %v976
        %v1043 = vpop.permute.xlu0 %1042
        %1046 = vset.pattern.permute.xlu0 0
        %1047 = vperm.xlu0 %1046, %v981
        %v1048 = vpop.permute.xlu0 %1047
        %1051 = vset.pattern.permute.xlu0 0
        %1052 = vperm.xlu0 %1051, %v984
        %v1053 = vpop.permute.xlu0 %1052
        %1056 = vset.pattern.permute.xlu0 0
        %1057 = vperm.xlu0 %1056, %v989
        %v1058 = vpop.permute.xlu0 %1057
        %1061 = vset.pattern.permute.xlu0 0
        %1062 = vperm.xlu0 %1061, %v992
        %v1063 = vpop.permute.xlu0 %1062
        %1066 = vset.pattern.permute.xlu0 0
        %1067 = vperm.xlu0 %1066, %v997
        %v1068 = vpop.permute.xlu0 %1067
        %1071 = vset.pattern.permute.xlu0 0
        %1072 = vperm.xlu0 %1071, %v1000
        %v1073 = vpop.permute.xlu0 %1072
        %1076 = vset.pattern.permute.xlu0 0
        %1077 = vperm.xlu0 %1076, %v1005
        %v1078 = vpop.permute.xlu0 %1077
        %1081 = vset.pattern.permute.xlu0 0
        %1082 = vperm.xlu0 %1081, %v1008
        %v1083 = vpop.permute.xlu0 %1082
        %1086 = vset.pattern.permute.xlu0 0
        %1087 = vperm.xlu0 %1086, %v1013
        %v1088 = vpop.permute.xlu0 %1087
        %1091 = vset.pattern.permute.xlu0 0
        %1092 = vperm.xlu0 %1091, %v1016
        %v1093 = vpop.permute.xlu0 %1092
        %1096 = vset.pattern.permute.xlu0 0
        %1097 = vperm.xlu0 %1096, %v1021
        %v1098 = vpop.permute.xlu0 %1097
        %1101 = vset.pattern.permute.xlu0 0
        %1102 = vperm.xlu0 %1101, %v1024
        %v1103 = vpop.permute.xlu0 %1102
        %1106 = vset.pattern.permute.xlu0 0
        %1107 = vperm.xlu0 %1106, %v1029
        %v1108 = vpop.permute.xlu0 %1107
        %1111 = vset.pattern.permute.xlu0 0
        %1112 = vperm.xlu0 %1111, %v1032
        %v1113 = vpop.permute.xlu0 %1112
        %v1115 = vlaneseq
        %v1116 = vshrl.u32 %v1115, 7
        %v1117 = vsub.s32 0, %v1116
        %v1118 = vrot.slane %v805, %v1117
        %v1119 = vadd.f32 %v1038, %v1118
        %v1120 = vadd.f32 %v1043, %v1118
        %v1121 = vadd.f32 %v1048, %v1118
        %v1122 = vadd.f32 %v1053, %v1118
        %v1123 = vadd.f32 %v1058, %v1118
        %v1124 = vadd.f32 %v1063, %v1118
        %v1125 = vadd.f32 %v1068, %v1118
        %v1126 = vadd.f32 %v1073, %v1118
        %v1127 = vadd.f32 %v1078, %v1118
        %v1128 = vadd.f32 %v1083, %v1118
        %v1129 = vadd.f32 %v1088, %v1118
        %v1130 = vadd.f32 %v1093, %v1118
        %v1131 = vadd.f32 %v1098, %v1118
        %v1132 = vadd.f32 %v1103, %v1118
        %v1133 = vadd.f32 %v1108, %v1118
        %v1134 = vadd.f32 %v1113, %v1118
        %1135 = vset.pattern.permute.xlu0 1
        %1136 = vperm.xlu0 %1135, %v973
        %v1137 = vpop.permute.xlu0 %1136
        %1139 = vset.pattern.permute.xlu0 1
        %1140 = vperm.xlu0 %1139, %v976
        %v1141 = vpop.permute.xlu0 %1140
        %1143 = vset.pattern.permute.xlu0 1
        %1144 = vperm.xlu0 %1143, %v981
        %v1145 = vpop.permute.xlu0 %1144
        %1147 = vset.pattern.permute.xlu0 1
        %1148 = vperm.xlu0 %1147, %v984
        %v1149 = vpop.permute.xlu0 %1148
        %1151 = vset.pattern.permute.xlu0 1
        %1152 = vperm.xlu0 %1151, %v989
        %v1153 = vpop.permute.xlu0 %1152
        %1155 = vset.pattern.permute.xlu0 1
        %1156 = vperm.xlu0 %1155, %v992
        %v1157 = vpop.permute.xlu0 %1156
        %1159 = vset.pattern.permute.xlu0 1
        %1160 = vperm.xlu0 %1159, %v997
        %v1161 = vpop.permute.xlu0 %1160
        %1163 = vset.pattern.permute.xlu0 1
        %1164 = vperm.xlu0 %1163, %v1000
        %v1165 = vpop.permute.xlu0 %1164
        %1167 = vset.pattern.permute.xlu0 1
        %1168 = vperm.xlu0 %1167, %v1005
        %v1169 = vpop.permute.xlu0 %1168
        %1171 = vset.pattern.permute.xlu0 1
        %1172 = vperm.xlu0 %1171, %v1008
        %v1173 = vpop.permute.xlu0 %1172
        %1175 = vset.pattern.permute.xlu0 1
        %1176 = vperm.xlu0 %1175, %v1013
        %v1177 = vpop.permute.xlu0 %1176
        %1179 = vset.pattern.permute.xlu0 1
        %1180 = vperm.xlu0 %1179, %v1016
        %v1181 = vpop.permute.xlu0 %1180
        %1183 = vset.pattern.permute.xlu0 1
        %1184 = vperm.xlu0 %1183, %v1021
        %v1185 = vpop.permute.xlu0 %1184
        %1187 = vset.pattern.permute.xlu0 1
        %1188 = vperm.xlu0 %1187, %v1024
        %v1189 = vpop.permute.xlu0 %1188
        %1191 = vset.pattern.permute.xlu0 1
        %1192 = vperm.xlu0 %1191, %v1029
        %v1193 = vpop.permute.xlu0 %1192
        %1195 = vset.pattern.permute.xlu0 1
        %1196 = vperm.xlu0 %1195, %v1032
        %v1197 = vpop.permute.xlu0 %1196
        %v1199 = vlaneseq
        %v1200 = vshrl.u32 %v1199, 7
        %v1201 = vsub.s32 1, %v1200
        %v1202 = vrot.slane %v805, %v1201
        %v1203 = vadd.f32 %v1137, %v1202
        %v1204 = vadd.f32 %v1141, %v1202
        %v1205 = vadd.f32 %v1145, %v1202
        %v1206 = vadd.f32 %v1149, %v1202
        %v1207 = vadd.f32 %v1153, %v1202
        %v1208 = vadd.f32 %v1157, %v1202
        %v1209 = vadd.f32 %v1161, %v1202
        %v1210 = vadd.f32 %v1165, %v1202
        %v1211 = vadd.f32 %v1169, %v1202
        %v1212 = vadd.f32 %v1173, %v1202
        %v1213 = vadd.f32 %v1177, %v1202
        %v1214 = vadd.f32 %v1181, %v1202
        %v1215 = vadd.f32 %v1185, %v1202
        %v1216 = vadd.f32 %v1189, %v1202
        %v1217 = vadd.f32 %v1193, %v1202
        %v1218 = vadd.f32 %v1197, %v1202
        %vm1219 = vcmp.ge.f32.partialorder %v1119, 0.0
        %vm1220 = vcmp.ge.f32.partialorder %v1120, 0.0
        %vm1221 = vcmp.ge.f32.partialorder %v1121, 0.0
        %vm1222 = vcmp.ge.f32.partialorder %v1122, 0.0
        %vm1223 = vcmp.ge.f32.partialorder %v1123, 0.0
        %vm1224 = vcmp.ge.f32.partialorder %v1124, 0.0
        %vm1225 = vcmp.ge.f32.partialorder %v1125, 0.0
        %vm1226 = vcmp.ge.f32.partialorder %v1126, 0.0
        %vm1227 = vcmp.ge.f32.partialorder %v1127, 0.0
        %vm1228 = vcmp.ge.f32.partialorder %v1128, 0.0
        %vm1229 = vcmp.ge.f32.partialorder %v1129, 0.0
        %vm1230 = vcmp.ge.f32.partialorder %v1130, 0.0
        %vm1231 = vcmp.ge.f32.partialorder %v1131, 0.0
        %vm1232 = vcmp.ge.f32.partialorder %v1132, 0.0
        %vm1233 = vcmp.ge.f32.partialorder %v1133, 0.0
        %vm1234 = vcmp.ge.f32.partialorder %v1134, 0.0
        %vm1235 = vcmp.ge.f32.partialorder %v1203, 0.0
        %vm1236 = vcmp.ge.f32.partialorder %v1204, 0.0
        %vm1237 = vcmp.ge.f32.partialorder %v1205, 0.0
        %vm1238 = vcmp.ge.f32.partialorder %v1206, 0.0
        %vm1239 = vcmp.ge.f32.partialorder %v1207, 0.0
        %vm1240 = vcmp.ge.f32.partialorder %v1208, 0.0
        %vm1241 = vcmp.ge.f32.partialorder %v1209, 0.0
        %vm1242 = vcmp.ge.f32.partialorder %v1210, 0.0
        %vm1243 = vcmp.ge.f32.partialorder %v1211, 0.0
        %vm1244 = vcmp.ge.f32.partialorder %v1212, 0.0
        %vm1245 = vcmp.ge.f32.partialorder %v1213, 0.0
        %vm1246 = vcmp.ge.f32.partialorder %v1214, 0.0
        %vm1247 = vcmp.ge.f32.partialorder %v1215, 0.0
        %vm1248 = vcmp.ge.f32.partialorder %v1216, 0.0
        %vm1249 = vcmp.ge.f32.partialorder %v1217, 0.0
        %vm1250 = vcmp.ge.f32.partialorder %v1218, 0.0
        %v1251 = vmul.f32 %v1119, 0.01
        %v1252 = vmul.f32 %v1120, 0.01
        %v1253 = vmul.f32 %v1121, 0.01
        %v1254 = vmul.f32 %v1122, 0.01
        %v1255 = vmul.f32 %v1123, 0.01
        %v1256 = vmul.f32 %v1124, 0.01
        %v1257 = vmul.f32 %v1125, 0.01
        %v1258 = vmul.f32 %v1126, 0.01
        %v1259 = vmul.f32 %v1127, 0.01
        %v1260 = vmul.f32 %v1128, 0.01
        %v1261 = vmul.f32 %v1129, 0.01
        %v1262 = vmul.f32 %v1130, 0.01
        %v1263 = vmul.f32 %v1131, 0.01
        %v1264 = vmul.f32 %v1132, 0.01
        %v1265 = vmul.f32 %v1133, 0.01
        %v1266 = vmul.f32 %v1134, 0.01
        %v1267 = vmul.f32 %v1203, 0.01
        %v1268 = vmul.f32 %v1204, 0.01
        %v1269 = vmul.f32 %v1205, 0.01
        %v1270 = vmul.f32 %v1206, 0.01
        %v1271 = vmul.f32 %v1207, 0.01
        %v1272 = vmul.f32 %v1208, 0.01
        %v1273 = vmul.f32 %v1209, 0.01
        %v1274 = vmul.f32 %v1210, 0.01
        %v1275 = vmul.f32 %v1211, 0.01
        %v1276 = vmul.f32 %v1212, 0.01
        %v1277 = vmul.f32 %v1213, 0.01
        %v1278 = vmul.f32 %v1214, 0.01
        %v1279 = vmul.f32 %v1215, 0.01
        %v1280 = vmul.f32 %v1216, 0.01
        %v1281 = vmul.f32 %v1217, 0.01
        %v1282 = vmul.f32 %v1218, 0.01
        %v1283 = vsel %vm1219, %v1119, %v1251
        %v1284 = vsel %vm1220, %v1120, %v1252
        %v1285 = vsel %vm1221, %v1121, %v1253
        %v1286 = vsel %vm1222, %v1122, %v1254
        %v1287 = vsel %vm1223, %v1123, %v1255
        %v1288 = vsel %vm1224, %v1124, %v1256
        %v1289 = vsel %vm1225, %v1125, %v1257
        %v1290 = vsel %vm1226, %v1126, %v1258
        %v1291 = vsel %vm1227, %v1127, %v1259
        %v1292 = vsel %vm1228, %v1128, %v1260
        %v1293 = vsel %vm1229, %v1129, %v1261
        %v1294 = vsel %vm1230, %v1130, %v1262
        %v1295 = vsel %vm1231, %v1131, %v1263
        %v1296 = vsel %vm1232, %v1132, %v1264
        %v1297 = vsel %vm1233, %v1133, %v1265
        %v1298 = vsel %vm1234, %v1134, %v1266
        %v1299 = vsel %vm1235, %v1203, %v1267
        %v1300 = vsel %vm1236, %v1204, %v1268
        %v1301 = vsel %vm1237, %v1205, %v1269
        %v1302 = vsel %vm1238, %v1206, %v1270
        %v1303 = vsel %vm1239, %v1207, %v1271
        %v1304 = vsel %vm1240, %v1208, %v1272
        %v1305 = vsel %vm1241, %v1209, %v1273
        %v1306 = vsel %vm1242, %v1210, %v1274
        %v1307 = vsel %vm1243, %v1211, %v1275
        %v1308 = vsel %vm1244, %v1212, %v1276
        %v1309 = vsel %vm1245, %v1213, %v1277
        %v1310 = vsel %vm1246, %v1214, %v1278
        %v1311 = vsel %vm1247, %v1215, %v1279
        %v1312 = vsel %vm1248, %v1216, %v1280
        %v1313 = vsel %vm1249, %v1217, %v1281
        %v1314 = vsel %vm1250, %v1218, %v1282
        %v1315 = vsel %vm569, 16843009, 0
        %v1316 = vsel %vm570, 16843009, 0
        %v1317 = vsel %vm571, 16843009, 0
        %v1318 = vsel %vm572, 16843009, 0
        %v1319 = vunpack.c.0.s8 %v1315
        %v1320 = vunpack.c.1.s8 %v1315
        %v1321 = vunpack.c.2.s8 %v1315
        %v1322 = vunpack.c.3.s8 %v1315
        %v1323 = vunpack.c.0.s8 %v1316
        %v1324 = vunpack.c.1.s8 %v1316
        %v1325 = vunpack.c.2.s8 %v1316
        %v1326 = vunpack.c.3.s8 %v1316
        %v1327 = vunpack.c.0.s8 %v1317
        %v1328 = vunpack.c.1.s8 %v1317
        %v1329 = vunpack.c.2.s8 %v1317
        %v1330 = vunpack.c.3.s8 %v1317
        %v1331 = vunpack.c.0.s8 %v1318
        %v1332 = vunpack.c.1.s8 %v1318
        %v1333 = vunpack.c.2.s8 %v1318
        %v1334 = vunpack.c.3.s8 %v1318
        %v1335 = vpack.c.b16 %v1319, %v1319
        %v1336 = vpack.c.b8 %v1335, %v1335
        %v1337 = vpack.c.b16 %v1320, %v1320
        %v1338 = vpack.c.b8 %v1337, %v1337
        %v1339 = vpack.c.b16 %v1321, %v1321
        %v1340 = vpack.c.b8 %v1339, %v1339
        %v1341 = vpack.c.b16 %v1322, %v1322
        %v1342 = vpack.c.b8 %v1341, %v1341
        %v1343 = vpack.c.b16 %v1323, %v1323
        %v1344 = vpack.c.b8 %v1343, %v1343
        %v1345 = vpack.c.b16 %v1324, %v1324
        %v1346 = vpack.c.b8 %v1345, %v1345
        %v1347 = vpack.c.b16 %v1325, %v1325
        %v1348 = vpack.c.b8 %v1347, %v1347
        %v1349 = vpack.c.b16 %v1326, %v1326
        %v1350 = vpack.c.b8 %v1349, %v1349
        %v1351 = vpack.c.b16 %v1327, %v1327
        %v1352 = vpack.c.b8 %v1351, %v1351
        %v1353 = vpack.c.b16 %v1328, %v1328
        %v1354 = vpack.c.b8 %v1353, %v1353
        %v1355 = vpack.c.b16 %v1329, %v1329
        %v1356 = vpack.c.b8 %v1355, %v1355
        %v1357 = vpack.c.b16 %v1330, %v1330
        %v1358 = vpack.c.b8 %v1357, %v1357
        %v1359 = vpack.c.b16 %v1331, %v1331
        %v1360 = vpack.c.b8 %v1359, %v1359
        %v1361 = vpack.c.b16 %v1332, %v1332
        %v1362 = vpack.c.b8 %v1361, %v1361
        %v1363 = vpack.c.b16 %v1333, %v1333
        %v1364 = vpack.c.b8 %v1363, %v1363
        %v1365 = vpack.c.b16 %v1334, %v1334
        %v1366 = vpack.c.b8 %v1365, %v1365
        %vm1367 = vnez %v1336
        %vm1368 = vnez %v1338
        %vm1369 = vnez %v1340
        %vm1370 = vnez %v1342
        %vm1371 = vnez %v1344
        %vm1372 = vnez %v1346
        %vm1373 = vnez %v1348
        %vm1374 = vnez %v1350
        %vm1375 = vnez %v1352
        %vm1376 = vnez %v1354
        %vm1377 = vnez %v1356
        %vm1378 = vnez %v1358
        %vm1379 = vnez %v1360
        %vm1380 = vnez %v1362
        %vm1381 = vnez %v1364
        %vm1382 = vnez %v1366
        %v1383 = vsel %vm1367, 16843009, 0
        %v1384 = vsel %vm1368, 16843009, 0
        %v1385 = vsel %vm1369, 16843009, 0
        %v1386 = vsel %vm1370, 16843009, 0
        %v1387 = vsel %vm1371, 16843009, 0
        %v1388 = vsel %vm1372, 16843009, 0
        %v1389 = vsel %vm1373, 16843009, 0
        %v1390 = vsel %vm1374, 16843009, 0
        %v1391 = vsel %vm1375, 16843009, 0
        %v1392 = vsel %vm1376, 16843009, 0
        %v1393 = vsel %vm1377, 16843009, 0
        %v1394 = vsel %vm1378, 16843009, 0
        %v1395 = vsel %vm1379, 16843009, 0
        %v1396 = vsel %vm1380, 16843009, 0
        %v1397 = vsel %vm1381, 16843009, 0
        %v1398 = vsel %vm1382, 16843009, 0
        %v1399 = vunpack.c.0.s8 %v1383
        %v1400 = vunpack.c.0.s8 %v1384
        %v1401 = vunpack.c.0.s8 %v1385
        %v1402 = vunpack.c.0.s8 %v1386
        %v1403 = vunpack.c.0.s8 %v1387
        %v1404 = vunpack.c.0.s8 %v1388
        %v1405 = vunpack.c.0.s8 %v1389
        %v1406 = vunpack.c.0.s8 %v1390
        %v1407 = vunpack.c.0.s8 %v1391
        %v1408 = vunpack.c.0.s8 %v1392
        %v1409 = vunpack.c.0.s8 %v1393
        %v1410 = vunpack.c.0.s8 %v1394
        %v1411 = vunpack.c.0.s8 %v1395
        %v1412 = vunpack.c.0.s8 %v1396
        %v1413 = vunpack.c.0.s8 %v1397
        %v1414 = vunpack.c.0.s8 %v1398
        %vm1415 = vcmp.ne.s32.totalorder %v1399, 0
        %vm1416 = vcmp.ne.s32.totalorder %v1400, 0
        %vm1417 = vcmp.ne.s32.totalorder %v1401, 0
        %vm1418 = vcmp.ne.s32.totalorder %v1402, 0
        %vm1419 = vcmp.ne.s32.totalorder %v1403, 0
        %vm1420 = vcmp.ne.s32.totalorder %v1404, 0
        %vm1421 = vcmp.ne.s32.totalorder %v1405, 0
        %vm1422 = vcmp.ne.s32.totalorder %v1406, 0
        %vm1423 = vcmp.ne.s32.totalorder %v1407, 0
        %vm1424 = vcmp.ne.s32.totalorder %v1408, 0
        %vm1425 = vcmp.ne.s32.totalorder %v1409, 0
        %vm1426 = vcmp.ne.s32.totalorder %v1410, 0
        %vm1427 = vcmp.ne.s32.totalorder %v1411, 0
        %vm1428 = vcmp.ne.s32.totalorder %v1412, 0
        %vm1429 = vcmp.ne.s32.totalorder %v1413, 0
        %vm1430 = vcmp.ne.s32.totalorder %v1414, 0
        %v1431 = vsel %vm1415, 1, 0
        %v1432 = vsel %vm1416, 1, 0
        %v1433 = vsel %vm1417, 1, 0
        %v1434 = vsel %vm1418, 1, 0
        %v1435 = vsel %vm1419, 1, 0
        %v1436 = vsel %vm1420, 1, 0
        %v1437 = vsel %vm1421, 1, 0
        %v1438 = vsel %vm1422, 1, 0
        %v1439 = vsel %vm1423, 1, 0
        %v1440 = vsel %vm1424, 1, 0
        %v1441 = vsel %vm1425, 1, 0
        %v1442 = vsel %vm1426, 1, 0
        %v1443 = vsel %vm1427, 1, 0
        %v1444 = vsel %vm1428, 1, 0
        %v1445 = vsel %vm1429, 1, 0
        %v1446 = vsel %vm1430, 1, 0
        %vm1447 = vcmp.eq.s32.totalorder %v1431, 1
        %vm1448 = vcmp.eq.s32.totalorder %v1432, 1
        %vm1449 = vcmp.eq.s32.totalorder %v1433, 1
        %vm1450 = vcmp.eq.s32.totalorder %v1434, 1
        %vm1451 = vcmp.eq.s32.totalorder %v1435, 1
        %vm1452 = vcmp.eq.s32.totalorder %v1436, 1
        %vm1453 = vcmp.eq.s32.totalorder %v1437, 1
        %vm1454 = vcmp.eq.s32.totalorder %v1438, 1
        %vm1455 = vcmp.eq.s32.totalorder %v1439, 1
        %vm1456 = vcmp.eq.s32.totalorder %v1440, 1
        %vm1457 = vcmp.eq.s32.totalorder %v1441, 1
        %vm1458 = vcmp.eq.s32.totalorder %v1442, 1
        %vm1459 = vcmp.eq.s32.totalorder %v1443, 1
        %vm1460 = vcmp.eq.s32.totalorder %v1444, 1
        %vm1461 = vcmp.eq.s32.totalorder %v1445, 1
        %vm1462 = vcmp.eq.s32.totalorder %v1446, 1
        %v1463 = vsel %vm1447, %v1283, -1e+30
        %v1464 = vsel %vm1448, %v1284, -1e+30
        %v1465 = vsel %vm1449, %v1285, -1e+30
        %v1466 = vsel %vm1450, %v1286, -1e+30
        %v1467 = vsel %vm1451, %v1287, -1e+30
        %v1468 = vsel %vm1452, %v1288, -1e+30
        %v1469 = vsel %vm1453, %v1289, -1e+30
        %v1470 = vsel %vm1454, %v1290, -1e+30
        %v1471 = vsel %vm1455, %v1291, -1e+30
        %v1472 = vsel %vm1456, %v1292, -1e+30
        %v1473 = vsel %vm1457, %v1293, -1e+30
        %v1474 = vsel %vm1458, %v1294, -1e+30
        %v1475 = vsel %vm1459, %v1295, -1e+30
        %v1476 = vsel %vm1460, %v1296, -1e+30
        %v1477 = vsel %vm1461, %v1297, -1e+30
        %v1478 = vsel %vm1462, %v1298, -1e+30
        %v1479 = vsel %vm1447, %v1299, -1e+30
        %v1480 = vsel %vm1448, %v1300, -1e+30
        %v1481 = vsel %vm1449, %v1301, -1e+30
        %v1482 = vsel %vm1450, %v1302, -1e+30
        %v1483 = vsel %vm1451, %v1303, -1e+30
        %v1484 = vsel %vm1452, %v1304, -1e+30
        %v1485 = vsel %vm1453, %v1305, -1e+30
        %v1486 = vsel %vm1454, %v1306, -1e+30
        %v1487 = vsel %vm1455, %v1307, -1e+30
        %v1488 = vsel %vm1456, %v1308, -1e+30
        %v1489 = vsel %vm1457, %v1309, -1e+30
        %v1490 = vsel %vm1458, %v1310, -1e+30
        %v1491 = vsel %vm1459, %v1311, -1e+30
        %v1492 = vsel %vm1460, %v1312, -1e+30
        %v1493 = vsel %vm1461, %v1313, -1e+30
        %v1494 = vsel %vm1462, %v1314, -1e+30
        %1495 = vmax.xlane.f32.xlu0 %v1463
        %v1496 = vpop.xlane.xlu0 %1495
        %1497 = vmax.xlane.f32.xlu0 %v1464
        %v1498 = vpop.xlane.xlu0 %1497
        %1499 = vmax.xlane.f32.xlu0 %v1465
        %v1500 = vpop.xlane.xlu0 %1499
        %1501 = vmax.xlane.f32.xlu0 %v1466
        %v1502 = vpop.xlane.xlu0 %1501
        %1503 = vmax.xlane.f32.xlu0 %v1467
        %v1504 = vpop.xlane.xlu0 %1503
        %1505 = vmax.xlane.f32.xlu0 %v1468
        %v1506 = vpop.xlane.xlu0 %1505
        %1507 = vmax.xlane.f32.xlu0 %v1469
        %v1508 = vpop.xlane.xlu0 %1507
        %1509 = vmax.xlane.f32.xlu0 %v1470
        %v1510 = vpop.xlane.xlu0 %1509
        %1511 = vmax.xlane.f32.xlu0 %v1471
        %v1512 = vpop.xlane.xlu0 %1511
        %1513 = vmax.xlane.f32.xlu0 %v1472
        %v1514 = vpop.xlane.xlu0 %1513
        %1515 = vmax.xlane.f32.xlu0 %v1473
        %v1516 = vpop.xlane.xlu0 %1515
        %1517 = vmax.xlane.f32.xlu0 %v1474
        %v1518 = vpop.xlane.xlu0 %1517
        %1519 = vmax.xlane.f32.xlu0 %v1475
        %v1520 = vpop.xlane.xlu0 %1519
        %1521 = vmax.xlane.f32.xlu0 %v1476
        %v1522 = vpop.xlane.xlu0 %1521
        %1523 = vmax.xlane.f32.xlu0 %v1477
        %v1524 = vpop.xlane.xlu0 %1523
        %1525 = vmax.xlane.f32.xlu0 %v1478
        %v1526 = vpop.xlane.xlu0 %1525
        %1527 = vmax.xlane.f32.xlu0 %v1479
        %v1528 = vpop.xlane.xlu0 %1527
        %1529 = vmax.xlane.f32.xlu0 %v1480
        %v1530 = vpop.xlane.xlu0 %1529
        %1531 = vmax.xlane.f32.xlu0 %v1481
        %v1532 = vpop.xlane.xlu0 %1531
        %1533 = vmax.xlane.f32.xlu0 %v1482
        %v1534 = vpop.xlane.xlu0 %1533
        %1535 = vmax.xlane.f32.xlu0 %v1483
        %v1536 = vpop.xlane.xlu0 %1535
        %1537 = vmax.xlane.f32.xlu0 %v1484
        %v1538 = vpop.xlane.xlu0 %1537
        %1539 = vmax.xlane.f32.xlu0 %v1485
        %v1540 = vpop.xlane.xlu0 %1539
        %1541 = vmax.xlane.f32.xlu0 %v1486
        %v1542 = vpop.xlane.xlu0 %1541
        %1543 = vmax.xlane.f32.xlu0 %v1487
        %v1544 = vpop.xlane.xlu0 %1543
        %1545 = vmax.xlane.f32.xlu0 %v1488
        %v1546 = vpop.xlane.xlu0 %1545
        %1547 = vmax.xlane.f32.xlu0 %v1489
        %v1548 = vpop.xlane.xlu0 %1547
        %1549 = vmax.xlane.f32.xlu0 %v1490
        %v1550 = vpop.xlane.xlu0 %1549
        %1551 = vmax.xlane.f32.xlu0 %v1491
        %v1552 = vpop.xlane.xlu0 %1551
        %1553 = vmax.xlane.f32.xlu0 %v1492
        %v1554 = vpop.xlane.xlu0 %1553
        %1555 = vmax.xlane.f32.xlu0 %v1493
        %v1556 = vpop.xlane.xlu0 %1555
        %1557 = vmax.xlane.f32.xlu0 %v1494
        %v1558 = vpop.xlane.xlu0 %1557
        %v1559 = vsub.f32 %v1463, %v1496
        %v1560 = vsub.f32 %v1464, %v1498
        %v1561 = vsub.f32 %v1465, %v1500
        %v1562 = vsub.f32 %v1466, %v1502
        %v1563 = vsub.f32 %v1467, %v1504
        %v1564 = vsub.f32 %v1468, %v1506
        %v1565 = vsub.f32 %v1469, %v1508
        %v1566 = vsub.f32 %v1470, %v1510
        %v1567 = vsub.f32 %v1471, %v1512
        %v1568 = vsub.f32 %v1472, %v1514
        %v1569 = vsub.f32 %v1473, %v1516
        %v1570 = vsub.f32 %v1474, %v1518
        %v1571 = vsub.f32 %v1475, %v1520
        %v1572 = vsub.f32 %v1476, %v1522
        %v1573 = vsub.f32 %v1477, %v1524
        %v1574 = vsub.f32 %v1478, %v1526
        %v1575 = vsub.f32 %v1479, %v1528
        %v1576 = vsub.f32 %v1480, %v1530
        %v1577 = vsub.f32 %v1481, %v1532
        %v1578 = vsub.f32 %v1482, %v1534
        %v1579 = vsub.f32 %v1483, %v1536
        %v1580 = vsub.f32 %v1484, %v1538
        %v1581 = vsub.f32 %v1485, %v1540
        %v1582 = vsub.f32 %v1486, %v1542
        %v1583 = vsub.f32 %v1487, %v1544
        %v1584 = vsub.f32 %v1488, %v1546
        %v1585 = vsub.f32 %v1489, %v1548
        %v1586 = vsub.f32 %v1490, %v1550
        %v1587 = vsub.f32 %v1491, %v1552
        %v1588 = vsub.f32 %v1492, %v1554
        %v1589 = vsub.f32 %v1493, %v1556
        %v1590 = vsub.f32 %v1494, %v1558
        %v1591 = vmul.f32 %v1559, 1.442695
        %v1592 = vpow.pop %v1591
        %v1593 = vmul.f32 %v1560, 1.442695
        %v1594 = vpow.pop %v1593
        %v1595 = vmul.f32 %v1561, 1.442695
        %v1596 = vpow.pop %v1595
        %v1597 = vmul.f32 %v1562, 1.442695
        %v1598 = vpow.pop %v1597
        %v1599 = vmul.f32 %v1563, 1.442695
        %v1600 = vpow.pop %v1599
        %v1601 = vmul.f32 %v1564, 1.442695
        %v1602 = vpow.pop %v1601
        %v1603 = vmul.f32 %v1565, 1.442695
        %v1604 = vpow.pop %v1603
        %v1605 = vmul.f32 %v1566, 1.442695
        %v1606 = vpow.pop %v1605
        %v1607 = vmul.f32 %v1567, 1.442695
        %v1608 = vpow.pop %v1607
        %v1609 = vmul.f32 %v1568, 1.442695
        %v1610 = vpow.pop %v1609
        %v1611 = vmul.f32 %v1569, 1.442695
        %v1612 = vpow.pop %v1611
        %v1613 = vmul.f32 %v1570, 1.442695
        %v1614 = vpow.pop %v1613
        %v1615 = vmul.f32 %v1571, 1.442695
        %v1616 = vpow.pop %v1615
        %v1617 = vmul.f32 %v1572, 1.442695
        %v1618 = vpow.pop %v1617
        %v1619 = vmul.f32 %v1573, 1.442695
        %v1620 = vpow.pop %v1619
        %v1621 = vmul.f32 %v1574, 1.442695
        %v1622 = vpow.pop %v1621
        %v1623 = vmul.f32 %v1575, 1.442695
        %v1624 = vpow.pop %v1623
        %v1625 = vmul.f32 %v1576, 1.442695
        %v1626 = vpow.pop %v1625
        %v1627 = vmul.f32 %v1577, 1.442695
        %v1628 = vpow.pop %v1627
        %v1629 = vmul.f32 %v1578, 1.442695
        %v1630 = vpow.pop %v1629
        %v1631 = vmul.f32 %v1579, 1.442695
        %v1632 = vpow.pop %v1631
        %v1633 = vmul.f32 %v1580, 1.442695
        %v1634 = vpow.pop %v1633
        %v1635 = vmul.f32 %v1581, 1.442695
        %v1636 = vpow.pop %v1635
        %v1637 = vmul.f32 %v1582, 1.442695
        %v1638 = vpow.pop %v1637
        %v1639 = vmul.f32 %v1583, 1.442695
        %v1640 = vpow.pop %v1639
        %v1641 = vmul.f32 %v1584, 1.442695
        %v1642 = vpow.pop %v1641
        %v1643 = vmul.f32 %v1585, 1.442695
        %v1644 = vpow.pop %v1643
        %v1645 = vmul.f32 %v1586, 1.442695
        %v1646 = vpow.pop %v1645
        %v1647 = vmul.f32 %v1587, 1.442695
        %v1648 = vpow.pop %v1647
        %v1649 = vmul.f32 %v1588, 1.442695
        %v1650 = vpow.pop %v1649
        %v1651 = vmul.f32 %v1589, 1.442695
        %v1652 = vpow.pop %v1651
        %v1653 = vmul.f32 %v1590, 1.442695
        %v1654 = vpow.pop %v1653
        %v1655 = vsel %vm1447, %v1592, 0.0
        %v1656 = vsel %vm1448, %v1594, 0.0
        %v1657 = vsel %vm1449, %v1596, 0.0
        %v1658 = vsel %vm1450, %v1598, 0.0
        %v1659 = vsel %vm1451, %v1600, 0.0
        %v1660 = vsel %vm1452, %v1602, 0.0
        %v1661 = vsel %vm1453, %v1604, 0.0
        %v1662 = vsel %vm1454, %v1606, 0.0
        %v1663 = vsel %vm1455, %v1608, 0.0
        %v1664 = vsel %vm1456, %v1610, 0.0
        %v1665 = vsel %vm1457, %v1612, 0.0
        %v1666 = vsel %vm1458, %v1614, 0.0
        %v1667 = vsel %vm1459, %v1616, 0.0
        %v1668 = vsel %vm1460, %v1618, 0.0
        %v1669 = vsel %vm1461, %v1620, 0.0
        %v1670 = vsel %vm1462, %v1622, 0.0
        %v1671 = vsel %vm1447, %v1624, 0.0
        %v1672 = vsel %vm1448, %v1626, 0.0
        %v1673 = vsel %vm1449, %v1628, 0.0
        %v1674 = vsel %vm1450, %v1630, 0.0
        %v1675 = vsel %vm1451, %v1632, 0.0
        %v1676 = vsel %vm1452, %v1634, 0.0
        %v1677 = vsel %vm1453, %v1636, 0.0
        %v1678 = vsel %vm1454, %v1638, 0.0
        %v1679 = vsel %vm1455, %v1640, 0.0
        %v1680 = vsel %vm1456, %v1642, 0.0
        %v1681 = vsel %vm1457, %v1644, 0.0
        %v1682 = vsel %vm1458, %v1646, 0.0
        %v1683 = vsel %vm1459, %v1648, 0.0
        %v1684 = vsel %vm1460, %v1650, 0.0
        %v1685 = vsel %vm1461, %v1652, 0.0
        %v1686 = vsel %vm1462, %v1654, 0.0
        %1687 = vadd.xlane.f32.xlu0 %v1655
        %v1688 = vpop.xlane.xlu0 %1687
        %1689 = vadd.xlane.f32.xlu0 %v1656
        %v1690 = vpop.xlane.xlu0 %1689
        %1691 = vadd.xlane.f32.xlu0 %v1657
        %v1692 = vpop.xlane.xlu0 %1691
        %1693 = vadd.xlane.f32.xlu0 %v1658
        %v1694 = vpop.xlane.xlu0 %1693
        %1695 = vadd.xlane.f32.xlu0 %v1659
        %v1696 = vpop.xlane.xlu0 %1695
        %1697 = vadd.xlane.f32.xlu0 %v1660
        %v1698 = vpop.xlane.xlu0 %1697
        %1699 = vadd.xlane.f32.xlu0 %v1661
        %v1700 = vpop.xlane.xlu0 %1699
        %1701 = vadd.xlane.f32.xlu0 %v1662
        %v1702 = vpop.xlane.xlu0 %1701
        %1703 = vadd.xlane.f32.xlu0 %v1663
        %v1704 = vpop.xlane.xlu0 %1703
        %1705 = vadd.xlane.f32.xlu0 %v1664
        %v1706 = vpop.xlane.xlu0 %1705
        %1707 = vadd.xlane.f32.xlu0 %v1665
        %v1708 = vpop.xlane.xlu0 %1707
        %1709 = vadd.xlane.f32.xlu0 %v1666
        %v1710 = vpop.xlane.xlu0 %1709
        %1711 = vadd.xlane.f32.xlu0 %v1667
        %v1712 = vpop.xlane.xlu0 %1711
        %1713 = vadd.xlane.f32.xlu0 %v1668
        %v1714 = vpop.xlane.xlu0 %1713
        %1715 = vadd.xlane.f32.xlu0 %v1669
        %v1716 = vpop.xlane.xlu0 %1715
        %1717 = vadd.xlane.f32.xlu0 %v1670
        %v1718 = vpop.xlane.xlu0 %1717
        %1719 = vadd.xlane.f32.xlu0 %v1671
        %v1720 = vpop.xlane.xlu0 %1719
        %1721 = vadd.xlane.f32.xlu0 %v1672
        %v1722 = vpop.xlane.xlu0 %1721
        %1723 = vadd.xlane.f32.xlu0 %v1673
        %v1724 = vpop.xlane.xlu0 %1723
        %1725 = vadd.xlane.f32.xlu0 %v1674
        %v1726 = vpop.xlane.xlu0 %1725
        %1727 = vadd.xlane.f32.xlu0 %v1675
        %v1728 = vpop.xlane.xlu0 %1727
        %1729 = vadd.xlane.f32.xlu0 %v1676
        %v1730 = vpop.xlane.xlu0 %1729
        %1731 = vadd.xlane.f32.xlu0 %v1677
        %v1732 = vpop.xlane.xlu0 %1731
        %1733 = vadd.xlane.f32.xlu0 %v1678
        %v1734 = vpop.xlane.xlu0 %1733
        %1735 = vadd.xlane.f32.xlu0 %v1679
        %v1736 = vpop.xlane.xlu0 %1735
        %1737 = vadd.xlane.f32.xlu0 %v1680
        %v1738 = vpop.xlane.xlu0 %1737
        %1739 = vadd.xlane.f32.xlu0 %v1681
        %v1740 = vpop.xlane.xlu0 %1739
        %1741 = vadd.xlane.f32.xlu0 %v1682
        %v1742 = vpop.xlane.xlu0 %1741
        %1743 = vadd.xlane.f32.xlu0 %v1683
        %v1744 = vpop.xlane.xlu0 %1743
        %1745 = vadd.xlane.f32.xlu0 %v1684
        %v1746 = vpop.xlane.xlu0 %1745
        %1747 = vadd.xlane.f32.xlu0 %v1685
        %v1748 = vpop.xlane.xlu0 %1747
        %1749 = vadd.xlane.f32.xlu0 %v1686
        %v1750 = vpop.xlane.xlu0 %1749
        %v1751 = vmax.f32 %v1688, 1e-20
        %v1752 = vmax.f32 %v1690, 1e-20
        %v1753 = vmax.f32 %v1692, 1e-20
        %v1754 = vmax.f32 %v1694, 1e-20
        %v1755 = vmax.f32 %v1696, 1e-20
        %v1756 = vmax.f32 %v1698, 1e-20
        %v1757 = vmax.f32 %v1700, 1e-20
        %v1758 = vmax.f32 %v1702, 1e-20
        %v1759 = vmax.f32 %v1704, 1e-20
        %v1760 = vmax.f32 %v1706, 1e-20
        %v1761 = vmax.f32 %v1708, 1e-20
        %v1762 = vmax.f32 %v1710, 1e-20
        %v1763 = vmax.f32 %v1712, 1e-20
        %v1764 = vmax.f32 %v1714, 1e-20
        %v1765 = vmax.f32 %v1716, 1e-20
        %v1766 = vmax.f32 %v1718, 1e-20
        %v1767 = vmax.f32 %v1720, 1e-20
        %v1768 = vmax.f32 %v1722, 1e-20
        %v1769 = vmax.f32 %v1724, 1e-20
        %v1770 = vmax.f32 %v1726, 1e-20
        %v1771 = vmax.f32 %v1728, 1e-20
        %v1772 = vmax.f32 %v1730, 1e-20
        %v1773 = vmax.f32 %v1732, 1e-20
        %v1774 = vmax.f32 %v1734, 1e-20
        %v1775 = vmax.f32 %v1736, 1e-20
        %v1776 = vmax.f32 %v1738, 1e-20
        %v1777 = vmax.f32 %v1740, 1e-20
        %v1778 = vmax.f32 %v1742, 1e-20
        %v1779 = vmax.f32 %v1744, 1e-20
        %v1780 = vmax.f32 %v1746, 1e-20
        %v1781 = vmax.f32 %v1748, 1e-20
        %v1782 = vmax.f32 %v1750, 1e-20
        %v1783 = vrcp.pop %v1751
        %v1784 = vrcp.pop %v1752
        %v1785 = vrcp.pop %v1753
        %v1786 = vrcp.pop %v1754
        %v1787 = vrcp.pop %v1755
        %v1788 = vrcp.pop %v1756
        %v1789 = vrcp.pop %v1757
        %v1790 = vrcp.pop %v1758
        %v1791 = vrcp.pop %v1759
        %v1792 = vrcp.pop %v1760
        %v1793 = vrcp.pop %v1761
        %v1794 = vrcp.pop %v1762
        %v1795 = vrcp.pop %v1763
        %v1796 = vrcp.pop %v1764
        %v1797 = vrcp.pop %v1765
        %v1798 = vrcp.pop %v1766
        %v1799 = vrcp.pop %v1767
        %v1800 = vrcp.pop %v1768
        %v1801 = vrcp.pop %v1769
        %v1802 = vrcp.pop %v1770
        %v1803 = vrcp.pop %v1771
        %v1804 = vrcp.pop %v1772
        %v1805 = vrcp.pop %v1773
        %v1806 = vrcp.pop %v1774
        %v1807 = vrcp.pop %v1775
        %v1808 = vrcp.pop %v1776
        %v1809 = vrcp.pop %v1777
        %v1810 = vrcp.pop %v1778
        %v1811 = vrcp.pop %v1779
        %v1812 = vrcp.pop %v1780
        %v1813 = vrcp.pop %v1781
        %v1814 = vrcp.pop %v1782
        %v1815 = vmul.f32 %v1655, %v1783
        %v1816 = vmul.f32 %v1656, %v1784
        %v1817 = vmul.f32 %v1657, %v1785
        %v1818 = vmul.f32 %v1658, %v1786
        %v1819 = vmul.f32 %v1659, %v1787
        %v1820 = vmul.f32 %v1660, %v1788
        %v1821 = vmul.f32 %v1661, %v1789
        %v1822 = vmul.f32 %v1662, %v1790
        %v1823 = vmul.f32 %v1663, %v1791
        %v1824 = vmul.f32 %v1664, %v1792
        %v1825 = vmul.f32 %v1665, %v1793
        %v1826 = vmul.f32 %v1666, %v1794
        %v1827 = vmul.f32 %v1667, %v1795
        %v1828 = vmul.f32 %v1668, %v1796
        %v1829 = vmul.f32 %v1669, %v1797
        %v1830 = vmul.f32 %v1670, %v1798
        %v1831 = vmul.f32 %v1671, %v1799
        %v1832 = vmul.f32 %v1672, %v1800
        %v1833 = vmul.f32 %v1673, %v1801
        %v1834 = vmul.f32 %v1674, %v1802
        %v1835 = vmul.f32 %v1675, %v1803
        %v1836 = vmul.f32 %v1676, %v1804
        %v1837 = vmul.f32 %v1677, %v1805
        %v1838 = vmul.f32 %v1678, %v1806
        %v1839 = vmul.f32 %v1679, %v1807
        %v1840 = vmul.f32 %v1680, %v1808
        %v1841 = vmul.f32 %v1681, %v1809
        %v1842 = vmul.f32 %v1682, %v1810
        %v1843 = vmul.f32 %v1683, %v1811
        %v1844 = vmul.f32 %v1684, %v1812
        %v1845 = vmul.f32 %v1685, %v1813
        %v1846 = vmul.f32 %v1686, %v1814
        %v1847 = vld [vmem:[%s6] sm:$0xf]
        %v1848 = vld [vmem:[%s6 + $0x4] sm:$0xf]
        %v1849 = vld [vmem:[%s6 + $0x8] sm:$0xf]
        %v1850 = vld [vmem:[%s6 + $0xc] sm:$0xf]
        %v1851 = vld [vmem:[%s6 + $0x10] sm:$0xf]
        %v1852 = vld [vmem:[%s6 + $0x14] sm:$0xf]
        %v1853 = vld [vmem:[%s6 + $0x18] sm:$0xf]
        %v1854 = vld [vmem:[%s6 + $0x1c] sm:$0xf]
        %v1855 = vld [vmem:[%s6 + $0x20] sm:$0xf]
        %v1856 = vld [vmem:[%s6 + $0x24] sm:$0xf]
        %v1857 = vld [vmem:[%s6 + $0x28] sm:$0xf]
        %v1858 = vld [vmem:[%s6 + $0x2c] sm:$0xf]
        %v1859 = vld [vmem:[%s6 + $0x30] sm:$0xf]
        %v1860 = vld [vmem:[%s6 + $0x34] sm:$0xf]
        %v1861 = vld [vmem:[%s6 + $0x38] sm:$0xf]
        %v1862 = vld [vmem:[%s6 + $0x3c] sm:$0xf]
        %v1863 = vld [vmem:[%s6 + $0x40] sm:$0xf]
        %v1864 = vld [vmem:[%s6 + $0x44] sm:$0xf]
        %v1865 = vld [vmem:[%s6 + $0x48] sm:$0xf]
        %v1866 = vld [vmem:[%s6 + $0x4c] sm:$0xf]
        %v1867 = vld [vmem:[%s6 + $0x50] sm:$0xf]
        %v1868 = vld [vmem:[%s6 + $0x54] sm:$0xf]
        %v1869 = vld [vmem:[%s6 + $0x58] sm:$0xf]
        %v1870 = vld [vmem:[%s6 + $0x5c] sm:$0xf]
        %v1871 = vld [vmem:[%s6 + $0x60] sm:$0xf]
        %v1872 = vld [vmem:[%s6 + $0x64] sm:$0xf]
        %v1873 = vld [vmem:[%s6 + $0x68] sm:$0xf]
        %v1874 = vld [vmem:[%s6 + $0x6c] sm:$0xf]
        %v1875 = vld [vmem:[%s6 + $0x70] sm:$0xf]
        %v1876 = vld [vmem:[%s6 + $0x74] sm:$0xf]
        %v1877 = vld [vmem:[%s6 + $0x78] sm:$0xf]
        %v1878 = vld [vmem:[%s6 + $0x7c] sm:$0xf]
        %v1879 = vpack.c.bf16 %v1816, %v1815
        %v1880 = vpack.c.bf16 %v1818, %v1817
        %v1881 = vpack.c.bf16 %v1820, %v1819
        %v1882 = vpack.c.bf16 %v1822, %v1821
        %v1883 = vpack.c.bf16 %v1824, %v1823
        %v1884 = vpack.c.bf16 %v1826, %v1825
        %v1885 = vpack.c.bf16 %v1828, %v1827
        %v1886 = vpack.c.bf16 %v1830, %v1829
        %1887 = vmatprep.subr.bf16.mxu0 0
        %1888 = vmatpush1.bf16.msra.mxu0 %v728
        %1889 = vmatprep.subr.bf16.mxu0 0
        %1890 = vmatpush1.bf16.msra.mxu0 %v730
        %1891 = vmatprep.subr.bf16.mxu0 0
        %1892 = vmatpush1.bf16.msra.mxu0 %v732
        %1893 = vmatprep.subr.bf16.mxu0 0
        %1894 = vmatpush1.bf16.msra.mxu0 %v734
        %1895 = vmatprep.subr.bf16.mxu0 0
        %1896 = vmatpush1.bf16.msra.mxu0 %v736
        %1897 = vmatprep.subr.bf16.mxu0 0
        %1898 = vmatpush1.bf16.msra.mxu0 %v738
        %1899 = vmatprep.subr.bf16.mxu0 0
        %1900 = vmatpush1.bf16.msra.mxu0 %v740
        %1901 = vmatprep.subr.bf16.mxu0 0
        %1902 = vmatpush1.bf16.msra.mxu0 %v742
        %1903 = vmatprep.subr.bf16.mxu0 0
        %1904 = vmatpush1.bf16.msra.mxu0 0
        %1905 = vmatprep.subr.bf16.mxu0 0
        %1906 = vmatpush1.bf16.msra.mxu0 0
        %1907 = vmatprep.subr.bf16.mxu0 0
        %1908 = vmatpush1.bf16.msra.mxu0 0
        %1909 = vmatprep.subr.bf16.mxu0 0
        %1910 = vmatpush1.bf16.msra.mxu0 0
        %1911 = vmatprep.subr.bf16.mxu0 0
        %1912 = vmatpush1.bf16.msra.mxu0 0
        %1913 = vmatprep.subr.bf16.mxu0 0
        %1914 = vmatpush1.bf16.msra.mxu0 0
        %1915 = vmatprep.subr.bf16.mxu0 0
        %1916 = vmatpush1.bf16.msra.mxu0 0
        %1917 = vmatprep.subr.bf16.mxu0 0
        %1918 = vmatpush1.bf16.msra.mxu0 0
        %1919 = vmatprep.mubr.bf16.mxu0 0
        %1920 = vmatmul.mubr.bf16.gmra.mrb[0].mxu0 %v1879
        %v1921 = vpop.f32.mrb[0].mxu0
        %v1922 = vadd.f32 0.0, %v1921
        %v1923 = vpop.f32.mrb[0].mxu0
        %v1924 = vpop.f32.mrb[0].mxu0
        %v1925 = vadd.f32 0.0, %v1924
        %v1926 = vpop.f32.mrb[0].mxu0
        %1927 = vmatprep.mubr.bf16.mxu0 0
        %1928 = vmatmul.mubr.bf16.gmra.mrb[0].mxu0 %v1880
        %v1929 = vpop.f32.mrb[0].mxu0
        %v1930 = vadd.f32 0.0, %v1929
        %v1931 = vpop.f32.mrb[0].mxu0
        %v1932 = vpop.f32.mrb[0].mxu0
        %v1933 = vadd.f32 0.0, %v1932
        %v1934 = vpop.f32.mrb[0].mxu0
        %1935 = vmatprep.mubr.bf16.mxu0 0
        %1936 = vmatmul.mubr.bf16.gmra.mrb[0].mxu0 %v1881
        %v1937 = vpop.f32.mrb[0].mxu0
        %v1938 = vadd.f32 0.0, %v1937
        %v1939 = vpop.f32.mrb[0].mxu0
        %v1940 = vpop.f32.mrb[0].mxu0
        %v1941 = vadd.f32 0.0, %v1940
        %v1942 = vpop.f32.mrb[0].mxu0
        %1943 = vmatprep.mubr.bf16.mxu0 0
        %1944 = vmatmul.mubr.bf16.gmra.mrb[0].mxu0 %v1882
        %v1945 = vpop.f32.mrb[0].mxu0
        %v1946 = vadd.f32 0.0, %v1945
        %v1947 = vpop.f32.mrb[0].mxu0
        %v1948 = vpop.f32.mrb[0].mxu0
        %v1949 = vadd.f32 0.0, %v1948
        %v1950 = vpop.f32.mrb[0].mxu0
        %1951 = vmatprep.mubr.bf16.mxu0 0
        %1952 = vmatmul.mubr.bf16.gmra.mrb[0].mxu0 %v1883
        %v1953 = vpop.f32.mrb[0].mxu0
        %v1954 = vadd.f32 0.0, %v1953
        %v1955 = vpop.f32.mrb[0].mxu0
        %v1956 = vpop.f32.mrb[0].mxu0
        %v1957 = vadd.f32 0.0, %v1956
        %v1958 = vpop.f32.mrb[0].mxu0
        %1959 = vmatprep.mubr.bf16.mxu0 0
        %1960 = vmatmul.mubr.bf16.gmra.mrb[0].mxu0 %v1884
        %v1961 = vpop.f32.mrb[0].mxu0
        %v1962 = vadd.f32 0.0, %v1961
        %v1963 = vpop.f32.mrb[0].mxu0
        %v1964 = vpop.f32.mrb[0].mxu0
        %v1965 = vadd.f32 0.0, %v1964
        %v1966 = vpop.f32.mrb[0].mxu0
        %1967 = vmatprep.mubr.bf16.mxu0 0
        %1968 = vmatmul.mubr.bf16.gmra.mrb[0].mxu0 %v1885
        %v1969 = vpop.f32.mrb[0].mxu0
        %v1970 = vadd.f32 0.0, %v1969
        %v1971 = vpop.f32.mrb[0].mxu0
        %v1972 = vpop.f32.mrb[0].mxu0
        %v1973 = vadd.f32 0.0, %v1972
        %v1974 = vpop.f32.mrb[0].mxu0
        %1975 = vmatprep.mubr.bf16.mxu0 0
        %1976 = vmatmul.mubr.bf16.gmra.mrb[0].mxu0 %v1886
        %v1977 = vpop.f32.mrb[0].mxu0
        %v1978 = vadd.f32 0.0, %v1977
        %v1979 = vpop.f32.mrb[0].mxu0
        %v1980 = vpop.f32.mrb[0].mxu0
        %v1981 = vadd.f32 0.0, %v1980
        %v1982 = vpop.f32.mrb[0].mxu0
        %1983 = vdwg.mxu0
        %v1984 = vmax.f32 %v1922, 0.0
        %v1985 = vmax.f32 %v1925, 0.0
        %v1986 = vmax.f32 %v1930, 0.0
        %v1987 = vmax.f32 %v1933, 0.0
        %v1988 = vmax.f32 %v1938, 0.0
        %v1989 = vmax.f32 %v1941, 0.0
        %v1990 = vmax.f32 %v1946, 0.0
        %v1991 = vmax.f32 %v1949, 0.0
        %v1992 = vmax.f32 %v1954, 0.0
        %v1993 = vmax.f32 %v1957, 0.0
        %v1994 = vmax.f32 %v1962, 0.0
        %v1995 = vmax.f32 %v1965, 0.0
        %v1996 = vmax.f32 %v1970, 0.0
        %v1997 = vmax.f32 %v1973, 0.0
        %v1998 = vmax.f32 %v1978, 0.0
        %v1999 = vmax.f32 %v1981, 0.0
        %v2000 = vpack.c.bf16 %v1985, %v1984
        %v2001 = vpack.c.bf16 %v1987, %v1986
        %v2002 = vpack.c.bf16 %v1989, %v1988
        %v2003 = vpack.c.bf16 %v1991, %v1990
        %v2004 = vpack.c.bf16 %v1993, %v1992
        %v2005 = vpack.c.bf16 %v1995, %v1994
        %v2006 = vpack.c.bf16 %v1997, %v1996
        %v2007 = vpack.c.bf16 %v1999, %v1998
        %v2008 = vpack.c.bf16 %v1832, %v1831
        %v2009 = vpack.c.bf16 %v1834, %v1833
        %v2010 = vpack.c.bf16 %v1836, %v1835
        %v2011 = vpack.c.bf16 %v1838, %v1837
        %v2012 = vpack.c.bf16 %v1840, %v1839
        %v2013 = vpack.c.bf16 %v1842, %v1841
        %v2014 = vpack.c.bf16 %v1844, %v1843
        %v2015 = vpack.c.bf16 %v1846, %v1845
        %2016 = vmatprep.subr.bf16.mxu0 0
        %2017 = vmatpush1.bf16.msra.mxu0 %v729
        %2018 = vmatprep.subr.bf16.mxu0 0
        %2019 = vmatpush1.bf16.msra.mxu0 %v731
        %2020 = vmatprep.subr.bf16.mxu0 0
        %2021 = vmatpush1.bf16.msra.mxu0 %v733
        %2022 = vmatprep.subr.bf16.mxu0 0
        %2023 = vmatpush1.bf16.msra.mxu0 %v735
        %2024 = vmatprep.subr.bf16.mxu0 0
        %2025 = vmatpush1.bf16.msra.mxu0 %v737
        %2026 = vmatprep.subr.bf16.mxu0 0
        %2027 = vmatpush1.bf16.msra.mxu0 %v739
        %2028 = vmatprep.subr.bf16.mxu0 0
        %2029 = vmatpush1.bf16.msra.mxu0 %v741
        %2030 = vmatprep.subr.bf16.mxu0 0
        %2031 = vmatpush1.bf16.msra.mxu0 %v743
        %2032 = vmatprep.subr.bf16.mxu0 0
        %2033 = vmatpush1.bf16.msra.mxu0 0
        %2034 = vmatprep.subr.bf16.mxu0 0
        %2035 = vmatpush1.bf16.msra.mxu0 0
        %2036 = vmatprep.subr.bf16.mxu0 0
        %2037 = vmatpush1.bf16.msra.mxu0 0
        %2038 = vmatprep.subr.bf16.mxu0 0
        %2039 = vmatpush1.bf16.msra.mxu0 0
        %2040 = vmatprep.subr.bf16.mxu0 0
        %2041 = vmatpush1.bf16.msra.mxu0 0
        %2042 = vmatprep.subr.bf16.mxu0 0
        %2043 = vmatpush1.bf16.msra.mxu0 0
        %2044 = vmatprep.subr.bf16.mxu0 0
        %2045 = vmatpush1.bf16.msra.mxu0 0
        %2046 = vmatprep.subr.bf16.mxu0 0
        %2047 = vmatpush1.bf16.msra.mxu0 0
        %2048 = vmatprep.mubr.bf16.mxu0 0
        %2049 = vmatmul.mubr.bf16.gmra.mrb[0].mxu0 %v2008
        %v2050 = vpop.f32.mrb[0].mxu0
        %v2051 = vadd.f32 0.0, %v2050
        %v2052 = vpop.f32.mrb[0].mxu0
        %v2053 = vpop.f32.mrb[0].mxu0
        %v2054 = vadd.f32 0.0, %v2053
        %v2055 = vpop.f32.mrb[0].mxu0
        %2056 = vmatprep.mubr.bf16.mxu0 0
        %2057 = vmatmul.mubr.bf16.gmra.mrb[0].mxu0 %v2009
        %v2058 = vpop.f32.mrb[0].mxu0
        %v2059 = vadd.f32 0.0, %v2058
        %v2060 = vpop.f32.mrb[0].mxu0
        %v2061 = vpop.f32.mrb[0].mxu0
        %v2062 = vadd.f32 0.0, %v2061
        %v2063 = vpop.f32.mrb[0].mxu0
        %2064 = vmatprep.mubr.bf16.mxu0 0
        %2065 = vmatmul.mubr.bf16.gmra.mrb[0].mxu0 %v2010
        %v2066 = vpop.f32.mrb[0].mxu0
        %v2067 = vadd.f32 0.0, %v2066
        %v2068 = vpop.f32.mrb[0].mxu0
        %v2069 = vpop.f32.mrb[0].mxu0
        %v2070 = vadd.f32 0.0, %v2069
        %v2071 = vpop.f32.mrb[0].mxu0
        %2072 = vmatprep.mubr.bf16.mxu0 0
        %2073 = vmatmul.mubr.bf16.gmra.mrb[0].mxu0 %v2011
        %v2074 = vpop.f32.mrb[0].mxu0
        %v2075 = vadd.f32 0.0, %v2074
        %v2076 = vpop.f32.mrb[0].mxu0
        %v2077 = vpop.f32.mrb[0].mxu0
        %v2078 = vadd.f32 0.0, %v2077
        %v2079 = vpop.f32.mrb[0].mxu0
        %2080 = vmatprep.mubr.bf16.mxu0 0
        %2081 = vmatmul.mubr.bf16.gmra.mrb[0].mxu0 %v2012
        %v2082 = vpop.f32.mrb[0].mxu0
        %v2083 = vadd.f32 0.0, %v2082
        %v2084 = vpop.f32.mrb[0].mxu0
        %v2085 = vpop.f32.mrb[0].mxu0
        %v2086 = vadd.f32 0.0, %v2085
        %v2087 = vpop.f32.mrb[0].mxu0
        %2088 = vmatprep.mubr.bf16.mxu0 0
        %2089 = vmatmul.mubr.bf16.gmra.mrb[0].mxu0 %v2013
        %v2090 = vpop.f32.mrb[0].mxu0
        %v2091 = vadd.f32 0.0, %v2090
        %v2092 = vpop.f32.mrb[0].mxu0
        %v2093 = vpop.f32.mrb[0].mxu0
        %v2094 = vadd.f32 0.0, %v2093
        %v2095 = vpop.f32.mrb[0].mxu0
        %2096 = vmatprep.mubr.bf16.mxu0 0
        %2097 = vmatmul.mubr.bf16.gmra.mrb[0].mxu0 %v2014
        %v2098 = vpop.f32.mrb[0].mxu0
        %v2099 = vadd.f32 0.0, %v2098
        %v2100 = vpop.f32.mrb[0].mxu0
        %v2101 = vpop.f32.mrb[0].mxu0
        %v2102 = vadd.f32 0.0, %v2101
        %v2103 = vpop.f32.mrb[0].mxu0
        %2104 = vmatprep.mubr.bf16.mxu0 0
        %2105 = vmatmul.mubr.bf16.gmra.mrb[0].mxu0 %v2015
        %v2106 = vpop.f32.mrb[0].mxu0
        %v2107 = vadd.f32 0.0, %v2106
        %v2108 = vpop.f32.mrb[0].mxu0
        %v2109 = vpop.f32.mrb[0].mxu0
        %v2110 = vadd.f32 0.0, %v2109
        %v2111 = vpop.f32.mrb[0].mxu0
        %2112 = vdwg.mxu0
        %v2113 = vmax.f32 %v2051, 0.0
        %v2114 = vmax.f32 %v2054, 0.0
        %v2115 = vmax.f32 %v2059, 0.0
        %v2116 = vmax.f32 %v2062, 0.0
        %v2117 = vmax.f32 %v2067, 0.0
        %v2118 = vmax.f32 %v2070, 0.0
        %v2119 = vmax.f32 %v2075, 0.0
        %v2120 = vmax.f32 %v2078, 0.0
        %v2121 = vmax.f32 %v2083, 0.0
        %v2122 = vmax.f32 %v2086, 0.0
        %v2123 = vmax.f32 %v2091, 0.0
        %v2124 = vmax.f32 %v2094, 0.0
        %v2125 = vmax.f32 %v2099, 0.0
        %v2126 = vmax.f32 %v2102, 0.0
        %v2127 = vmax.f32 %v2107, 0.0
        %v2128 = vmax.f32 %v2110, 0.0
        %v2129 = vpack.c.bf16 %v2114, %v2113
        %v2130 = vpack.c.bf16 %v2116, %v2115
        %v2131 = vpack.c.bf16 %v2118, %v2117
        %v2132 = vpack.c.bf16 %v2120, %v2119
        %v2133 = vpack.c.bf16 %v2122, %v2121
        %v2134 = vpack.c.bf16 %v2124, %v2123
        %v2135 = vpack.c.bf16 %v2126, %v2125
        %v2136 = vpack.c.bf16 %v2128, %v2127
        %v2153 = vunpack.c.l.b16 %v1863
        %v2154 = vunpack.c.l.b16 %v1864
        %v2155 = vunpack.c.l.b16 %v1865
        %v2156 = vunpack.c.l.b16 %v1866
        %v2157 = vunpack.c.l.b16 %v1867
        %v2158 = vunpack.c.l.b16 %v1868
        %v2159 = vunpack.c.l.b16 %v1869
        %v2160 = vunpack.c.l.b16 %v1870
        %v2161 = vunpack.c.l.b16 %v1871
        %v2162 = vunpack.c.l.b16 %v1872
        %v2163 = vunpack.c.l.b16 %v1873
        %v2164 = vunpack.c.l.b16 %v1874
        %v2165 = vunpack.c.l.b16 %v1875
        %v2166 = vunpack.c.l.b16 %v1876
        %v2167 = vunpack.c.l.b16 %v1877
        %v2168 = vunpack.c.l.b16 %v1878
        %v2169 = vpack.c.b16 %v2154, %v2153
        %v2170 = vpack.c.b16 %v2156, %v2155
        %v2171 = vpack.c.b16 %v2158, %v2157
        %v2172 = vpack.c.b16 %v2160, %v2159
        %v2173 = vpack.c.b16 %v2162, %v2161
        %v2174 = vpack.c.b16 %v2164, %v2163
        %v2175 = vpack.c.b16 %v2166, %v2165
        %v2176 = vpack.c.b16 %v2168, %v2167
        %2185 = vmatprep.subr.bf16.mxu0 0
        %2186 = vmatpush1.bf16.msra.mxu0 %v2169
        %2187 = vmatprep.subr.bf16.mxu0 0
        %2188 = vmatpush1.bf16.msra.mxu0 %v2170
        %2189 = vmatprep.subr.bf16.mxu0 0
        %2190 = vmatpush1.bf16.msra.mxu0 %v2171
        %2191 = vmatprep.subr.bf16.mxu0 0
        %2192 = vmatpush1.bf16.msra.mxu0 %v2172
        %2193 = vmatprep.subr.bf16.mxu0 0
        %2194 = vmatpush1.bf16.msra.mxu0 %v2173
        %2195 = vmatprep.subr.bf16.mxu0 0
        %2196 = vmatpush1.bf16.msra.mxu0 %v2174
        %2197 = vmatprep.subr.bf16.mxu0 0
        %2198 = vmatpush1.bf16.msra.mxu0 %v2175
        %2199 = vmatprep.subr.bf16.mxu0 0
        %2200 = vmatpush1.bf16.msra.mxu0 %v2176
        %2201 = vmatprep.subr.bf16.mxu0 0
        %2202 = vmatpush1.bf16.msra.mxu0 0
        %2203 = vmatprep.subr.bf16.mxu0 0
        %2204 = vmatpush1.bf16.msra.mxu0 0
        %2205 = vmatprep.subr.bf16.mxu0 0
        %2206 = vmatpush1.bf16.msra.mxu0 0
        %2207 = vmatprep.subr.bf16.mxu0 0
        %2208 = vmatpush1.bf16.msra.mxu0 0
        %2209 = vmatprep.subr.bf16.mxu0 0
        %2210 = vmatpush1.bf16.msra.mxu0 0
        %2211 = vmatprep.subr.bf16.mxu0 0
        %2212 = vmatpush1.bf16.msra.mxu0 0
        %2213 = vmatprep.subr.bf16.mxu0 0
        %2214 = vmatpush1.bf16.msra.mxu0 0
        %2215 = vmatprep.subr.bf16.mxu0 0
        %2216 = vmatpush1.bf16.msra.mxu0 0
        %2217 = vmatprep.mubr.bf16.mxu0 0
        %2218 = vmatmul.mubr.bf16.gmra.mrb[0].mxu0 %v2129
        %v2219 = vpop.f32.mrb[0].mxu0
        %v2220 = vadd.f32 0.0, %v2219
        %v2221 = vpop.f32.mrb[0].mxu0
        %v2222 = vpop.f32.mrb[0].mxu0
        %v2223 = vadd.f32 0.0, %v2222
        %v2224 = vpop.f32.mrb[0].mxu0
        %2225 = vmatprep.mubr.bf16.mxu0 0
        %2226 = vmatmul.mubr.bf16.gmra.mrb[0].mxu0 %v2130
        %v2227 = vpop.f32.mrb[0].mxu0
        %v2228 = vadd.f32 0.0, %v2227
        %v2229 = vpop.f32.mrb[0].mxu0
        %v2230 = vpop.f32.mrb[0].mxu0
        %v2231 = vadd.f32 0.0, %v2230
        %v2232 = vpop.f32.mrb[0].mxu0
        %2233 = vmatprep.mubr.bf16.mxu0 0
        %2234 = vmatmul.mubr.bf16.gmra.mrb[0].mxu0 %v2131
        %v2235 = vpop.f32.mrb[0].mxu0
        %v2236 = vadd.f32 0.0, %v2235
        %v2237 = vpop.f32.mrb[0].mxu0
        %v2238 = vpop.f32.mrb[0].mxu0
        %v2239 = vadd.f32 0.0, %v2238
        %v2240 = vpop.f32.mrb[0].mxu0
        %2241 = vmatprep.mubr.bf16.mxu0 0
        %2242 = vmatmul.mubr.bf16.gmra.mrb[0].mxu0 %v2132
        %v2243 = vpop.f32.mrb[0].mxu0
        %v2244 = vadd.f32 0.0, %v2243
        %v2245 = vpop.f32.mrb[0].mxu0
        %v2246 = vpop.f32.mrb[0].mxu0
        %v2247 = vadd.f32 0.0, %v2246
        %v2248 = vpop.f32.mrb[0].mxu0
        %2249 = vmatprep.mubr.bf16.mxu0 0
        %2250 = vmatmul.mubr.bf16.gmra.mrb[0].mxu0 %v2133
        %v2251 = vpop.f32.mrb[0].mxu0
        %v2252 = vadd.f32 0.0, %v2251
        %v2253 = vpop.f32.mrb[0].mxu0
        %v2254 = vpop.f32.mrb[0].mxu0
        %v2255 = vadd.f32 0.0, %v2254
        %v2256 = vpop.f32.mrb[0].mxu0
        %2257 = vmatprep.mubr.bf16.mxu0 0
        %2258 = vmatmul.mubr.bf16.gmra.mrb[0].mxu0 %v2134
        %v2259 = vpop.f32.mrb[0].mxu0
        %v2260 = vadd.f32 0.0, %v2259
        %v2261 = vpop.f32.mrb[0].mxu0
        %v2262 = vpop.f32.mrb[0].mxu0
        %v2263 = vadd.f32 0.0, %v2262
        %v2264 = vpop.f32.mrb[0].mxu0
        %2265 = vmatprep.mubr.bf16.mxu0 0
        %2266 = vmatmul.mubr.bf16.gmra.mrb[0].mxu0 %v2135
        %v2267 = vpop.f32.mrb[0].mxu0
        %v2268 = vadd.f32 0.0, %v2267
        %v2269 = vpop.f32.mrb[0].mxu0
        %v2270 = vpop.f32.mrb[0].mxu0
        %v2271 = vadd.f32 0.0, %v2270
        %v2272 = vpop.f32.mrb[0].mxu0
        %2273 = vmatprep.mubr.bf16.mxu0 0
        %2274 = vmatmul.mubr.bf16.gmra.mrb[0].mxu0 %v2136
        %v2275 = vpop.f32.mrb[0].mxu0
        %v2276 = vadd.f32 0.0, %v2275
        %v2277 = vpop.f32.mrb[0].mxu0
        %v2278 = vpop.f32.mrb[0].mxu0
        %v2279 = vadd.f32 0.0, %v2278
        %v2280 = vpop.f32.mrb[0].mxu0
        %2281 = vdwg.mxu0
        %v2298 = vunpack.c.l.b16 %v1847
        %v2299 = vunpack.c.l.b16 %v1848
        %v2300 = vunpack.c.l.b16 %v1849
        %v2301 = vunpack.c.l.b16 %v1850
        %v2302 = vunpack.c.l.b16 %v1851
        %v2303 = vunpack.c.l.b16 %v1852
        %v2304 = vunpack.c.l.b16 %v1853
        %v2305 = vunpack.c.l.b16 %v1854
        %v2306 = vunpack.c.l.b16 %v1855
        %v2307 = vunpack.c.l.b16 %v1856
        %v2308 = vunpack.c.l.b16 %v1857
        %v2309 = vunpack.c.l.b16 %v1858
        %v2310 = vunpack.c.l.b16 %v1859
        %v2311 = vunpack.c.l.b16 %v1860
        %v2312 = vunpack.c.l.b16 %v1861
        %v2313 = vunpack.c.l.b16 %v1862
        %v2314 = vpack.c.b16 %v2299, %v2298
        %v2315 = vpack.c.b16 %v2301, %v2300
        %v2316 = vpack.c.b16 %v2303, %v2302
        %v2317 = vpack.c.b16 %v2305, %v2304
        %v2318 = vpack.c.b16 %v2307, %v2306
        %v2319 = vpack.c.b16 %v2309, %v2308
        %v2320 = vpack.c.b16 %v2311, %v2310
        %v2321 = vpack.c.b16 %v2313, %v2312
        %2330 = vmatprep.subr.bf16.mxu0 0
        %2331 = vmatpush1.bf16.msra.mxu0 %v2314
        %2332 = vmatprep.subr.bf16.mxu0 0
        %2333 = vmatpush1.bf16.msra.mxu0 %v2315
        %2334 = vmatprep.subr.bf16.mxu0 0
        %2335 = vmatpush1.bf16.msra.mxu0 %v2316
        %2336 = vmatprep.subr.bf16.mxu0 0
        %2337 = vmatpush1.bf16.msra.mxu0 %v2317
        %2338 = vmatprep.subr.bf16.mxu0 0
        %2339 = vmatpush1.bf16.msra.mxu0 %v2318
        %2340 = vmatprep.subr.bf16.mxu0 0
        %2341 = vmatpush1.bf16.msra.mxu0 %v2319
        %2342 = vmatprep.subr.bf16.mxu0 0
        %2343 = vmatpush1.bf16.msra.mxu0 %v2320
        %2344 = vmatprep.subr.bf16.mxu0 0
        %2345 = vmatpush1.bf16.msra.mxu0 %v2321
        %2346 = vmatprep.subr.bf16.mxu0 0
        %2347 = vmatpush1.bf16.msra.mxu0 0
        %2348 = vmatprep.subr.bf16.mxu0 0
        %2349 = vmatpush1.bf16.msra.mxu0 0
        %2350 = vmatprep.subr.bf16.mxu0 0
        %2351 = vmatpush1.bf16.msra.mxu0 0
        %2352 = vmatprep.subr.bf16.mxu0 0
        %2353 = vmatpush1.bf16.msra.mxu0 0
        %2354 = vmatprep.subr.bf16.mxu0 0
        %2355 = vmatpush1.bf16.msra.mxu0 0
        %2356 = vmatprep.subr.bf16.mxu0 0
        %2357 = vmatpush1.bf16.msra.mxu0 0
        %2358 = vmatprep.subr.bf16.mxu0 0
        %2359 = vmatpush1.bf16.msra.mxu0 0
        %2360 = vmatprep.subr.bf16.mxu0 0
        %2361 = vmatpush1.bf16.msra.mxu0 0
        %2362 = vmatprep.mubr.bf16.mxu0 0
        %2363 = vmatmul.mubr.bf16.gmra.mrb[0].mxu0 %v2000
        %v2364 = vpop.f32.mrb[0].mxu0
        %v2365 = vadd.f32 %v2220, %v2364
        %v2366 = vpop.f32.mrb[0].mxu0
        %v2367 = vpop.f32.mrb[0].mxu0
        %v2368 = vadd.f32 %v2223, %v2367
        %v2369 = vpop.f32.mrb[0].mxu0
        %2370 = vmatprep.mubr.bf16.mxu0 0
        %2371 = vmatmul.mubr.bf16.gmra.mrb[0].mxu0 %v2001
        %v2372 = vpop.f32.mrb[0].mxu0
        %v2373 = vadd.f32 %v2228, %v2372
        %v2374 = vpop.f32.mrb[0].mxu0
        %v2375 = vpop.f32.mrb[0].mxu0
        %v2376 = vadd.f32 %v2231, %v2375
        %v2377 = vpop.f32.mrb[0].mxu0
        %2378 = vmatprep.mubr.bf16.mxu0 0
        %2379 = vmatmul.mubr.bf16.gmra.mrb[0].mxu0 %v2002
        %v2380 = vpop.f32.mrb[0].mxu0
        %v2381 = vadd.f32 %v2236, %v2380
        %v2382 = vpop.f32.mrb[0].mxu0
        %v2383 = vpop.f32.mrb[0].mxu0
        %v2384 = vadd.f32 %v2239, %v2383
        %v2385 = vpop.f32.mrb[0].mxu0
        %2386 = vmatprep.mubr.bf16.mxu0 0
        %2387 = vmatmul.mubr.bf16.gmra.mrb[0].mxu0 %v2003
        %v2388 = vpop.f32.mrb[0].mxu0
        %v2389 = vadd.f32 %v2244, %v2388
        %v2390 = vpop.f32.mrb[0].mxu0
        %v2391 = vpop.f32.mrb[0].mxu0
        %v2392 = vadd.f32 %v2247, %v2391
        %v2393 = vpop.f32.mrb[0].mxu0
        %2394 = vmatprep.mubr.bf16.mxu0 0
        %2395 = vmatmul.mubr.bf16.gmra.mrb[0].mxu0 %v2004
        %v2396 = vpop.f32.mrb[0].mxu0
        %v2397 = vadd.f32 %v2252, %v2396
        %v2398 = vpop.f32.mrb[0].mxu0
        %v2399 = vpop.f32.mrb[0].mxu0
        %v2400 = vadd.f32 %v2255, %v2399
        %v2401 = vpop.f32.mrb[0].mxu0
        %2402 = vmatprep.mubr.bf16.mxu0 0
        %2403 = vmatmul.mubr.bf16.gmra.mrb[0].mxu0 %v2005
        %v2404 = vpop.f32.mrb[0].mxu0
        %v2405 = vadd.f32 %v2260, %v2404
        %v2406 = vpop.f32.mrb[0].mxu0
        %v2407 = vpop.f32.mrb[0].mxu0
        %v2408 = vadd.f32 %v2263, %v2407
        %v2409 = vpop.f32.mrb[0].mxu0
        %2410 = vmatprep.mubr.bf16.mxu0 0
        %2411 = vmatmul.mubr.bf16.gmra.mrb[0].mxu0 %v2006
        %v2412 = vpop.f32.mrb[0].mxu0
        %v2413 = vadd.f32 %v2268, %v2412
        %v2414 = vpop.f32.mrb[0].mxu0
        %v2415 = vpop.f32.mrb[0].mxu0
        %v2416 = vadd.f32 %v2271, %v2415
        %v2417 = vpop.f32.mrb[0].mxu0
        %2418 = vmatprep.mubr.bf16.mxu0 0
        %2419 = vmatmul.mubr.bf16.gmra.mrb[0].mxu0 %v2007
        %v2420 = vpop.f32.mrb[0].mxu0
        %v2421 = vadd.f32 %v2276, %v2420
        %v2422 = vpop.f32.mrb[0].mxu0
        %v2423 = vpop.f32.mrb[0].mxu0
        %v2424 = vadd.f32 %v2279, %v2423
        %v2425 = vpop.f32.mrb[0].mxu0
        %2426 = vdwg.mxu0
        %v2427 = vpack.c.bf16 %v2368, %v2365
        %v2428 = vpack.c.bf16 %v2376, %v2373
        %v2429 = vpack.c.bf16 %v2384, %v2381
        %v2430 = vpack.c.bf16 %v2392, %v2389
        %v2431 = vpack.c.bf16 %v2400, %v2397
        %v2432 = vpack.c.bf16 %v2408, %v2405
        %v2433 = vpack.c.bf16 %v2416, %v2413
        %v2434 = vpack.c.bf16 %v2424, %v2421
        %v2435 = vld [vmem:[%s7] sm:$0x1]
        %vm2436 = vcmask 162816
        %v2438 = vsel %vm2436, %v2435, 0
        %v2441 = vsel %vm2436, %v2427, 0
        %v2444 = vsel %vm2436, %v2428, 0
        %v2447 = vsel %vm2436, %v2429, 0
        %v2450 = vsel %vm2436, %v2430, 0
        %v2453 = vsel %vm2436, %v2431, 0
        %v2456 = vsel %vm2436, %v2432, 0
        %v2459 = vsel %vm2436, %v2433, 0
        %v2462 = vsel %vm2436, %v2434, 0
        %2464 = vmatprep.subr.bf16.mxu0 0
        %2465 = vmatpush1.bf16.xpose.msra.mxu0 %v2441
        %2466 = vmatprep.subr.bf16.mxu0 0
        %2467 = vmatpush1.bf16.xpose.msra.mxu0 %v2444
        %2468 = vmatprep.subr.bf16.mxu0 0
        %2469 = vmatpush1.bf16.xpose.msra.mxu0 %v2447
        %2470 = vmatprep.subr.bf16.mxu0 0
        %2471 = vmatpush1.bf16.xpose.msra.mxu0 %v2450
        %2472 = vmatprep.subr.bf16.mxu0 0
        %2473 = vmatpush1.bf16.xpose.msra.mxu0 %v2453
        %2474 = vmatprep.subr.bf16.mxu0 0
        %2475 = vmatpush1.bf16.xpose.msra.mxu0 %v2456
        %2476 = vmatprep.subr.bf16.mxu0 0
        %2477 = vmatpush1.bf16.xpose.msra.mxu0 %v2459
        %2478 = vmatprep.subr.bf16.mxu0 0
        %2479 = vmatpush1.bf16.xpose.msra.mxu0 %v2462
        %2480 = vmatprep.subr.bf16.mxu0 0
        %2481 = vmatpush1.bf16.xpose.msra.mxu0 0
        %2482 = vmatprep.subr.bf16.mxu0 0
        %2483 = vmatpush1.bf16.xpose.msra.mxu0 0
        %2484 = vmatprep.subr.bf16.mxu0 0
        %2485 = vmatpush1.bf16.xpose.msra.mxu0 0
        %2486 = vmatprep.subr.bf16.mxu0 0
        %2487 = vmatpush1.bf16.xpose.msra.mxu0 0
        %2488 = vmatprep.subr.bf16.mxu0 0
        %2489 = vmatpush1.bf16.xpose.msra.mxu0 0
        %2490 = vmatprep.subr.bf16.mxu0 0
        %2491 = vmatpush1.bf16.xpose.msra.mxu0 0
        %2492 = vmatprep.subr.bf16.mxu0 0
        %2493 = vmatpush1.bf16.xpose.msra.mxu0 0
        %2494 = vmatprep.subr.bf16.mxu0 0
        %2495 = vmatpush1.bf16.xpose.msra.mxu0 0
        %2496 = vmatprep.mubr.bf16.mxu0 0
        %2497 = vmatmul.mubr.bf16.gmra.mrb[0].mxu0 %v2438
        %v2498 = vpop.f32.mrb[0].mxu0
        %v2499 = vadd.f32 0.0, %v2498
        %v2500 = vpop.f32.mrb[0].mxu0
        %v2501 = vpop.f32.mrb[0].mxu0
        %v2502 = vpop.f32.mrb[0].mxu0
        %2503 = vdwg.mxu0
        %v2504 = vld [vmem:[%s8] sm:$0xf]
        %v2505 = vld [vmem:[%s8 + $0x4] sm:$0xf]
        %v2506 = vld [vmem:[%s8 + $0x8] sm:$0x3]
        %v2510 = vunpack.c.l.b16 %v2504
        %v2511 = vunpack.c.l.b16 %v2505
        %v2512 = vunpack.c.l.b16 %v2506
        %v2513 = vpack.c.b16 %v2511, %v2510
        %v2514 = vpack.c.b16 %v2512, %v2512
        %v2517 = vsel %vm608, %v2514, 0
        %2519 = vmatprep.subr.bf16.mxu0 0
        %2520 = vmatpush1.bf16.msra.mxu0 %v2513
        %2521 = vmatprep.subr.bf16.mxu0 0
        %2522 = vmatpush1.bf16.msra.mxu0 %v2517
        %2523 = vmatprep.subr.bf16.mxu0 0
        %2524 = vmatpush1.bf16.msra.mxu0 0
        %2525 = vmatprep.subr.bf16.mxu0 0
        %2526 = vmatpush1.bf16.msra.mxu0 0
        %2527 = vmatprep.subr.bf16.mxu0 0
        %2528 = vmatpush1.bf16.msra.mxu0 0
        %2529 = vmatprep.subr.bf16.mxu0 0
        %2530 = vmatpush1.bf16.msra.mxu0 0
        %2531 = vmatprep.subr.bf16.mxu0 0
        %2532 = vmatpush1.bf16.msra.mxu0 0
        %2533 = vmatprep.subr.bf16.mxu0 0
        %2534 = vmatpush1.bf16.msra.mxu0 0
        %2535 = vmatprep.subr.bf16.mxu0 0
        %2536 = vmatpush1.bf16.msra.mxu0 0
        %2537 = vmatprep.subr.bf16.mxu0 0
        %2538 = vmatpush1.bf16.msra.mxu0 0
        %2539 = vmatprep.subr.bf16.mxu0 0
        %2540 = vmatpush1.bf16.msra.mxu0 0
        %2541 = vmatprep.subr.bf16.mxu0 0
        %2542 = vmatpush1.bf16.msra.mxu0 0
        %2543 = vmatprep.subr.bf16.mxu0 0
        %2544 = vmatpush1.bf16.msra.mxu0 0
        %2545 = vmatprep.subr.bf16.mxu0 0
        %2546 = vmatpush1.bf16.msra.mxu0 0
        %2547 = vmatprep.subr.bf16.mxu0 0
        %2548 = vmatpush1.bf16.msra.mxu0 0
        %2549 = vmatprep.subr.bf16.mxu0 0
        %2550 = vmatpush1.bf16.msra.mxu0 0
        %2551 = vmatprep.mubr.bf16.mxu0 0
        %2552 = vmatmul.mubr.bf16.gmra.mrb[0].mxu0 %v2441
        %v2553 = vpop.f32.mrb[0].mxu0
        %v2554 = vadd.f32 0.0, %v2553
        %v2555 = vpop.f32.mrb[0].mxu0
        %v2556 = vpop.f32.mrb[0].mxu0
        %v2557 = vadd.f32 0.0, %v2556
        %v2558 = vpop.f32.mrb[0].mxu0
        %2559 = vmatprep.mubr.bf16.mxu0 0
        %2560 = vmatmul.mubr.bf16.gmra.mrb[0].mxu0 %v2444
        %v2561 = vpop.f32.mrb[0].mxu0
        %v2562 = vadd.f32 0.0, %v2561
        %v2563 = vpop.f32.mrb[0].mxu0
        %v2564 = vpop.f32.mrb[0].mxu0
        %v2565 = vadd.f32 0.0, %v2564
        %v2566 = vpop.f32.mrb[0].mxu0
        %2567 = vmatprep.mubr.bf16.mxu0 0
        %2568 = vmatmul.mubr.bf16.gmra.mrb[0].mxu0 %v2447
        %v2569 = vpop.f32.mrb[0].mxu0
        %v2570 = vadd.f32 0.0, %v2569
        %v2571 = vpop.f32.mrb[0].mxu0
        %v2572 = vpop.f32.mrb[0].mxu0
        %v2573 = vadd.f32 0.0, %v2572
        %v2574 = vpop.f32.mrb[0].mxu0
        %2575 = vmatprep.mubr.bf16.mxu0 0
        %2576 = vmatmul.mubr.bf16.gmra.mrb[0].mxu0 %v2450
        %v2577 = vpop.f32.mrb[0].mxu0
        %v2578 = vadd.f32 0.0, %v2577
        %v2579 = vpop.f32.mrb[0].mxu0
        %v2580 = vpop.f32.mrb[0].mxu0
        %v2581 = vadd.f32 0.0, %v2580
        %v2582 = vpop.f32.mrb[0].mxu0
        %2583 = vmatprep.mubr.bf16.mxu0 0
        %2584 = vmatmul.mubr.bf16.gmra.mrb[0].mxu0 %v2453
        %v2585 = vpop.f32.mrb[0].mxu0
        %v2586 = vadd.f32 0.0, %v2585
        %v2587 = vpop.f32.mrb[0].mxu0
        %v2588 = vpop.f32.mrb[0].mxu0
        %v2589 = vadd.f32 0.0, %v2588
        %v2590 = vpop.f32.mrb[0].mxu0
        %2591 = vmatprep.mubr.bf16.mxu0 0
        %2592 = vmatmul.mubr.bf16.gmra.mrb[0].mxu0 %v2456
        %v2593 = vpop.f32.mrb[0].mxu0
        %v2594 = vadd.f32 0.0, %v2593
        %v2595 = vpop.f32.mrb[0].mxu0
        %v2596 = vpop.f32.mrb[0].mxu0
        %v2597 = vadd.f32 0.0, %v2596
        %v2598 = vpop.f32.mrb[0].mxu0
        %2599 = vmatprep.mubr.bf16.mxu0 0
        %2600 = vmatmul.mubr.bf16.gmra.mrb[0].mxu0 %v2459
        %v2601 = vpop.f32.mrb[0].mxu0
        %v2602 = vadd.f32 0.0, %v2601
        %v2603 = vpop.f32.mrb[0].mxu0
        %v2604 = vpop.f32.mrb[0].mxu0
        %v2605 = vadd.f32 0.0, %v2604
        %v2606 = vpop.f32.mrb[0].mxu0
        %2607 = vmatprep.mubr.bf16.mxu0 0
        %2608 = vmatmul.mubr.bf16.gmra.mrb[0].mxu0 %v2462
        %v2609 = vpop.f32.mrb[0].mxu0
        %v2610 = vadd.f32 0.0, %v2609
        %v2611 = vpop.f32.mrb[0].mxu0
        %v2612 = vpop.f32.mrb[0].mxu0
        %v2613 = vadd.f32 0.0, %v2612
        %v2614 = vpop.f32.mrb[0].mxu0
        %2615 = vdwg.mxu0
        %2617 = vset.pattern.permute.xlu0 0
        %2618 = vperm.xlu0 %2617, %v2554
        %v2619 = vpop.permute.xlu0 %2618
        %2622 = vset.pattern.permute.xlu0 0
        %2623 = vperm.xlu0 %2622, %v2557
        %v2624 = vpop.permute.xlu0 %2623
        %2627 = vset.pattern.permute.xlu0 0
        %2628 = vperm.xlu0 %2627, %v2562
        %v2629 = vpop.permute.xlu0 %2628
        %2632 = vset.pattern.permute.xlu0 0
        %2633 = vperm.xlu0 %2632, %v2565
        %v2634 = vpop.permute.xlu0 %2633
        %2637 = vset.pattern.permute.xlu0 0
        %2638 = vperm.xlu0 %2637, %v2570
        %v2639 = vpop.permute.xlu0 %2638
        %2642 = vset.pattern.permute.xlu0 0
        %2643 = vperm.xlu0 %2642, %v2573
        %v2644 = vpop.permute.xlu0 %2643
        %2647 = vset.pattern.permute.xlu0 0
        %2648 = vperm.xlu0 %2647, %v2578
        %v2649 = vpop.permute.xlu0 %2648
        %2652 = vset.pattern.permute.xlu0 0
        %2653 = vperm.xlu0 %2652, %v2581
        %v2654 = vpop.permute.xlu0 %2653
        %2657 = vset.pattern.permute.xlu0 0
        %2658 = vperm.xlu0 %2657, %v2586
        %v2659 = vpop.permute.xlu0 %2658
        %2662 = vset.pattern.permute.xlu0 0
        %2663 = vperm.xlu0 %2662, %v2589
        %v2664 = vpop.permute.xlu0 %2663
        %2667 = vset.pattern.permute.xlu0 0
        %2668 = vperm.xlu0 %2667, %v2594
        %v2669 = vpop.permute.xlu0 %2668
        %2672 = vset.pattern.permute.xlu0 0
        %2673 = vperm.xlu0 %2672, %v2597
        %v2674 = vpop.permute.xlu0 %2673
        %2677 = vset.pattern.permute.xlu0 0
        %2678 = vperm.xlu0 %2677, %v2602
        %v2679 = vpop.permute.xlu0 %2678
        %2682 = vset.pattern.permute.xlu0 0
        %2683 = vperm.xlu0 %2682, %v2605
        %v2684 = vpop.permute.xlu0 %2683
        %2687 = vset.pattern.permute.xlu0 0
        %2688 = vperm.xlu0 %2687, %v2610
        %v2689 = vpop.permute.xlu0 %2688
        %2692 = vset.pattern.permute.xlu0 0
        %2693 = vperm.xlu0 %2692, %v2613
        %v2694 = vpop.permute.xlu0 %2693
        %v2696 = vlaneseq
        %v2697 = vshrl.u32 %v2696, 7
        %v2698 = vsub.s32 0, %v2697
        %v2699 = vrot.slane %v2499, %v2698
        %v2700 = vadd.f32 %v2619, %v2699
        %v2701 = vadd.f32 %v2624, %v2699
        %v2702 = vadd.f32 %v2629, %v2699
        %v2703 = vadd.f32 %v2634, %v2699
        %v2704 = vadd.f32 %v2639, %v2699
        %v2705 = vadd.f32 %v2644, %v2699
        %v2706 = vadd.f32 %v2649, %v2699
        %v2707 = vadd.f32 %v2654, %v2699
        %v2708 = vadd.f32 %v2659, %v2699
        %v2709 = vadd.f32 %v2664, %v2699
        %v2710 = vadd.f32 %v2669, %v2699
        %v2711 = vadd.f32 %v2674, %v2699
        %v2712 = vadd.f32 %v2679, %v2699
        %v2713 = vadd.f32 %v2684, %v2699
        %v2714 = vadd.f32 %v2689, %v2699
        %v2715 = vadd.f32 %v2694, %v2699
        %vm2716 = vcmp.ge.f32.partialorder %v2700, 0.0
        %vm2717 = vcmp.ge.f32.partialorder %v2701, 0.0
        %vm2718 = vcmp.ge.f32.partialorder %v2702, 0.0
        %vm2719 = vcmp.ge.f32.partialorder %v2703, 0.0
        %vm2720 = vcmp.ge.f32.partialorder %v2704, 0.0
        %vm2721 = vcmp.ge.f32.partialorder %v2705, 0.0
        %vm2722 = vcmp.ge.f32.partialorder %v2706, 0.0
        %vm2723 = vcmp.ge.f32.partialorder %v2707, 0.0
        %vm2724 = vcmp.ge.f32.partialorder %v2708, 0.0
        %vm2725 = vcmp.ge.f32.partialorder %v2709, 0.0
        %vm2726 = vcmp.ge.f32.partialorder %v2710, 0.0
        %vm2727 = vcmp.ge.f32.partialorder %v2711, 0.0
        %vm2728 = vcmp.ge.f32.partialorder %v2712, 0.0
        %vm2729 = vcmp.ge.f32.partialorder %v2713, 0.0
        %vm2730 = vcmp.ge.f32.partialorder %v2714, 0.0
        %vm2731 = vcmp.ge.f32.partialorder %v2715, 0.0
        %v2732 = vmul.f32 %v2700, 0.01
        %v2733 = vmul.f32 %v2701, 0.01
        %v2734 = vmul.f32 %v2702, 0.01
        %v2735 = vmul.f32 %v2703, 0.01
        %v2736 = vmul.f32 %v2704, 0.01
        %v2737 = vmul.f32 %v2705, 0.01
        %v2738 = vmul.f32 %v2706, 0.01
        %v2739 = vmul.f32 %v2707, 0.01
        %v2740 = vmul.f32 %v2708, 0.01
        %v2741 = vmul.f32 %v2709, 0.01
        %v2742 = vmul.f32 %v2710, 0.01
        %v2743 = vmul.f32 %v2711, 0.01
        %v2744 = vmul.f32 %v2712, 0.01
        %v2745 = vmul.f32 %v2713, 0.01
        %v2746 = vmul.f32 %v2714, 0.01
        %v2747 = vmul.f32 %v2715, 0.01
        %v2748 = vsel %vm2716, %v2700, %v2732
        %v2749 = vsel %vm2717, %v2701, %v2733
        %v2750 = vsel %vm2718, %v2702, %v2734
        %v2751 = vsel %vm2719, %v2703, %v2735
        %v2752 = vsel %vm2720, %v2704, %v2736
        %v2753 = vsel %vm2721, %v2705, %v2737
        %v2754 = vsel %vm2722, %v2706, %v2738
        %v2755 = vsel %vm2723, %v2707, %v2739
        %v2756 = vsel %vm2724, %v2708, %v2740
        %v2757 = vsel %vm2725, %v2709, %v2741
        %v2758 = vsel %vm2726, %v2710, %v2742
        %v2759 = vsel %vm2727, %v2711, %v2743
        %v2760 = vsel %vm2728, %v2712, %v2744
        %v2761 = vsel %vm2729, %v2713, %v2745
        %v2762 = vsel %vm2730, %v2714, %v2746
        %v2763 = vsel %vm2731, %v2715, %v2747
        %v2764 = vsel %vm1415, %v2748, -1e+30
        %v2765 = vsel %vm1416, %v2749, -1e+30
        %v2766 = vsel %vm1417, %v2750, -1e+30
        %v2767 = vsel %vm1418, %v2751, -1e+30
        %v2768 = vsel %vm1419, %v2752, -1e+30
        %v2769 = vsel %vm1420, %v2753, -1e+30
        %v2770 = vsel %vm1421, %v2754, -1e+30
        %v2771 = vsel %vm1422, %v2755, -1e+30
        %v2772 = vsel %vm1423, %v2756, -1e+30
        %v2773 = vsel %vm1424, %v2757, -1e+30
        %v2774 = vsel %vm1425, %v2758, -1e+30
        %v2775 = vsel %vm1426, %v2759, -1e+30
        %v2776 = vsel %vm1427, %v2760, -1e+30
        %v2777 = vsel %vm1428, %v2761, -1e+30
        %v2778 = vsel %vm1429, %v2762, -1e+30
        %v2779 = vsel %vm1430, %v2763, -1e+30
        %2780 = vmax.xlane.f32.xlu0 %v2764
        %v2781 = vpop.xlane.xlu0 %2780
        %2782 = vmax.xlane.f32.xlu0 %v2765
        %v2783 = vpop.xlane.xlu0 %2782
        %2784 = vmax.xlane.f32.xlu0 %v2766
        %v2785 = vpop.xlane.xlu0 %2784
        %2786 = vmax.xlane.f32.xlu0 %v2767
        %v2787 = vpop.xlane.xlu0 %2786
        %2788 = vmax.xlane.f32.xlu0 %v2768
        %v2789 = vpop.xlane.xlu0 %2788
        %2790 = vmax.xlane.f32.xlu0 %v2769
        %v2791 = vpop.xlane.xlu0 %2790
        %2792 = vmax.xlane.f32.xlu0 %v2770
        %v2793 = vpop.xlane.xlu0 %2792
        %2794 = vmax.xlane.f32.xlu0 %v2771
        %v2795 = vpop.xlane.xlu0 %2794
        %2796 = vmax.xlane.f32.xlu0 %v2772
        %v2797 = vpop.xlane.xlu0 %2796
        %2798 = vmax.xlane.f32.xlu0 %v2773
        %v2799 = vpop.xlane.xlu0 %2798
        %2800 = vmax.xlane.f32.xlu0 %v2774
        %v2801 = vpop.xlane.xlu0 %2800
        %2802 = vmax.xlane.f32.xlu0 %v2775
        %v2803 = vpop.xlane.xlu0 %2802
        %2804 = vmax.xlane.f32.xlu0 %v2776
        %v2805 = vpop.xlane.xlu0 %2804
        %2806 = vmax.xlane.f32.xlu0 %v2777
        %v2807 = vpop.xlane.xlu0 %2806
        %2808 = vmax.xlane.f32.xlu0 %v2778
        %v2809 = vpop.xlane.xlu0 %2808
        %2810 = vmax.xlane.f32.xlu0 %v2779
        %v2811 = vpop.xlane.xlu0 %2810
        %v2812 = vsub.f32 %v2764, %v2781
        %v2813 = vsub.f32 %v2765, %v2783
        %v2814 = vsub.f32 %v2766, %v2785
        %v2815 = vsub.f32 %v2767, %v2787
        %v2816 = vsub.f32 %v2768, %v2789
        %v2817 = vsub.f32 %v2769, %v2791
        %v2818 = vsub.f32 %v2770, %v2793
        %v2819 = vsub.f32 %v2771, %v2795
        %v2820 = vsub.f32 %v2772, %v2797
        %v2821 = vsub.f32 %v2773, %v2799
        %v2822 = vsub.f32 %v2774, %v2801
        %v2823 = vsub.f32 %v2775, %v2803
        %v2824 = vsub.f32 %v2776, %v2805
        %v2825 = vsub.f32 %v2777, %v2807
        %v2826 = vsub.f32 %v2778, %v2809
        %v2827 = vsub.f32 %v2779, %v2811
        %v2828 = vmul.f32 %v2812, 1.442695
        %v2829 = vpow.pop %v2828
        %v2830 = vmul.f32 %v2813, 1.442695
        %v2831 = vpow.pop %v2830
        %v2832 = vmul.f32 %v2814, 1.442695
        %v2833 = vpow.pop %v2832
        %v2834 = vmul.f32 %v2815, 1.442695
        %v2835 = vpow.pop %v2834
        %v2836 = vmul.f32 %v2816, 1.442695
        %v2837 = vpow.pop %v2836
        %v2838 = vmul.f32 %v2817, 1.442695
        %v2839 = vpow.pop %v2838
        %v2840 = vmul.f32 %v2818, 1.442695
        %v2841 = vpow.pop %v2840
        %v2842 = vmul.f32 %v2819, 1.442695
        %v2843 = vpow.pop %v2842
        %v2844 = vmul.f32 %v2820, 1.442695
        %v2845 = vpow.pop %v2844
        %v2846 = vmul.f32 %v2821, 1.442695
        %v2847 = vpow.pop %v2846
        %v2848 = vmul.f32 %v2822, 1.442695
        %v2849 = vpow.pop %v2848
        %v2850 = vmul.f32 %v2823, 1.442695
        %v2851 = vpow.pop %v2850
        %v2852 = vmul.f32 %v2824, 1.442695
        %v2853 = vpow.pop %v2852
        %v2854 = vmul.f32 %v2825, 1.442695
        %v2855 = vpow.pop %v2854
        %v2856 = vmul.f32 %v2826, 1.442695
        %v2857 = vpow.pop %v2856
        %v2858 = vmul.f32 %v2827, 1.442695
        %v2859 = vpow.pop %v2858
        %v2860 = vsel %vm1415, %v2829, 0.0
        %v2861 = vsel %vm1416, %v2831, 0.0
        %v2862 = vsel %vm1417, %v2833, 0.0
        %v2863 = vsel %vm1418, %v2835, 0.0
        %v2864 = vsel %vm1419, %v2837, 0.0
        %v2865 = vsel %vm1420, %v2839, 0.0
        %v2866 = vsel %vm1421, %v2841, 0.0
        %v2867 = vsel %vm1422, %v2843, 0.0
        %v2868 = vsel %vm1423, %v2845, 0.0
        %v2869 = vsel %vm1424, %v2847, 0.0
        %v2870 = vsel %vm1425, %v2849, 0.0
        %v2871 = vsel %vm1426, %v2851, 0.0
        %v2872 = vsel %vm1427, %v2853, 0.0
        %v2873 = vsel %vm1428, %v2855, 0.0
        %v2874 = vsel %vm1429, %v2857, 0.0
        %v2875 = vsel %vm1430, %v2859, 0.0
        %2876 = vadd.xlane.f32.xlu0 %v2860
        %v2877 = vpop.xlane.xlu0 %2876
        %2878 = vadd.xlane.f32.xlu0 %v2861
        %v2879 = vpop.xlane.xlu0 %2878
        %2880 = vadd.xlane.f32.xlu0 %v2862
        %v2881 = vpop.xlane.xlu0 %2880
        %2882 = vadd.xlane.f32.xlu0 %v2863
        %v2883 = vpop.xlane.xlu0 %2882
        %2884 = vadd.xlane.f32.xlu0 %v2864
        %v2885 = vpop.xlane.xlu0 %2884
        %2886 = vadd.xlane.f32.xlu0 %v2865
        %v2887 = vpop.xlane.xlu0 %2886
        %2888 = vadd.xlane.f32.xlu0 %v2866
        %v2889 = vpop.xlane.xlu0 %2888
        %2890 = vadd.xlane.f32.xlu0 %v2867
        %v2891 = vpop.xlane.xlu0 %2890
        %2892 = vadd.xlane.f32.xlu0 %v2868
        %v2893 = vpop.xlane.xlu0 %2892
        %2894 = vadd.xlane.f32.xlu0 %v2869
        %v2895 = vpop.xlane.xlu0 %2894
        %2896 = vadd.xlane.f32.xlu0 %v2870
        %v2897 = vpop.xlane.xlu0 %2896
        %2898 = vadd.xlane.f32.xlu0 %v2871
        %v2899 = vpop.xlane.xlu0 %2898
        %2900 = vadd.xlane.f32.xlu0 %v2872
        %v2901 = vpop.xlane.xlu0 %2900
        %2902 = vadd.xlane.f32.xlu0 %v2873
        %v2903 = vpop.xlane.xlu0 %2902
        %2904 = vadd.xlane.f32.xlu0 %v2874
        %v2905 = vpop.xlane.xlu0 %2904
        %2906 = vadd.xlane.f32.xlu0 %v2875
        %v2907 = vpop.xlane.xlu0 %2906
        %v2908 = vmax.f32 %v2877, 1e-20
        %v2909 = vmax.f32 %v2879, 1e-20
        %v2910 = vmax.f32 %v2881, 1e-20
        %v2911 = vmax.f32 %v2883, 1e-20
        %v2912 = vmax.f32 %v2885, 1e-20
        %v2913 = vmax.f32 %v2887, 1e-20
        %v2914 = vmax.f32 %v2889, 1e-20
        %v2915 = vmax.f32 %v2891, 1e-20
        %v2916 = vmax.f32 %v2893, 1e-20
        %v2917 = vmax.f32 %v2895, 1e-20
        %v2918 = vmax.f32 %v2897, 1e-20
        %v2919 = vmax.f32 %v2899, 1e-20
        %v2920 = vmax.f32 %v2901, 1e-20
        %v2921 = vmax.f32 %v2903, 1e-20
        %v2922 = vmax.f32 %v2905, 1e-20
        %v2923 = vmax.f32 %v2907, 1e-20
        %v2924 = vrcp.pop %v2908
        %v2925 = vrcp.pop %v2909
        %v2926 = vrcp.pop %v2910
        %v2927 = vrcp.pop %v2911
        %v2928 = vrcp.pop %v2912
        %v2929 = vrcp.pop %v2913
        %v2930 = vrcp.pop %v2914
        %v2931 = vrcp.pop %v2915
        %v2932 = vrcp.pop %v2916
        %v2933 = vrcp.pop %v2917
        %v2934 = vrcp.pop %v2918
        %v2935 = vrcp.pop %v2919
        %v2936 = vrcp.pop %v2920
        %v2937 = vrcp.pop %v2921
        %v2938 = vrcp.pop %v2922
        %v2939 = vrcp.pop %v2923
        %v2940 = vmul.f32 %v2860, %v2924
        %v2941 = vmul.f32 %v2861, %v2925
        %v2942 = vmul.f32 %v2862, %v2926
        %v2943 = vmul.f32 %v2863, %v2927
        %v2944 = vmul.f32 %v2864, %v2928
        %v2945 = vmul.f32 %v2865, %v2929
        %v2946 = vmul.f32 %v2866, %v2930
        %v2947 = vmul.f32 %v2867, %v2931
        %v2948 = vmul.f32 %v2868, %v2932
        %v2949 = vmul.f32 %v2869, %v2933
        %v2950 = vmul.f32 %v2870, %v2934
        %v2951 = vmul.f32 %v2871, %v2935
        %v2952 = vmul.f32 %v2872, %v2936
        %v2953 = vmul.f32 %v2873, %v2937
        %v2954 = vmul.f32 %v2874, %v2938
        %v2955 = vmul.f32 %v2875, %v2939
        %v2956 = vpack.c.bf16 %v2941, %v2940
        %v2957 = vpack.c.bf16 %v2943, %v2942
        %v2958 = vpack.c.bf16 %v2945, %v2944
        %v2959 = vpack.c.bf16 %v2947, %v2946
        %v2960 = vpack.c.bf16 %v2949, %v2948
        %v2961 = vpack.c.bf16 %v2951, %v2950
        %v2962 = vpack.c.bf16 %v2953, %v2952
        %v2963 = vpack.c.bf16 %v2955, %v2954
        %2964 = vmatprep.subr.bf16.mxu0 0
        %2965 = vmatpush1.bf16.msra.mxu0 %v2427
        %2966 = vmatprep.subr.bf16.mxu0 0
        %2967 = vmatpush1.bf16.msra.mxu0 %v2428
        %2968 = vmatprep.subr.bf16.mxu0 0
        %2969 = vmatpush1.bf16.msra.mxu0 %v2429
        %2970 = vmatprep.subr.bf16.mxu0 0
        %2971 = vmatpush1.bf16.msra.mxu0 %v2430
        %2972 = vmatprep.subr.bf16.mxu0 0
        %2973 = vmatpush1.bf16.msra.mxu0 %v2431
        %2974 = vmatprep.subr.bf16.mxu0 0
        %2975 = vmatpush1.bf16.msra.mxu0 %v2432
        %2976 = vmatprep.subr.bf16.mxu0 0
        %2977 = vmatpush1.bf16.msra.mxu0 %v2433
        %2978 = vmatprep.subr.bf16.mxu0 0
        %2979 = vmatpush1.bf16.msra.mxu0 %v2434
        %2980 = vmatprep.subr.bf16.mxu0 0
        %2981 = vmatpush1.bf16.msra.mxu0 0
        %2982 = vmatprep.subr.bf16.mxu0 0
        %2983 = vmatpush1.bf16.msra.mxu0 0
        %2984 = vmatprep.subr.bf16.mxu0 0
        %2985 = vmatpush1.bf16.msra.mxu0 0
        %2986 = vmatprep.subr.bf16.mxu0 0
        %2987 = vmatpush1.bf16.msra.mxu0 0
        %2988 = vmatprep.subr.bf16.mxu0 0
        %2989 = vmatpush1.bf16.msra.mxu0 0
        %2990 = vmatprep.subr.bf16.mxu0 0
        %2991 = vmatpush1.bf16.msra.mxu0 0
        %2992 = vmatprep.subr.bf16.mxu0 0
        %2993 = vmatpush1.bf16.msra.mxu0 0
        %2994 = vmatprep.subr.bf16.mxu0 0
        %2995 = vmatpush1.bf16.msra.mxu0 0
        %2996 = vmatprep.mubr.bf16.mxu0 0
        %2997 = vmatmul.mubr.bf16.gmra.mrb[0].mxu0 %v2956
        %v2998 = vpop.f32.mrb[0].mxu0
        %v2999 = vadd.f32 0.0, %v2998
        %v3000 = vpop.f32.mrb[0].mxu0
        %v3001 = vpop.f32.mrb[0].mxu0
        %v3002 = vadd.f32 0.0, %v3001
        %v3003 = vpop.f32.mrb[0].mxu0
        %3004 = vmatprep.mubr.bf16.mxu0 0
        %3005 = vmatmul.mubr.bf16.gmra.mrb[0].mxu0 %v2957
        %v3006 = vpop.f32.mrb[0].mxu0
        %v3007 = vadd.f32 0.0, %v3006
        %v3008 = vpop.f32.mrb[0].mxu0
        %v3009 = vpop.f32.mrb[0].mxu0
        %v3010 = vadd.f32 0.0, %v3009
        %v3011 = vpop.f32.mrb[0].mxu0
        %3012 = vmatprep.mubr.bf16.mxu0 0
        %3013 = vmatmul.mubr.bf16.gmra.mrb[0].mxu0 %v2958
        %v3014 = vpop.f32.mrb[0].mxu0
        %v3015 = vadd.f32 0.0, %v3014
        %v3016 = vpop.f32.mrb[0].mxu0
        %v3017 = vpop.f32.mrb[0].mxu0
        %v3018 = vadd.f32 0.0, %v3017
        %v3019 = vpop.f32.mrb[0].mxu0
        %3020 = vmatprep.mubr.bf16.mxu0 0
        %3021 = vmatmul.mubr.bf16.gmra.mrb[0].mxu0 %v2959
        %v3022 = vpop.f32.mrb[0].mxu0
        %v3023 = vadd.f32 0.0, %v3022
        %v3024 = vpop.f32.mrb[0].mxu0
        %v3025 = vpop.f32.mrb[0].mxu0
        %v3026 = vadd.f32 0.0, %v3025
        %v3027 = vpop.f32.mrb[0].mxu0
        %3028 = vmatprep.mubr.bf16.mxu0 0
        %3029 = vmatmul.mubr.bf16.gmra.mrb[0].mxu0 %v2960
        %v3030 = vpop.f32.mrb[0].mxu0
        %v3031 = vadd.f32 0.0, %v3030
        %v3032 = vpop.f32.mrb[0].mxu0
        %v3033 = vpop.f32.mrb[0].mxu0
        %v3034 = vadd.f32 0.0, %v3033
        %v3035 = vpop.f32.mrb[0].mxu0
        %3036 = vmatprep.mubr.bf16.mxu0 0
        %3037 = vmatmul.mubr.bf16.gmra.mrb[0].mxu0 %v2961
        %v3038 = vpop.f32.mrb[0].mxu0
        %v3039 = vadd.f32 0.0, %v3038
        %v3040 = vpop.f32.mrb[0].mxu0
        %v3041 = vpop.f32.mrb[0].mxu0
        %v3042 = vadd.f32 0.0, %v3041
        %v3043 = vpop.f32.mrb[0].mxu0
        %3044 = vmatprep.mubr.bf16.mxu0 0
        %3045 = vmatmul.mubr.bf16.gmra.mrb[0].mxu0 %v2962
        %v3046 = vpop.f32.mrb[0].mxu0
        %v3047 = vadd.f32 0.0, %v3046
        %v3048 = vpop.f32.mrb[0].mxu0
        %v3049 = vpop.f32.mrb[0].mxu0
        %v3050 = vadd.f32 0.0, %v3049
        %v3051 = vpop.f32.mrb[0].mxu0
        %3052 = vmatprep.mubr.bf16.mxu0 0
        %3053 = vmatmul.mubr.bf16.gmra.mrb[0].mxu0 %v2963
        %v3054 = vpop.f32.mrb[0].mxu0
        %v3055 = vadd.f32 0.0, %v3054
        %v3056 = vpop.f32.mrb[0].mxu0
        %v3057 = vpop.f32.mrb[0].mxu0
        %v3058 = vadd.f32 0.0, %v3057
        %v3059 = vpop.f32.mrb[0].mxu0
        %3060 = vdwg.mxu0
        %v3061 = vmax.f32 %v2999, 0.0
        %v3062 = vmax.f32 %v3002, 0.0
        %v3063 = vmax.f32 %v3007, 0.0
        %v3064 = vmax.f32 %v3010, 0.0
        %v3065 = vmax.f32 %v3015, 0.0
        %v3066 = vmax.f32 %v3018, 0.0
        %v3067 = vmax.f32 %v3023, 0.0
        %v3068 = vmax.f32 %v3026, 0.0
        %v3069 = vmax.f32 %v3031, 0.0
        %v3070 = vmax.f32 %v3034, 0.0
        %v3071 = vmax.f32 %v3039, 0.0
        %v3072 = vmax.f32 %v3042, 0.0
        %v3073 = vmax.f32 %v3047, 0.0
        %v3074 = vmax.f32 %v3050, 0.0
        %v3075 = vmax.f32 %v3055, 0.0
        %v3076 = vmax.f32 %v3058, 0.0
        %v3077 = vld [vmem:[%s9] sm:$0xff]
        %v3078 = vld [vmem:[%s9 + $0x8] sm:$0xff]
        %3079 = vmatprep.subr.mxu0 0.0
        %3080 = vmatpush1.msra.mxu0 %v3061
        %3081 = vmatprep.subr.mxu0 0.0
        %3082 = vmatpush1.msra.mxu0 %v3062
        %3083 = vmatprep.subr.mxu0 0.0
        %3084 = vmatpush1.msra.mxu0 %v3063
        %3085 = vmatprep.subr.mxu0 0.0
        %3086 = vmatpush1.msra.mxu0 %v3064
        %3087 = vmatprep.subr.mxu0 0.0
        %3088 = vmatpush1.msra.mxu0 %v3065
        %3089 = vmatprep.subr.mxu0 0.0
        %3090 = vmatpush1.msra.mxu0 %v3066
        %3091 = vmatprep.subr.mxu0 0.0
        %3092 = vmatpush1.msra.mxu0 %v3067
        %3093 = vmatprep.subr.mxu0 0.0
        %3094 = vmatpush1.msra.mxu0 %v3068
        %3095 = vmatprep.subr.mxu0 0.0
        %3096 = vmatpush1.msra.mxu0 %v3069
        %3097 = vmatprep.subr.mxu0 0.0
        %3098 = vmatpush1.msra.mxu0 %v3070
        %3099 = vmatprep.subr.mxu0 0.0
        %3100 = vmatpush1.msra.mxu0 %v3071
        %3101 = vmatprep.subr.mxu0 0.0
        %3102 = vmatpush1.msra.mxu0 %v3072
        %3103 = vmatprep.subr.mxu0 0.0
        %3104 = vmatpush1.msra.mxu0 %v3073
        %3105 = vmatprep.subr.mxu0 0.0
        %3106 = vmatpush1.msra.mxu0 %v3074
        %3107 = vmatprep.subr.mxu0 0.0
        %3108 = vmatpush1.msra.mxu0 %v3075
        %3109 = vmatprep.subr.mxu0 0.0
        %3110 = vmatpush1.msra.mxu0 %v3076
        %3111 = vmatprep.subr.mxu0 0.0
        %3112 = vmatpush1.msra.mxu0 0.0
        %3113 = vmatprep.subr.mxu0 0.0
        %3114 = vmatpush1.msra.mxu0 0.0
        %3115 = vmatprep.subr.mxu0 0.0
        %3116 = vmatpush1.msra.mxu0 0.0
        %3117 = vmatprep.subr.mxu0 0.0
        %3118 = vmatpush1.msra.mxu0 0.0
        %3119 = vmatprep.subr.mxu0 0.0
        %3120 = vmatpush1.msra.mxu0 0.0
        %3121 = vmatprep.subr.mxu0 0.0
        %3122 = vmatpush1.msra.mxu0 0.0
        %3123 = vmatprep.subr.mxu0 0.0
        %3124 = vmatpush1.msra.mxu0 0.0
        %3125 = vmatprep.subr.mxu0 0.0
        %3126 = vmatpush1.msra.mxu0 0.0
        %3127 = vmatprep.subr.mxu0 0.0
        %3128 = vmatpush1.msra.mxu0 0.0
        %3129 = vmatprep.subr.mxu0 0.0
        %3130 = vmatpush1.msra.mxu0 0.0
        %3131 = vmatprep.subr.mxu0 0.0
        %3132 = vmatpush1.msra.mxu0 0.0
        %3133 = vmatprep.subr.mxu0 0.0
        %3134 = vmatpush1.msra.mxu0 0.0
        %3135 = vmatprep.subr.mxu0 0.0
        %3136 = vmatpush1.msra.mxu0 0.0
        %3137 = vmatprep.subr.mxu0 0.0
        %3138 = vmatpush1.msra.mxu0 0.0
        %3139 = vmatprep.subr.mxu0 0.0
        %3140 = vmatpush1.msra.mxu0 0.0
        %3141 = vmatprep.subr.mxu0 0.0
        %3142 = vmatpush1.msra.mxu0 0.0
        %3143 = vmatprep.mubr.f32.mxu0 0.0
        %3144 = vmatmul.mubr.f32.gmra.mrb[0].mxu0 %v3077
        %v3145 = vpop.f32.mrb[0].mxu0
        %v3146 = vadd.f32 0.0, %v3145
        %v3147 = vpop.f32.mrb[0].mxu0
        %3148 = vmatprep.mubr.f32.mxu0 0.0
        %3149 = vmatmul.mubr.f32.gmra.mrb[0].mxu0 %v3078
        %v3150 = vpop.f32.mrb[0].mxu0
        %v3151 = vadd.f32 0.0, %v3150
        %v3152 = vpop.f32.mrb[0].mxu0
        %3153 = vdwg.mxu0
        %v3154 = vld [vmem:[%s10] sm:$0xff]
        %v3155 = vld [vmem:[%s10 + $0x8] sm:$0xff]
        %v3156 = vld [vmem:[%s10 + $0x10] sm:$0xf]
        %v3157 = vld [vmem:[%s535] sm:$0xff]
        %v3158 = vld [vmem:[%s535 + $0x8] sm:$0xff]
        %v3159 = vld [vmem:[%s11] sm:$0x7]
        %vm3160 = vcmask 23552
        %v3162 = vsel %vm3160, %v3157, 0
        %v3165 = vsel %vm3160, %v3158, 0
        %vm3167 = vcmask 1042432
        %v3169 = vsel %vm3167, %v3159, 0
        %3171 = vmatprep.subr.mxu0 0.0
        %3172 = vmatpush1.msra.mxu0 %v3169
        %3173 = vmatprep.subr.mxu0 0.0
        %3174 = vmatpush1.msra.mxu0 0.0
        %3175 = vmatprep.subr.mxu0 0.0
        %3176 = vmatpush1.msra.mxu0 0.0
        %3177 = vmatprep.subr.mxu0 0.0
        %3178 = vmatpush1.msra.mxu0 0.0
        %3179 = vmatprep.subr.mxu0 0.0
        %3180 = vmatpush1.msra.mxu0 0.0
        %3181 = vmatprep.subr.mxu0 0.0
        %3182 = vmatpush1.msra.mxu0 0.0
        %3183 = vmatprep.subr.mxu0 0.0
        %3184 = vmatpush1.msra.mxu0 0.0
        %3185 = vmatprep.subr.mxu0 0.0
        %3186 = vmatpush1.msra.mxu0 0.0
        %3187 = vmatprep.subr.mxu0 0.0
        %3188 = vmatpush1.msra.mxu0 0.0
        %3189 = vmatprep.subr.mxu0 0.0
        %3190 = vmatpush1.msra.mxu0 0.0
        %3191 = vmatprep.subr.mxu0 0.0
        %3192 = vmatpush1.msra.mxu0 0.0
        %3193 = vmatprep.subr.mxu0 0.0
        %3194 = vmatpush1.msra.mxu0 0.0
        %3195 = vmatprep.subr.mxu0 0.0
        %3196 = vmatpush1.msra.mxu0 0.0
        %3197 = vmatprep.subr.mxu0 0.0
        %3198 = vmatpush1.msra.mxu0 0.0
        %3199 = vmatprep.subr.mxu0 0.0
        %3200 = vmatpush1.msra.mxu0 0.0
        %3201 = vmatprep.subr.mxu0 0.0
        %3202 = vmatpush1.msra.mxu0 0.0
        %3203 = vmatprep.subr.mxu0 0.0
        %3204 = vmatpush1.msra.mxu0 0.0
        %3205 = vmatprep.subr.mxu0 0.0
        %3206 = vmatpush1.msra.mxu0 0.0
        %3207 = vmatprep.subr.mxu0 0.0
        %3208 = vmatpush1.msra.mxu0 0.0
        %3209 = vmatprep.subr.mxu0 0.0
        %3210 = vmatpush1.msra.mxu0 0.0
        %3211 = vmatprep.subr.mxu0 0.0
        %3212 = vmatpush1.msra.mxu0 0.0
        %3213 = vmatprep.subr.mxu0 0.0
        %3214 = vmatpush1.msra.mxu0 0.0
        %3215 = vmatprep.subr.mxu0 0.0
        %3216 = vmatpush1.msra.mxu0 0.0
        %3217 = vmatprep.subr.mxu0 0.0
        %3218 = vmatpush1.msra.mxu0 0.0
        %3219 = vmatprep.subr.mxu0 0.0
        %3220 = vmatpush1.msra.mxu0 0.0
        %3221 = vmatprep.subr.mxu0 0.0
        %3222 = vmatpush1.msra.mxu0 0.0
        %3223 = vmatprep.subr.mxu0 0.0
        %3224 = vmatpush1.msra.mxu0 0.0
        %3225 = vmatprep.subr.mxu0 0.0
        %3226 = vmatpush1.msra.mxu0 0.0
        %3227 = vmatprep.subr.mxu0 0.0
        %3228 = vmatpush1.msra.mxu0 0.0
        %3229 = vmatprep.subr.mxu0 0.0
        %3230 = vmatpush1.msra.mxu0 0.0
        %3231 = vmatprep.subr.mxu0 0.0
        %3232 = vmatpush1.msra.mxu0 0.0
        %3233 = vmatprep.subr.mxu0 0.0
        %3234 = vmatpush1.msra.mxu0 0.0
        %3235 = vmatprep.mubr.f32.mxu0 0.0
        %3236 = vmatmul.mubr.f32.gmra.mrb[0].mxu0 %v3162
        %v3237 = vpop.f32.mrb[0].mxu0
        %v3238 = vadd.f32 0.0, %v3237
        %v3239 = vpop.f32.mrb[0].mxu0
        %3240 = vmatprep.mubr.f32.mxu0 0.0
        %3241 = vmatmul.mubr.f32.gmra.mrb[0].mxu0 %v3165
        %v3242 = vpop.f32.mrb[0].mxu0
        %v3243 = vadd.f32 0.0, %v3242
        %v3244 = vpop.f32.mrb[0].mxu0
        %3245 = vdwg.mxu0
        %v3247 = vsel %vm2436, %v3146, 0
        %v3250 = vsel %vm2436, %v3151, 0
        %vm3252 = vcmask 1043456
        %v3254 = vsel %vm3252, %v3156, 0
        %3256 = vmatprep.subr.mxu0 0.0
        %3257 = vmatpush1.msra.mxu0 %v3154
        %3258 = vmatprep.subr.mxu0 0.0
        %3259 = vmatpush1.msra.mxu0 %v3155
        %3260 = vmatprep.subr.mxu0 0.0
        %3261 = vmatpush1.msra.mxu0 %v3254
        %3262 = vmatprep.subr.mxu0 0.0
        %3263 = vmatpush1.msra.mxu0 0.0
        %3264 = vmatprep.subr.mxu0 0.0
        %3265 = vmatpush1.msra.mxu0 0.0
        %3266 = vmatprep.subr.mxu0 0.0
        %3267 = vmatpush1.msra.mxu0 0.0
        %3268 = vmatprep.subr.mxu0 0.0
        %3269 = vmatpush1.msra.mxu0 0.0
        %3270 = vmatprep.subr.mxu0 0.0
        %3271 = vmatpush1.msra.mxu0 0.0
        %3272 = vmatprep.subr.mxu0 0.0
        %3273 = vmatpush1.msra.mxu0 0.0
        %3274 = vmatprep.subr.mxu0 0.0
        %3275 = vmatpush1.msra.mxu0 0.0
        %3276 = vmatprep.subr.mxu0 0.0
        %3277 = vmatpush1.msra.mxu0 0.0
        %3278 = vmatprep.subr.mxu0 0.0
        %3279 = vmatpush1.msra.mxu0 0.0
        %3280 = vmatprep.subr.mxu0 0.0
        %3281 = vmatpush1.msra.mxu0 0.0
        %3282 = vmatprep.subr.mxu0 0.0
        %3283 = vmatpush1.msra.mxu0 0.0
        %3284 = vmatprep.subr.mxu0 0.0
        %3285 = vmatpush1.msra.mxu0 0.0
        %3286 = vmatprep.subr.mxu0 0.0
        %3287 = vmatpush1.msra.mxu0 0.0
        %3288 = vmatprep.subr.mxu0 0.0
        %3289 = vmatpush1.msra.mxu0 0.0
        %3290 = vmatprep.subr.mxu0 0.0
        %3291 = vmatpush1.msra.mxu0 0.0
        %3292 = vmatprep.subr.mxu0 0.0
        %3293 = vmatpush1.msra.mxu0 0.0
        %3294 = vmatprep.subr.mxu0 0.0
        %3295 = vmatpush1.msra.mxu0 0.0
        %3296 = vmatprep.subr.mxu0 0.0
        %3297 = vmatpush1.msra.mxu0 0.0
        %3298 = vmatprep.subr.mxu0 0.0
        %3299 = vmatpush1.msra.mxu0 0.0
        %3300 = vmatprep.subr.mxu0 0.0
        %3301 = vmatpush1.msra.mxu0 0.0
        %3302 = vmatprep.subr.mxu0 0.0
        %3303 = vmatpush1.msra.mxu0 0.0
        %3304 = vmatprep.subr.mxu0 0.0
        %3305 = vmatpush1.msra.mxu0 0.0
        %3306 = vmatprep.subr.mxu0 0.0
        %3307 = vmatpush1.msra.mxu0 0.0
        %3308 = vmatprep.subr.mxu0 0.0
        %3309 = vmatpush1.msra.mxu0 0.0
        %3310 = vmatprep.subr.mxu0 0.0
        %3311 = vmatpush1.msra.mxu0 0.0
        %3312 = vmatprep.subr.mxu0 0.0
        %3313 = vmatpush1.msra.mxu0 0.0
        %3314 = vmatprep.subr.mxu0 0.0
        %3315 = vmatpush1.msra.mxu0 0.0
        %3316 = vmatprep.subr.mxu0 0.0
        %3317 = vmatpush1.msra.mxu0 0.0
        %3318 = vmatprep.subr.mxu0 0.0
        %3319 = vmatpush1.msra.mxu0 0.0
        %3320 = vmatprep.mubr.f32.mxu0 0.0
        %3321 = vmatmul.mubr.f32.gmra.mrb[0].mxu0 %v3247
        %v3322 = vpop.f32.mrb[0].mxu0
        %v3323 = vadd.f32 %v3238, %v3322
        %v3324 = vpop.f32.mrb[0].mxu0
        %3325 = vmatprep.mubr.f32.mxu0 0.0
        %3326 = vmatmul.mubr.f32.gmra.mrb[0].mxu0 %v3250
        %v3327 = vpop.f32.mrb[0].mxu0
        %v3328 = vadd.f32 %v3243, %v3327
        %v3329 = vpop.f32.mrb[0].mxu0
        %3330 = vdwg.mxu0
        %v3331 = vld [vmem:[%s12] sm:$0x1]
        %v3333 = vlaneseq
        %v3334 = vshrl.u32 %v3333, 7
        %v3335 = vsub.s32 0, %v3334
        %v3336 = vrot.slane %v3331, %v3335
        %v3338 = vadd.f32 %v3323, %v3336
        %v3339 = vadd.f32 %v3328, %v3336
        %v3340 = vmax.f32 %v3338, 0.0
        %v3341 = vmax.f32 %v3339, 0.0
        %v3342 = vld [vmem:[%s13] sm:$0xff]
        %v3343 = vld [vmem:[%s13 + $0x8] sm:$0x3]
        %v3344 = vld [vmem:[%s14] sm:$0x1]
        %v3346 = vlaneseq
        %v3347 = vshrl.u32 %v3346, 7
        %v3348 = vsub.s32 0, %v3347
        %v3349 = vrot.slane %v3344, %v3348
        %vm3351 = vcmask 80896
        %v3353 = vsel %vm3351, %v3340, 0
        %v3356 = vsel %vm3351, %v3341, 0
        %v3359 = vsel %vm608, %v3343, 0
        %3361 = vmatprep.subr.mxu0 0.0
        %3362 = vmatpush1.msra.mxu0 %v3342
        %3363 = vmatprep.subr.mxu0 0.0
        %3364 = vmatpush1.msra.mxu0 %v3359
        %3365 = vmatprep.subr.mxu0 0.0
        %3366 = vmatpush1.msra.mxu0 0.0
        %3367 = vmatprep.subr.mxu0 0.0
        %3368 = vmatpush1.msra.mxu0 0.0
        %3369 = vmatprep.subr.mxu0 0.0
        %3370 = vmatpush1.msra.mxu0 0.0
        %3371 = vmatprep.subr.mxu0 0.0
        %3372 = vmatpush1.msra.mxu0 0.0
        %3373 = vmatprep.subr.mxu0 0.0
        %3374 = vmatpush1.msra.mxu0 0.0
        %3375 = vmatprep.subr.mxu0 0.0
        %3376 = vmatpush1.msra.mxu0 0.0
        %3377 = vmatprep.subr.mxu0 0.0
        %3378 = vmatpush1.msra.mxu0 0.0
        %3379 = vmatprep.subr.mxu0 0.0
        %3380 = vmatpush1.msra.mxu0 0.0
        %3381 = vmatprep.subr.mxu0 0.0
        %3382 = vmatpush1.msra.mxu0 0.0
        %3383 = vmatprep.subr.mxu0 0.0
        %3384 = vmatpush1.msra.mxu0 0.0
        %3385 = vmatprep.subr.mxu0 0.0
        %3386 = vmatpush1.msra.mxu0 0.0
        %3387 = vmatprep.subr.mxu0 0.0
        %3388 = vmatpush1.msra.mxu0 0.0
        %3389 = vmatprep.subr.mxu0 0.0
        %3390 = vmatpush1.msra.mxu0 0.0
        %3391 = vmatprep.subr.mxu0 0.0
        %3392 = vmatpush1.msra.mxu0 0.0
        %3393 = vmatprep.subr.mxu0 0.0
        %3394 = vmatpush1.msra.mxu0 0.0
        %3395 = vmatprep.subr.mxu0 0.0
        %3396 = vmatpush1.msra.mxu0 0.0
        %3397 = vmatprep.subr.mxu0 0.0
        %3398 = vmatpush1.msra.mxu0 0.0
        %3399 = vmatprep.subr.mxu0 0.0
        %3400 = vmatpush1.msra.mxu0 0.0
        %3401 = vmatprep.subr.mxu0 0.0
        %3402 = vmatpush1.msra.mxu0 0.0
        %3403 = vmatprep.subr.mxu0 0.0
        %3404 = vmatpush1.msra.mxu0 0.0
        %3405 = vmatprep.subr.mxu0 0.0
        %3406 = vmatpush1.msra.mxu0 0.0
        %3407 = vmatprep.subr.mxu0 0.0
        %3408 = vmatpush1.msra.mxu0 0.0
        %3409 = vmatprep.subr.mxu0 0.0
        %3410 = vmatpush1.msra.mxu0 0.0
        %3411 = vmatprep.subr.mxu0 0.0
        %3412 = vmatpush1.msra.mxu0 0.0
        %3413 = vmatprep.subr.mxu0 0.0
        %3414 = vmatpush1.msra.mxu0 0.0
        %3415 = vmatprep.subr.mxu0 0.0
        %3416 = vmatpush1.msra.mxu0 0.0
        %3417 = vmatprep.subr.mxu0 0.0
        %3418 = vmatpush1.msra.mxu0 0.0
        %3419 = vmatprep.subr.mxu0 0.0
        %3420 = vmatpush1.msra.mxu0 0.0
        %3421 = vmatprep.subr.mxu0 0.0
        %3422 = vmatpush1.msra.mxu0 0.0
        %3423 = vmatprep.subr.mxu0 0.0
        %3424 = vmatpush1.msra.mxu0 0.0
        %3425 = vmatprep.mubr.f32.mxu0 0.0
        %3426 = vmatmul.mubr.f32.gmra.mrb[0].mxu0 %v3353
        %v3427 = vpop.f32.mrb[0].mxu0
        %v3428 = vadd.f32 %v3349, %v3427
        %v3429 = vpop.f32.mrb[0].mxu0
        %3430 = vmatprep.mubr.f32.mxu0 0.0
        %3431 = vmatmul.mubr.f32.gmra.mrb[0].mxu0 %v3356
        %v3432 = vpop.f32.mrb[0].mxu0
        %v3433 = vadd.f32 %v3349, %v3432
        %v3434 = vpop.f32.mrb[0].mxu0
        %3435 = vdwg.mxu0
        %3436 = vst [vmem:[%s519] sm:$0xff] %v3428
        %3437 = vst [vmem:[%s519 + $0x8] sm:$0xff] %v3433
        %s3438 = sand.u32 %s367, 1
        %s3439 = scalar_lea.sflag [#allocation3], %s3438
        %s3440 = sand.u32 %s367, 1
        %s3441 = smul.addr %s3440, 16
        %s3442 = scalar_lea.vmem [#allocation2], %s3441
        // Predicated region
        $region81: #{tpu_custom_call.1} parent=79 // pred_check
          %p3443 = pneg %p377
        $region82: #{tpu_custom_call.1} parent=79 // pred_check_branch
          %3445 = sbr.rel (%p3443) target = $region84
        $region83: #{tpu_custom_call.1} parent=79 // pred_region
          %s3446 = smul.u32 2, %s29
          %s3448 = ssub.s32 256, 256
          %3449 = vsyncadd %s3439, %s3448
          %s3450 = smul.addr %s3446, 128
          %s3451 = scalar_lea.hbm %s15, %s3450
          %s3452 = sshll.u32 %s3442, 4
          %s3453 = int_to_ptr.vmem [resolvable:$true] %s3452
          %3458 = dma.vmem_to_hbm [thread:$0]  %s3453, 256, %s3451, %s3439, 128, 128, 8
        $region84: #{tpu_custom_call.1} parent=79 // pred_fallthru
          _
      $region80: #{tpu_custom_call.1} parent=5 // pred_fallthru
        _
      %p3459 = scmp.le.s32.totalorder 2, %s24
      // Predicated region
      $region85: #{tpu_custom_call.1} parent=5 // pred_check
        %p3460 = pneg %p3459
      $region86: #{tpu_custom_call.1} parent=5 // pred_check_branch
        %3462 = sbr.rel (%p3460) target = $region88
      $region87: #{tpu_custom_call.1} parent=5 // pred_region
        %s3463 = ssub.s32 %s24, 2
        // Predicated region
        $region89: #{tpu_custom_call.1} parent=87 // pred_check
          %p3464 = pneg %p383
        $region90: #{tpu_custom_call.1} parent=87 // pred_check_branch
          %3466 = sbr.rel (%p3464) target = $region92
        $region91: #{tpu_custom_call.1} parent=87 // pred_region
          %s3467 = sand.u32 %s368, 1
          %s3468 = scalar_lea.sflag [#allocation3], %s3467
          %s3469 = sand.u32 %s368, 1
          %s3470 = smul.addr %s3469, 16
          %s3471 = scalar_lea.vmem [#allocation2], %s3470
          %3472 = dma.done %s3468, 256
        $region92: #{tpu_custom_call.1} parent=87 // pred_fallthru
          _
      $region88: #{tpu_custom_call.1} parent=5 // pred_fallthru
        _
    $region6: #{tpu_custom_call.1} parent=1 // loop_footer
      %s28 = sadd.s32 1, %s24
    $region7: #{tpu_custom_call.1} parent=1 // loop_footer_branch
      %23 = sbr.rel target = $region3
    $region8: #{tpu_custom_call.1} parent=1 // loop_exit
      _
    %3473 = vsyncpa [#allocation3], 1
    %s3474 = scalar_lea.sflag [#allocation3], 1
    %3475 = vsyncpa %s3474, 1

</llo_original>
